<compile_context>
chip_gen: v7x
topology: tpu7x:2x2x1
jax: 0.10.0
libtpu: 0.0.40
codegen_flags: <defaults>
</compile_context>

<pallas_src>
import functools

import jax
import jax.numpy as jnp
from jax import lax
from jax.experimental import pallas as pl
from jax.experimental.pallas import tpu as pltpu

GATE_PAD = 128            # per-gate lane padding (one full vreg of lanes)
HEAD_PAD = 128            # fused par1|par2|par3 head lane padding
G4 = 4 * GATE_PAD         # 512: width of a gate-padded LSTM weight block
SLAB_W = 2 * G4           # 1024: lane width of the packed parameter slab


def _round_up(x, m):
    return (x + m - 1) // m * m


def _isrlu(x):
    # InverseSquareRootLinearUnit: 1 + 5e-3 + (x if x > 0 else x / sqrt(1 + x^2))
    return 1.0 + 5e-3 + jnp.where(x > 0, x, x * lax.rsqrt(1.0 + x * x))


def _clipped_tanh(x):
    # ClippedTanh: 0.5 * (1 + 0.999 * tanh(x))
    return 0.5 * (1.0 + 0.999 * jnp.tanh(x))


def decoder_vae_kernel(z_ref, slab_ref, out_ref, *,
                       seq_len, n_out, r_lat, ra, rb,
                       off_bias, off_wih0, off_a, off_b):
    f32 = jnp.float32
    bf16 = jnp.bfloat16
    B = z_ref.shape[0]

    # ---- hoisted, loop-invariant weight loads (~20 bf16 vregs total) -------
    wih0 = slab_ref[off_wih0:off_wih0 + r_lat, 0:G4]            # (r_lat, 512)
    a_blk = slab_ref[off_a:off_a + ra, :]                       # (ra, 1024) = [whh0 | wih1]
    b_blk = slab_ref[off_b:off_b + rb, 0:G4 + HEAD_PAD]         # (rb, 640)  = [whh1 | heads]

    # z is repeated along the sequence, so LSTMdec's input projection
    # z @ W_ih^T + (b_ih + b_hh) is time-constant: compute it once.
    zb = z_ref[...].astype(bf16)
    zproj = (jnp.dot(zb, wih0, preferred_element_type=f32)
             + slab_ref[off_bias:off_bias + 1, 0:G4].astype(f32))        # (B, 512)

    # Hoisted bias broadcasts (JAX does not CSE broadcast_in_dim).
    b1b = jnp.broadcast_to(
        slab_ref[off_bias + 1:off_bias + 2, 0:G4].astype(f32), (B, G4))
    bhb = jnp.broadcast_to(
        slab_ref[off_bias + 2:off_bias + 3, 0:HEAD_PAD].astype(f32), (B, HEAD_PAD))

    # Lane-index masks: apply the three head activations on the fused,
    # lane-padded head output (no sub-128-lane slicing inside the kernel).
    # Padded head lanes (>= 3*n_out) end up as ClippedTanh(0) = 0.5 and are
    # sliced off by the wrapper.
    col = lax.broadcasted_iota(jnp.int32, (B, HEAD_PAD), 1)
    is_p1 = col < n_out
    is_p2 = (col >= n_out) & (col < 2 * n_out)

    def cell(gates, c):
        # PyTorch gate order i, f, g, o.  Each gate block is padded to 128
        # lanes, so these slices are full-vreg selects; padded lanes of h / c
        # provably stay exactly 0 (padded weight/bias lanes are zero).
        i = jax.nn.sigmoid(gates[:, 0 * GATE_PAD:1 * GATE_PAD])
        f = jax.nn.sigmoid(gates[:, 1 * GATE_PAD:2 * GATE_PAD])
        g = jnp.tanh(gates[:, 2 * GATE_PAD:3 * GATE_PAD])
        o = jax.nn.sigmoid(gates[:, 3 * GATE_PAD:4 * GATE_PAD])
        c_new = f * c + i * g
        return o * jnp.tanh(c_new), c_new

    # Carried recurrent matmul terms: rec0 = h0(t-1) @ whh0, rec1 = h1(t-1) @
    # whh1; both are zero at t = 0 (zero initial LSTM state).
    rec0 = jnp.zeros((B, G4), f32)
    rec1 = jnp.zeros((B, G4), f32)
    c0 = jnp.zeros((B, GATE_PAD), f32)
    c1 = jnp.zeros((B, GATE_PAD), f32)

    # seq_len is a static Python int: fully unroll the recurrence.  Each step
    # issues only TWO matmuls, and each matmul also produces the NEXT step's
    # recurrent term, which the scheduler overlaps with this step's tail.
    for t in range(seq_len):
        # layer 1: LSTMdec (latent_dim -> embedding_size)
        h0, c0 = cell(zproj + rec0, c0)
        # fused matmul over h0: [whh0 | wih1].  Only the first `ra` lanes of
        # h0 can be non-zero, so the compact K=ra operand is exact.
        f1 = jnp.dot(h0[:, 0:ra].astype(bf16), a_blk,
                     preferred_element_type=f32)                 # (B, 1024)
        rec0 = f1[:, 0:G4]                                       # -> step t+1
        # layer 2: LSTM1 (embedding_size -> hidden_size = 2*embedding_size)
        h1, c1 = cell(f1[:, G4:2 * G4] + b1b + rec1, c1)
        # fused matmul over h1: [whh1 | par1|par2|par3]
        f2 = jnp.dot(h1[:, 0:rb].astype(bf16), b_blk,
                     preferred_element_type=f32)                 # (B, 640)
        rec1 = f2[:, 0:G4]                                       # -> step t+1
        p = f2[:, G4:G4 + HEAD_PAD] + bhb                        # (B, 128)
        # Per-lane activation select; one lane-dense 128-wide store per step,
        # directly in the final batch-major layout (no wrapper transpose).
        out_ref[:, t * HEAD_PAD:(t + 1) * HEAD_PAD] = jnp.where(
            is_p1, p, jnp.where(is_p2, _isrlu(p), _clipped_tanh(p)))


def pack_decoder_params(p, *, latent_dim, emb, hid, out):
    """Pack all parameters into one compact bf16 slab of shape (rows, 1024).

    Row layout:
      off_bias   row 0: LSTMdec b_ih+b_hh (gate-padded, 512 lanes)
                 row 1: LSTM1   b_ih+b_hh (gate-padded, 512 lanes)
                 row 2: [bp1|bp2|bp3]     (128 lanes)
      off_wih0   LSTMdec W_ih^T (latent_dim rows, 512 lanes, gate-padded)
      off_a      [whh0 | wih1]   (emb rows, 1024 lanes)  -- consumed by h0
      off_b      [whh1 | w1|w2|w3] (hid rows, 640 lanes) -- consumed by h1
    Weights are pre-transposed to (in_features, out_features); every padded
    row and padded lane is exactly zero (the recurrence relies on this).
    """
    assert emb <= GATE_PAD and hid <= GATE_PAD and 3 * out <= HEAD_PAD
    r_lat = _round_up(latent_dim, 8)
    ra = _round_up(emb, 16)      # K rows kept for the h0-side fused block
    rb = _round_up(hid, 16)      # K rows kept for the h1-side fused block

    def pad_gates(w, n_gate):
        rows = w.shape[0]
        w = w.reshape(rows, 4, n_gate)
        w = jnp.pad(w, ((0, 0), (0, 0), (0, GATE_PAD - n_gate)))
        return w.reshape(rows, G4)

    off_bias = 0
    off_wih0 = 8
    off_a = off_wih0 + r_lat
    off_b = off_a + ra
    rows = off_b + rb

    slab = jnp.zeros((rows, SLAB_W), jnp.float32)

    def place(dst, block, r0, c0):
        return dst.at[r0:r0 + block.shape[0], c0:c0 + block.shape[1]].set(block)

    bh = jnp.concatenate([p["bp1"], p["bp2"], p["bp3"]], axis=1)     # (1, 3*out)
    wh = jnp.concatenate([p["w1"], p["w2"], p["w3"]], axis=1)        # (hid, 3*out)

    slab = place(slab, pad_gates(p["b0"], emb), off_bias + 0, 0)
    slab = place(slab, pad_gates(p["b1"], hid), off_bias + 1, 0)
    slab = place(slab, bh, off_bias + 2, 0)
    slab = place(slab, pad_gates(p["wih0"], emb), off_wih0, 0)
    slab = place(slab, pad_gates(p["whh0"], emb), off_a, 0)
    slab = place(slab, pad_gates(p["wih1"], hid), off_a, G4)
    slab = place(slab, pad_gates(p["whh1"], hid), off_b, 0)
    slab = place(slab, wh, off_b, G4)

    slab = slab.astype(jnp.bfloat16)                 # ~128 KB for the demo sizes
    meta = dict(off_bias=off_bias, off_wih0=off_wih0, off_a=off_a, off_b=off_b,
                r_lat=r_lat, ra=ra, rb=rb, emb=emb, hid=hid, out=out,
                latent_dim=latent_dim)
    return slab, meta


def decoder_vae_forward(z, slab, meta, *, seq_len):
    # NOTE: at large batch, add a grid over B with
    # dimension_semantics=("parallel",) so both v7x TensorCores are used and
    # the slab DMA pipelines behind the previous batch tile; at B=2 a single
    # grid-less invocation is optimal on all generations.
    B = z.shape[0]
    out = meta["out"]
    r_lat = meta["r_lat"]
    if z.shape[1] < r_lat:
        z = jnp.pad(z, ((0, 0), (0, r_lat - z.shape[1])))

    kernel = functools.partial(
        decoder_vae_kernel, seq_len=seq_len, n_out=out, r_lat=r_lat,
        ra=meta["ra"], rb=meta["rb"], off_bias=meta["off_bias"],
        off_wih0=meta["off_wih0"], off_a=meta["off_a"], off_b=meta["off_b"])

    vmem = pl.BlockSpec(memory_space=pltpu.MemorySpace.VMEM)
    fused = pl.pallas_call(
        kernel,
        out_shape=jax.ShapeDtypeStruct((B, seq_len * HEAD_PAD), jnp.float32),
        in_specs=[vmem, vmem],
        out_specs=vmem,
    )(z, slab)

    # (B, T*128) -> (B, T, 128) only splits the minor-most dim (bitcast-level
    # reshape); the three cheap head slices are the only remaining wrapper ops.
    fused = fused.reshape(B, seq_len, HEAD_PAD)
    return (fused[..., 0:out],
            fused[..., out:2 * out],
            fused[..., 2 * out:3 * out])


def init_params(key, latent_dim, emb, hid, out):
    """Deterministic synthetic parameters. Weights stored pre-transposed
    (in_features, out_features); LSTM biases b_ih + b_hh pre-summed."""
    def u(k, shape, scale):
        return jax.random.uniform(k, shape, jnp.float32, -scale, scale)

    ks = jax.random.split(key, 12)
    s0 = 1.0 / jnp.sqrt(emb)
    s1 = 1.0 / jnp.sqrt(hid)
    return {
        # LSTMdec: latent_dim -> emb
        "wih0": u(ks[0], (latent_dim, 4 * emb), s0),
        "whh0": u(ks[1], (emb, 4 * emb), s0),
        "b0":   u(ks[2], (1, 4 * emb), s0),
        # LSTM1: emb -> hid (= 2*emb)
        "wih1": u(ks[3], (emb, 4 * hid), s1),
        "whh1": u(ks[4], (hid, 4 * hid), s1),
        "b1":   u(ks[5], (1, 4 * hid), s1),
        # heads
        "w1": u(ks[6], (hid, out), s1), "bp1": u(ks[7], (1, out), s1),
        "w2": u(ks[8], (hid, out), s1), "bp2": u(ks[9], (1, out), s1),
        "w3": u(ks[10], (hid, out), s1), "bp3": u(ks[11], (1, out), s1),
    }


def reference_forward(z, p, seq_len):
    """Pure-JAX reference with matching numerics: matmul operands rounded to
    bf16 (as the kernel feeds the MXU) with f32 accumulation; biases rounded
    to bf16 (as stored in the slab)."""
    B = z.shape[0]
    emb = p["whh0"].shape[0]
    hid = p["whh1"].shape[0]
    f32 = jnp.float32
    bf16 = jnp.bfloat16

    def mm(a, w):
        return jnp.dot(a.astype(bf16), w.astype(bf16), preferred_element_type=f32)

    def q(b):
        return b.astype(bf16).astype(f32)

    def cell(xp, h, c, whh, n):
        g = xp + mm(h, whh)
        i = jax.nn.sigmoid(g[:, :n])
        f = jax.nn.sigmoid(g[:, n:2 * n])
        gg = jnp.tanh(g[:, 2 * n:3 * n])
        o = jax.nn.sigmoid(g[:, 3 * n:])
        c = f * c + i * gg
        return o * jnp.tanh(c), c

    zproj = mm(z, p["wih0"]) + q(p["b0"])
    h0 = jnp.zeros((B, emb), f32); c0 = jnp.zeros((B, emb), f32)
    h1 = jnp.zeros((B, hid), f32); c1 = jnp.zeros((B, hid), f32)
    p1s, p2s, p3s = [], [], []
    for _ in range(seq_len):
        h0, c0 = cell(zproj, h0, c0, p["whh0"], emb)
        x1 = mm(h0, p["wih1"]) + q(p["b1"])
        h1, c1 = cell(x1, h1, c1, p["whh1"], hid)
        p1s.append(mm(h1, p["w1"]) + q(p["bp1"]))
        x2 = mm(h1, p["w2"]) + q(p["bp2"])
        p2s.append(1.0 + 5e-3 + jnp.where(x2 > 0, x2, x2 / jnp.sqrt(1.0 + x2 * x2)))
        x3 = mm(h1, p["w3"]) + q(p["bp3"])
        p3s.append(0.5 * (1.0 + 0.999 * jnp.tanh(x3)))
    return (jnp.stack(p1s, axis=1), jnp.stack(p2s, axis=1), jnp.stack(p3s, axis=1))


if __name__ == "__main__":
    # Small shapes consistent with the module: seq_out=8, embedding_size=16,
    # output_size=4, latent_dim=8  ->  hidden_size = 2*16 = 32.
    B, latent_dim, emb, out, seq_len = 2, 8, 16, 4, 8
    hid = 2 * emb

    key = jax.random.PRNGKey(0)
    kz, kp = jax.random.split(key)
    z = jax.random.normal(kz, (B, latent_dim), jnp.float32)
    params = init_params(kp, latent_dim, emb, hid, out)

    slab, meta = pack_decoder_params(params, latent_dim=latent_dim, emb=emb,
                                     hid=hid, out=out)
    par1, par2, par3 = decoder_vae_forward(z, slab, meta, seq_len=seq_len)
    jax.block_until_ready((par1, par2, par3))

    r1, r2, r3 = reference_forward(z, params, seq_len)
    assert par1.shape == (B, seq_len, out)
    assert par2.shape == (B, seq_len, out)
    assert par3.shape == (B, seq_len, out)
    # bf16 MXU operands -> tolerance loosened vs the all-f32 version; the
    # reference applies the same operand rounding, so this is very conservative.
    assert jnp.allclose(par1, r1, atol=2e-2, rtol=2e-2)
    assert jnp.allclose(par2, r2, atol=2e-2, rtol=2e-2)
    assert jnp.allclose(par3, r3, atol=2e-2, rtol=2e-2)

    print("KERNEL_OK")
</pallas_src>

<mosaic_0001>
module attributes {stable_mosaic.version = 11 : i64} {
  func.func @decoder_vae_kernel(%arg0: memref<2x8xf32, #tpu.memory_space<vmem>>, %arg1: memref<64x1024xbf16, #tpu.memory_space<vmem>>, %arg2: memref<2x1024xf32, #tpu.memory_space<vmem>>) attributes {dimension_semantics = [], scalar_prefetch = 0 : i64, scratch_operands = 0 : i64, tpu.core_type = #tpu.core_type<tc>} {
    %c8 = arith.constant 8 : index
    %c0 = arith.constant 0 : index
    %0 = vector.load %arg1[%c8, %c0] : memref<64x1024xbf16, #tpu.memory_space<vmem>>, vector<8x512xbf16>
    %c16 = arith.constant 16 : index
    %c0_0 = arith.constant 0 : index
    %1 = vector.load %arg1[%c16, %c0_0] : memref<64x1024xbf16, #tpu.memory_space<vmem>>, vector<16x1024xbf16>
    %c32 = arith.constant 32 : index
    %c0_1 = arith.constant 0 : index
    %2 = vector.load %arg1[%c32, %c0_1] : memref<64x1024xbf16, #tpu.memory_space<vmem>>, vector<32x640xbf16>
    %c0_2 = arith.constant 0 : index
    %c0_3 = arith.constant 0 : index
    %3 = vector.load %arg0[%c0_2, %c0_3] : memref<2x8xf32, #tpu.memory_space<vmem>>, vector<2x8xf32>
    %4 = arith.truncf %3 : vector<2x8xf32> to vector<2x8xbf16>
    %cst = arith.constant dense<0.000000e+00> : vector<2x512xf32>
    %5 = tpu.matmul %4, %0, %cst {dimension_numbers = #tpu.dot_dimension_numbers<[1], [0], [0], [1], [0, 0, 1, 1], [], []>} : vector<2x8xbf16>, vector<8x512xbf16>, vector<2x512xf32> -> vector<2x512xf32>
    %c0_4 = arith.constant 0 : index
    %c0_5 = arith.constant 0 : index
    %6 = vector.load %arg1[%c0_4, %c0_5] : memref<64x1024xbf16, #tpu.memory_space<vmem>>, vector<1x512xbf16>
    %7 = arith.extf %6 : vector<1x512xbf16> to vector<1x512xf32>
    %8 = vector.broadcast %7 : vector<1x512xf32> to vector<2x512xf32>
    %9 = arith.addf %5, %8 : vector<2x512xf32>
    %c1 = arith.constant 1 : index
    %c0_6 = arith.constant 0 : index
    %10 = vector.load %arg1[%c1, %c0_6] : memref<64x1024xbf16, #tpu.memory_space<vmem>>, vector<1x512xbf16>
    %11 = arith.extf %10 : vector<1x512xbf16> to vector<1x512xf32>
    %12 = vector.shape_cast %11 : vector<1x512xf32> to vector<1x512xf32>
    %13 = vector.broadcast %12 : vector<1x512xf32> to vector<2x512xf32>
    %c2 = arith.constant 2 : index
    %c0_7 = arith.constant 0 : index
    %14 = vector.load %arg1[%c2, %c0_7] : memref<64x1024xbf16, #tpu.memory_space<vmem>>, vector<1x128xbf16>
    %15 = arith.extf %14 : vector<1x128xbf16> to vector<1x128xf32>
    %16 = vector.shape_cast %15 : vector<1x128xf32> to vector<1x128xf32>
    %17 = vector.broadcast %16 : vector<1x128xf32> to vector<2x128xf32>
    %18 = tpu.iota {dimensions = array<i32: 1>} : vector<2x128xi32>
    %c4_i32 = arith.constant 4 : i32
    %19 = vector.broadcast %c4_i32 : i32 to vector<2x128xi32>
    %20 = arith.cmpi slt, %18, %19 : vector<2x128xi32>
    %c4_i32_8 = arith.constant 4 : i32
    %21 = vector.broadcast %c4_i32_8 : i32 to vector<2x128xi32>
    %22 = arith.cmpi sge, %18, %21 : vector<2x128xi32>
    %c8_i32 = arith.constant 8 : i32
    %23 = vector.broadcast %c8_i32 : i32 to vector<2x128xi32>
    %24 = arith.cmpi slt, %18, %23 : vector<2x128xi32>
    %25 = arith.andi %22, %24 : vector<2x128xi1>
    %cst_9 = arith.constant 0.000000e+00 : f32
    %26 = vector.broadcast %cst_9 : f32 to vector<2x512xf32>
    %cst_10 = arith.constant 0.000000e+00 : f32
    %27 = vector.broadcast %cst_10 : f32 to vector<2x512xf32>
    %cst_11 = arith.constant 0.000000e+00 : f32
    %28 = vector.broadcast %cst_11 : f32 to vector<2x128xf32>
    %cst_12 = arith.constant 0.000000e+00 : f32
    %29 = vector.broadcast %cst_12 : f32 to vector<2x128xf32>
    %30 = arith.addf %9, %26 : vector<2x512xf32>
    %31 = vector.extract_strided_slice %30 {offsets = [0, 0], sizes = [2, 128], strides = [1, 1]} : vector<2x512xf32> to vector<2x128xf32>
    %32 = arith.negf %31 : vector<2x128xf32>
    %33 = math.exp %32 : vector<2x128xf32>
    %cst_13 = arith.constant 1.000000e+00 : f32
    %34 = vector.broadcast %cst_13 : f32 to vector<2x128xf32>
    %35 = arith.addf %34, %33 : vector<2x128xf32>
    %36 = arith.divf %34, %35 : vector<2x128xf32>
    %37 = vector.extract_strided_slice %30 {offsets = [0, 128], sizes = [2, 128], strides = [1, 1]} : vector<2x512xf32> to vector<2x128xf32>
    %38 = arith.negf %37 : vector<2x128xf32>
    %39 = math.exp %38 : vector<2x128xf32>
    %cst_14 = arith.constant 1.000000e+00 : f32
    %40 = vector.broadcast %cst_14 : f32 to vector<2x128xf32>
    %41 = arith.addf %40, %39 : vector<2x128xf32>
    %42 = arith.divf %40, %41 : vector<2x128xf32>
    %43 = vector.extract_strided_slice %30 {offsets = [0, 256], sizes = [2, 128], strides = [1, 1]} : vector<2x512xf32> to vector<2x128xf32>
    %44 = math.tanh %43 : vector<2x128xf32>
    %45 = vector.extract_strided_slice %30 {offsets = [0, 384], sizes = [2, 128], strides = [1, 1]} : vector<2x512xf32> to vector<2x128xf32>
    %46 = arith.negf %45 : vector<2x128xf32>
    %47 = math.exp %46 : vector<2x128xf32>
    %cst_15 = arith.constant 1.000000e+00 : f32
    %48 = vector.broadcast %cst_15 : f32 to vector<2x128xf32>
    %49 = arith.addf %48, %47 : vector<2x128xf32>
    %50 = arith.divf %48, %49 : vector<2x128xf32>
    %51 = arith.mulf %42, %28 : vector<2x128xf32>
    %52 = arith.mulf %36, %44 : vector<2x128xf32>
    %53 = arith.addf %51, %52 : vector<2x128xf32>
    %54 = math.tanh %53 : vector<2x128xf32>
    %55 = arith.mulf %50, %54 : vector<2x128xf32>
    %56 = vector.extract_strided_slice %55 {offsets = [0, 0], sizes = [2, 16], strides = [1, 1]} : vector<2x128xf32> to vector<2x16xf32>
    %57 = arith.truncf %56 : vector<2x16xf32> to vector<2x16xbf16>
    %cst_16 = arith.constant dense<0.000000e+00> : vector<2x1024xf32>
    %58 = tpu.matmul %57, %1, %cst_16 {dimension_numbers = #tpu.dot_dimension_numbers<[1], [0], [0], [1], [0, 0, 1, 1], [], []>} : vector<2x16xbf16>, vector<16x1024xbf16>, vector<2x1024xf32> -> vector<2x1024xf32>
    %59 = vector.extract_strided_slice %58 {offsets = [0, 0], sizes = [2, 512], strides = [1, 1]} : vector<2x1024xf32> to vector<2x512xf32>
    %60 = vector.extract_strided_slice %58 {offsets = [0, 512], sizes = [2, 512], strides = [1, 1]} : vector<2x1024xf32> to vector<2x512xf32>
    %61 = arith.addf %60, %13 : vector<2x512xf32>
    %62 = arith.addf %61, %27 : vector<2x512xf32>
    %63 = vector.extract_strided_slice %62 {offsets = [0, 0], sizes = [2, 128], strides = [1, 1]} : vector<2x512xf32> to vector<2x128xf32>
    %64 = arith.negf %63 : vector<2x128xf32>
    %65 = math.exp %64 : vector<2x128xf32>
    %cst_17 = arith.constant 1.000000e+00 : f32
    %66 = vector.broadcast %cst_17 : f32 to vector<2x128xf32>
    %67 = arith.addf %66, %65 : vector<2x128xf32>
    %68 = arith.divf %66, %67 : vector<2x128xf32>
    %69 = vector.extract_strided_slice %62 {offsets = [0, 128], sizes = [2, 128], strides = [1, 1]} : vector<2x512xf32> to vector<2x128xf32>
    %70 = arith.negf %69 : vector<2x128xf32>
    %71 = math.exp %70 : vector<2x128xf32>
    %cst_18 = arith.constant 1.000000e+00 : f32
    %72 = vector.broadcast %cst_18 : f32 to vector<2x128xf32>
    %73 = arith.addf %72, %71 : vector<2x128xf32>
    %74 = arith.divf %72, %73 : vector<2x128xf32>
    %75 = vector.extract_strided_slice %62 {offsets = [0, 256], sizes = [2, 128], strides = [1, 1]} : vector<2x512xf32> to vector<2x128xf32>
    %76 = math.tanh %75 : vector<2x128xf32>
    %77 = vector.extract_strided_slice %62 {offsets = [0, 384], sizes = [2, 128], strides = [1, 1]} : vector<2x512xf32> to vector<2x128xf32>
    %78 = arith.negf %77 : vector<2x128xf32>
    %79 = math.exp %78 : vector<2x128xf32>
    %cst_19 = arith.constant 1.000000e+00 : f32
    %80 = vector.broadcast %cst_19 : f32 to vector<2x128xf32>
    %81 = arith.addf %80, %79 : vector<2x128xf32>
    %82 = arith.divf %80, %81 : vector<2x128xf32>
    %83 = arith.mulf %74, %29 : vector<2x128xf32>
    %84 = arith.mulf %68, %76 : vector<2x128xf32>
    %85 = arith.addf %83, %84 : vector<2x128xf32>
    %86 = math.tanh %85 : vector<2x128xf32>
    %87 = arith.mulf %82, %86 : vector<2x128xf32>
    %88 = vector.extract_strided_slice %87 {offsets = [0, 0], sizes = [2, 32], strides = [1, 1]} : vector<2x128xf32> to vector<2x32xf32>
    %89 = arith.truncf %88 : vector<2x32xf32> to vector<2x32xbf16>
    %cst_20 = arith.constant dense<0.000000e+00> : vector<2x640xf32>
    %90 = tpu.matmul %89, %2, %cst_20 {dimension_numbers = #tpu.dot_dimension_numbers<[1], [0], [0], [1], [0, 0, 1, 1], [], []>} : vector<2x32xbf16>, vector<32x640xbf16>, vector<2x640xf32> -> vector<2x640xf32>
    %91 = vector.extract_strided_slice %90 {offsets = [0, 0], sizes = [2, 512], strides = [1, 1]} : vector<2x640xf32> to vector<2x512xf32>
    %92 = vector.extract_strided_slice %90 {offsets = [0, 512], sizes = [2, 128], strides = [1, 1]} : vector<2x640xf32> to vector<2x128xf32>
    %93 = arith.addf %92, %17 : vector<2x128xf32>
    %cst_21 = arith.constant 0.000000e+00 : f32
    %94 = vector.broadcast %cst_21 : f32 to vector<2x128xf32>
    %95 = arith.cmpf ogt, %93, %94 : vector<2x128xf32>
    %96 = arith.mulf %93, %93 : vector<2x128xf32>
    %cst_22 = arith.constant 1.000000e+00 : f32
    %97 = vector.broadcast %cst_22 : f32 to vector<2x128xf32>
    %98 = arith.addf %97, %96 : vector<2x128xf32>
    %99 = math.rsqrt %98 : vector<2x128xf32>
    %100 = arith.mulf %93, %99 : vector<2x128xf32>
    %101 = arith.select %95, %93, %100 : vector<2x128xi1>, vector<2x128xf32>
    %cst_23 = arith.constant 1.005000e+00 : f32
    %102 = vector.broadcast %cst_23 : f32 to vector<2x128xf32>
    %103 = arith.addf %102, %101 : vector<2x128xf32>
    %104 = math.tanh %93 : vector<2x128xf32>
    %cst_24 = arith.constant 9.990000e-01 : f32
    %105 = vector.broadcast %cst_24 : f32 to vector<2x128xf32>
    %106 = arith.mulf %105, %104 : vector<2x128xf32>
    %cst_25 = arith.constant 1.000000e+00 : f32
    %107 = vector.broadcast %cst_25 : f32 to vector<2x128xf32>
    %108 = arith.addf %107, %106 : vector<2x128xf32>
    %cst_26 = arith.constant 5.000000e-01 : f32
    %109 = vector.broadcast %cst_26 : f32 to vector<2x128xf32>
    %110 = arith.mulf %109, %108 : vector<2x128xf32>
    %111 = arith.select %25, %103, %110 : vector<2x128xi1>, vector<2x128xf32>
    %112 = arith.select %20, %93, %111 : vector<2x128xi1>, vector<2x128xf32>
    %c0_27 = arith.constant 0 : index
    %c0_28 = arith.constant 0 : index
    %113 = vector.load %arg2[%c0_27, %c0_28] : memref<2x1024xf32, #tpu.memory_space<vmem>>, vector<2x128xf32>
    tpu.vector_store %arg2[%c0_27, %c0_28], %112 {strides = array<i32>} : memref<2x1024xf32, #tpu.memory_space<vmem>>, vector<2x128xf32>,
    %114 = arith.addf %9, %59 : vector<2x512xf32>
    %115 = vector.extract_strided_slice %114 {offsets = [0, 0], sizes = [2, 128], strides = [1, 1]} : vector<2x512xf32> to vector<2x128xf32>
    %116 = arith.negf %115 : vector<2x128xf32>
    %117 = math.exp %116 : vector<2x128xf32>
    %cst_29 = arith.constant 1.000000e+00 : f32
    %118 = vector.broadcast %cst_29 : f32 to vector<2x128xf32>
    %119 = arith.addf %118, %117 : vector<2x128xf32>
    %120 = arith.divf %118, %119 : vector<2x128xf32>
    %121 = vector.extract_strided_slice %114 {offsets = [0, 128], sizes = [2, 128], strides = [1, 1]} : vector<2x512xf32> to vector<2x128xf32>
    %122 = arith.negf %121 : vector<2x128xf32>
    %123 = math.exp %122 : vector<2x128xf32>
    %cst_30 = arith.constant 1.000000e+00 : f32
    %124 = vector.broadcast %cst_30 : f32 to vector<2x128xf32>
    %125 = arith.addf %124, %123 : vector<2x128xf32>
    %126 = arith.divf %124, %125 : vector<2x128xf32>
    %127 = vector.extract_strided_slice %114 {offsets = [0, 256], sizes = [2, 128], strides = [1, 1]} : vector<2x512xf32> to vector<2x128xf32>
    %128 = math.tanh %127 : vector<2x128xf32>
    %129 = vector.extract_strided_slice %114 {offsets = [0, 384], sizes = [2, 128], strides = [1, 1]} : vector<2x512xf32> to vector<2x128xf32>
    %130 = arith.negf %129 : vector<2x128xf32>
    %131 = math.exp %130 : vector<2x128xf32>
    %cst_31 = arith.constant 1.000000e+00 : f32
    %132 = vector.broadcast %cst_31 : f32 to vector<2x128xf32>
    %133 = arith.addf %132, %131 : vector<2x128xf32>
    %134 = arith.divf %132, %133 : vector<2x128xf32>
    %135 = arith.mulf %126, %53 : vector<2x128xf32>
    %136 = arith.mulf %120, %128 : vector<2x128xf32>
    %137 = arith.addf %135, %136 : vector<2x128xf32>
    %138 = math.tanh %137 : vector<2x128xf32>
    %139 = arith.mulf %134, %138 : vector<2x128xf32>
    %140 = vector.extract_strided_slice %139 {offsets = [0, 0], sizes = [2, 16], strides = [1, 1]} : vector<2x128xf32> to vector<2x16xf32>
    %141 = arith.truncf %140 : vector<2x16xf32> to vector<2x16xbf16>
    %cst_32 = arith.constant dense<0.000000e+00> : vector<2x1024xf32>
    %142 = tpu.matmul %141, %1, %cst_32 {dimension_numbers = #tpu.dot_dimension_numbers<[1], [0], [0], [1], [0, 0, 1, 1], [], []>} : vector<2x16xbf16>, vector<16x1024xbf16>, vector<2x1024xf32> -> vector<2x1024xf32>
    %143 = vector.extract_strided_slice %142 {offsets = [0, 0], sizes = [2, 512], strides = [1, 1]} : vector<2x1024xf32> to vector<2x512xf32>
    %144 = vector.extract_strided_slice %142 {offsets = [0, 512], sizes = [2, 512], strides = [1, 1]} : vector<2x1024xf32> to vector<2x512xf32>
    %145 = arith.addf %144, %13 : vector<2x512xf32>
    %146 = arith.addf %145, %91 : vector<2x512xf32>
    %147 = vector.extract_strided_slice %146 {offsets = [0, 0], sizes = [2, 128], strides = [1, 1]} : vector<2x512xf32> to vector<2x128xf32>
    %148 = arith.negf %147 : vector<2x128xf32>
    %149 = math.exp %148 : vector<2x128xf32>
    %cst_33 = arith.constant 1.000000e+00 : f32
    %150 = vector.broadcast %cst_33 : f32 to vector<2x128xf32>
    %151 = arith.addf %150, %149 : vector<2x128xf32>
    %152 = arith.divf %150, %151 : vector<2x128xf32>
    %153 = vector.extract_strided_slice %146 {offsets = [0, 128], sizes = [2, 128], strides = [1, 1]} : vector<2x512xf32> to vector<2x128xf32>
    %154 = arith.negf %153 : vector<2x128xf32>
    %155 = math.exp %154 : vector<2x128xf32>
    %cst_34 = arith.constant 1.000000e+00 : f32
    %156 = vector.broadcast %cst_34 : f32 to vector<2x128xf32>
    %157 = arith.addf %156, %155 : vector<2x128xf32>
    %158 = arith.divf %156, %157 : vector<2x128xf32>
    %159 = vector.extract_strided_slice %146 {offsets = [0, 256], sizes = [2, 128], strides = [1, 1]} : vector<2x512xf32> to vector<2x128xf32>
    %160 = math.tanh %159 : vector<2x128xf32>
    %161 = vector.extract_strided_slice %146 {offsets = [0, 384], sizes = [2, 128], strides = [1, 1]} : vector<2x512xf32> to vector<2x128xf32>
    %162 = arith.negf %161 : vector<2x128xf32>
    %163 = math.exp %162 : vector<2x128xf32>
    %cst_35 = arith.constant 1.000000e+00 : f32
    %164 = vector.broadcast %cst_35 : f32 to vector<2x128xf32>
    %165 = arith.addf %164, %163 : vector<2x128xf32>
    %166 = arith.divf %164, %165 : vector<2x128xf32>
    %167 = arith.mulf %158, %85 : vector<2x128xf32>
    %168 = arith.mulf %152, %160 : vector<2x128xf32>
    %169 = arith.addf %167, %168 : vector<2x128xf32>
    %170 = math.tanh %169 : vector<2x128xf32>
    %171 = arith.mulf %166, %170 : vector<2x128xf32>
    %172 = vector.extract_strided_slice %171 {offsets = [0, 0], sizes = [2, 32], strides = [1, 1]} : vector<2x128xf32> to vector<2x32xf32>
    %173 = arith.truncf %172 : vector<2x32xf32> to vector<2x32xbf16>
    %cst_36 = arith.constant dense<0.000000e+00> : vector<2x640xf32>
    %174 = tpu.matmul %173, %2, %cst_36 {dimension_numbers = #tpu.dot_dimension_numbers<[1], [0], [0], [1], [0, 0, 1, 1], [], []>} : vector<2x32xbf16>, vector<32x640xbf16>, vector<2x640xf32> -> vector<2x640xf32>
    %175 = vector.extract_strided_slice %174 {offsets = [0, 0], sizes = [2, 512], strides = [1, 1]} : vector<2x640xf32> to vector<2x512xf32>
    %176 = vector.extract_strided_slice %174 {offsets = [0, 512], sizes = [2, 128], strides = [1, 1]} : vector<2x640xf32> to vector<2x128xf32>
    %177 = arith.addf %176, %17 : vector<2x128xf32>
    %cst_37 = arith.constant 0.000000e+00 : f32
    %178 = vector.broadcast %cst_37 : f32 to vector<2x128xf32>
    %179 = arith.cmpf ogt, %177, %178 : vector<2x128xf32>
    %180 = arith.mulf %177, %177 : vector<2x128xf32>
    %cst_38 = arith.constant 1.000000e+00 : f32
    %181 = vector.broadcast %cst_38 : f32 to vector<2x128xf32>
    %182 = arith.addf %181, %180 : vector<2x128xf32>
    %183 = math.rsqrt %182 : vector<2x128xf32>
    %184 = arith.mulf %177, %183 : vector<2x128xf32>
    %185 = arith.select %179, %177, %184 : vector<2x128xi1>, vector<2x128xf32>
    %cst_39 = arith.constant 1.005000e+00 : f32
    %186 = vector.broadcast %cst_39 : f32 to vector<2x128xf32>
    %187 = arith.addf %186, %185 : vector<2x128xf32>
    %188 = math.tanh %177 : vector<2x128xf32>
    %cst_40 = arith.constant 9.990000e-01 : f32
    %189 = vector.broadcast %cst_40 : f32 to vector<2x128xf32>
    %190 = arith.mulf %189, %188 : vector<2x128xf32>
    %cst_41 = arith.constant 1.000000e+00 : f32
    %191 = vector.broadcast %cst_41 : f32 to vector<2x128xf32>
    %192 = arith.addf %191, %190 : vector<2x128xf32>
    %cst_42 = arith.constant 5.000000e-01 : f32
    %193 = vector.broadcast %cst_42 : f32 to vector<2x128xf32>
    %194 = arith.mulf %193, %192 : vector<2x128xf32>
    %195 = arith.select %25, %187, %194 : vector<2x128xi1>, vector<2x128xf32>
    %196 = arith.select %20, %177, %195 : vector<2x128xi1>, vector<2x128xf32>
    %c0_43 = arith.constant 0 : index
    %c128 = arith.constant 128 : index
    %197 = vector.load %arg2[%c0_43, %c128] : memref<2x1024xf32, #tpu.memory_space<vmem>>, vector<2x128xf32>
    tpu.vector_store %arg2[%c0_43, %c128], %196 {strides = array<i32>} : memref<2x1024xf32, #tpu.memory_space<vmem>>, vector<2x128xf32>,
    %198 = arith.addf %9, %143 : vector<2x512xf32>
    %199 = vector.extract_strided_slice %198 {offsets = [0, 0], sizes = [2, 128], strides = [1, 1]} : vector<2x512xf32> to vector<2x128xf32>
    %200 = arith.negf %199 : vector<2x128xf32>
    %201 = math.exp %200 : vector<2x128xf32>
    %cst_44 = arith.constant 1.000000e+00 : f32
    %202 = vector.broadcast %cst_44 : f32 to vector<2x128xf32>
    %203 = arith.addf %202, %201 : vector<2x128xf32>
    %204 = arith.divf %202, %203 : vector<2x128xf32>
    %205 = vector.extract_strided_slice %198 {offsets = [0, 128], sizes = [2, 128], strides = [1, 1]} : vector<2x512xf32> to vector<2x128xf32>
    %206 = arith.negf %205 : vector<2x128xf32>
    %207 = math.exp %206 : vector<2x128xf32>
    %cst_45 = arith.constant 1.000000e+00 : f32
    %208 = vector.broadcast %cst_45 : f32 to vector<2x128xf32>
    %209 = arith.addf %208, %207 : vector<2x128xf32>
    %210 = arith.divf %208, %209 : vector<2x128xf32>
    %211 = vector.extract_strided_slice %198 {offsets = [0, 256], sizes = [2, 128], strides = [1, 1]} : vector<2x512xf32> to vector<2x128xf32>
    %212 = math.tanh %211 : vector<2x128xf32>
    %213 = vector.extract_strided_slice %198 {offsets = [0, 384], sizes = [2, 128], strides = [1, 1]} : vector<2x512xf32> to vector<2x128xf32>
    %214 = arith.negf %213 : vector<2x128xf32>
    %215 = math.exp %214 : vector<2x128xf32>
    %cst_46 = arith.constant 1.000000e+00 : f32
    %216 = vector.broadcast %cst_46 : f32 to vector<2x128xf32>
    %217 = arith.addf %216, %215 : vector<2x128xf32>
    %218 = arith.divf %216, %217 : vector<2x128xf32>
    %219 = arith.mulf %210, %137 : vector<2x128xf32>
    %220 = arith.mulf %204, %212 : vector<2x128xf32>
    %221 = arith.addf %219, %220 : vector<2x128xf32>
    %222 = math.tanh %221 : vector<2x128xf32>
    %223 = arith.mulf %218, %222 : vector<2x128xf32>
    %224 = vector.extract_strided_slice %223 {offsets = [0, 0], sizes = [2, 16], strides = [1, 1]} : vector<2x128xf32> to vector<2x16xf32>
    %225 = arith.truncf %224 : vector<2x16xf32> to vector<2x16xbf16>
    %cst_47 = arith.constant dense<0.000000e+00> : vector<2x1024xf32>
    %226 = tpu.matmul %225, %1, %cst_47 {dimension_numbers = #tpu.dot_dimension_numbers<[1], [0], [0], [1], [0, 0, 1, 1], [], []>} : vector<2x16xbf16>, vector<16x1024xbf16>, vector<2x1024xf32> -> vector<2x1024xf32>
    %227 = vector.extract_strided_slice %226 {offsets = [0, 0], sizes = [2, 512], strides = [1, 1]} : vector<2x1024xf32> to vector<2x512xf32>
    %228 = vector.extract_strided_slice %226 {offsets = [0, 512], sizes = [2, 512], strides = [1, 1]} : vector<2x1024xf32> to vector<2x512xf32>
    %229 = arith.addf %228, %13 : vector<2x512xf32>
    %230 = arith.addf %229, %175 : vector<2x512xf32>
    %231 = vector.extract_strided_slice %230 {offsets = [0, 0], sizes = [2, 128], strides = [1, 1]} : vector<2x512xf32> to vector<2x128xf32>
    %232 = arith.negf %231 : vector<2x128xf32>
    %233 = math.exp %232 : vector<2x128xf32>
    %cst_48 = arith.constant 1.000000e+00 : f32
    %234 = vector.broadcast %cst_48 : f32 to vector<2x128xf32>
    %235 = arith.addf %234, %233 : vector<2x128xf32>
    %236 = arith.divf %234, %235 : vector<2x128xf32>
    %237 = vector.extract_strided_slice %230 {offsets = [0, 128], sizes = [2, 128], strides = [1, 1]} : vector<2x512xf32> to vector<2x128xf32>
    %238 = arith.negf %237 : vector<2x128xf32>
    %239 = math.exp %238 : vector<2x128xf32>
    %cst_49 = arith.constant 1.000000e+00 : f32
    %240 = vector.broadcast %cst_49 : f32 to vector<2x128xf32>
    %241 = arith.addf %240, %239 : vector<2x128xf32>
    %242 = arith.divf %240, %241 : vector<2x128xf32>
    %243 = vector.extract_strided_slice %230 {offsets = [0, 256], sizes = [2, 128], strides = [1, 1]} : vector<2x512xf32> to vector<2x128xf32>
    %244 = math.tanh %243 : vector<2x128xf32>
    %245 = vector.extract_strided_slice %230 {offsets = [0, 384], sizes = [2, 128], strides = [1, 1]} : vector<2x512xf32> to vector<2x128xf32>
    %246 = arith.negf %245 : vector<2x128xf32>
    %247 = math.exp %246 : vector<2x128xf32>
    %cst_50 = arith.constant 1.000000e+00 : f32
    %248 = vector.broadcast %cst_50 : f32 to vector<2x128xf32>
    %249 = arith.addf %248, %247 : vector<2x128xf32>
    %250 = arith.divf %248, %249 : vector<2x128xf32>
    %251 = arith.mulf %242, %169 : vector<2x128xf32>
    %252 = arith.mulf %236, %244 : vector<2x128xf32>
    %253 = arith.addf %251, %252 : vector<2x128xf32>
    %254 = math.tanh %253 : vector<2x128xf32>
    %255 = arith.mulf %250, %254 : vector<2x128xf32>
    %256 = vector.extract_strided_slice %255 {offsets = [0, 0], sizes = [2, 32], strides = [1, 1]} : vector<2x128xf32> to vector<2x32xf32>
    %257 = arith.truncf %256 : vector<2x32xf32> to vector<2x32xbf16>
    %cst_51 = arith.constant dense<0.000000e+00> : vector<2x640xf32>
    %258 = tpu.matmul %257, %2, %cst_51 {dimension_numbers = #tpu.dot_dimension_numbers<[1], [0], [0], [1], [0, 0, 1, 1], [], []>} : vector<2x32xbf16>, vector<32x640xbf16>, vector<2x640xf32> -> vector<2x640xf32>
    %259 = vector.extract_strided_slice %258 {offsets = [0, 0], sizes = [2, 512], strides = [1, 1]} : vector<2x640xf32> to vector<2x512xf32>
    %260 = vector.extract_strided_slice %258 {offsets = [0, 512], sizes = [2, 128], strides = [1, 1]} : vector<2x640xf32> to vector<2x128xf32>
    %261 = arith.addf %260, %17 : vector<2x128xf32>
    %cst_52 = arith.constant 0.000000e+00 : f32
    %262 = vector.broadcast %cst_52 : f32 to vector<2x128xf32>
    %263 = arith.cmpf ogt, %261, %262 : vector<2x128xf32>
    %264 = arith.mulf %261, %261 : vector<2x128xf32>
    %cst_53 = arith.constant 1.000000e+00 : f32
    %265 = vector.broadcast %cst_53 : f32 to vector<2x128xf32>
    %266 = arith.addf %265, %264 : vector<2x128xf32>
    %267 = math.rsqrt %266 : vector<2x128xf32>
    %268 = arith.mulf %261, %267 : vector<2x128xf32>
    %269 = arith.select %263, %261, %268 : vector<2x128xi1>, vector<2x128xf32>
    %cst_54 = arith.constant 1.005000e+00 : f32
    %270 = vector.broadcast %cst_54 : f32 to vector<2x128xf32>
    %271 = arith.addf %270, %269 : vector<2x128xf32>
    %272 = math.tanh %261 : vector<2x128xf32>
    %cst_55 = arith.constant 9.990000e-01 : f32
    %273 = vector.broadcast %cst_55 : f32 to vector<2x128xf32>
    %274 = arith.mulf %273, %272 : vector<2x128xf32>
    %cst_56 = arith.constant 1.000000e+00 : f32
    %275 = vector.broadcast %cst_56 : f32 to vector<2x128xf32>
    %276 = arith.addf %275, %274 : vector<2x128xf32>
    %cst_57 = arith.constant 5.000000e-01 : f32
    %277 = vector.broadcast %cst_57 : f32 to vector<2x128xf32>
    %278 = arith.mulf %277, %276 : vector<2x128xf32>
    %279 = arith.select %25, %271, %278 : vector<2x128xi1>, vector<2x128xf32>
    %280 = arith.select %20, %261, %279 : vector<2x128xi1>, vector<2x128xf32>
    %c0_58 = arith.constant 0 : index
    %c256 = arith.constant 256 : index
    %281 = vector.load %arg2[%c0_58, %c256] : memref<2x1024xf32, #tpu.memory_space<vmem>>, vector<2x128xf32>
    tpu.vector_store %arg2[%c0_58, %c256], %280 {strides = array<i32>} : memref<2x1024xf32, #tpu.memory_space<vmem>>, vector<2x128xf32>,
    %282 = arith.addf %9, %227 : vector<2x512xf32>
    %283 = vector.extract_strided_slice %282 {offsets = [0, 0], sizes = [2, 128], strides = [1, 1]} : vector<2x512xf32> to vector<2x128xf32>
    %284 = arith.negf %283 : vector<2x128xf32>
    %285 = math.exp %284 : vector<2x128xf32>
    %cst_59 = arith.constant 1.000000e+00 : f32
    %286 = vector.broadcast %cst_59 : f32 to vector<2x128xf32>
    %287 = arith.addf %286, %285 : vector<2x128xf32>
    %288 = arith.divf %286, %287 : vector<2x128xf32>
    %289 = vector.extract_strided_slice %282 {offsets = [0, 128], sizes = [2, 128], strides = [1, 1]} : vector<2x512xf32> to vector<2x128xf32>
    %290 = arith.negf %289 : vector<2x128xf32>
    %291 = math.exp %290 : vector<2x128xf32>
    %cst_60 = arith.constant 1.000000e+00 : f32
    %292 = vector.broadcast %cst_60 : f32 to vector<2x128xf32>
    %293 = arith.addf %292, %291 : vector<2x128xf32>
    %294 = arith.divf %292, %293 : vector<2x128xf32>
    %295 = vector.extract_strided_slice %282 {offsets = [0, 256], sizes = [2, 128], strides = [1, 1]} : vector<2x512xf32> to vector<2x128xf32>
    %296 = math.tanh %295 : vector<2x128xf32>
    %297 = vector.extract_strided_slice %282 {offsets = [0, 384], sizes = [2, 128], strides = [1, 1]} : vector<2x512xf32> to vector<2x128xf32>
    %298 = arith.negf %297 : vector<2x128xf32>
    %299 = math.exp %298 : vector<2x128xf32>
    %cst_61 = arith.constant 1.000000e+00 : f32
    %300 = vector.broadcast %cst_61 : f32 to vector<2x128xf32>
    %301 = arith.addf %300, %299 : vector<2x128xf32>
    %302 = arith.divf %300, %301 : vector<2x128xf32>
    %303 = arith.mulf %294, %221 : vector<2x128xf32>
    %304 = arith.mulf %288, %296 : vector<2x128xf32>
    %305 = arith.addf %303, %304 : vector<2x128xf32>
    %306 = math.tanh %305 : vector<2x128xf32>
    %307 = arith.mulf %302, %306 : vector<2x128xf32>
    %308 = vector.extract_strided_slice %307 {offsets = [0, 0], sizes = [2, 16], strides = [1, 1]} : vector<2x128xf32> to vector<2x16xf32>
    %309 = arith.truncf %308 : vector<2x16xf32> to vector<2x16xbf16>
    %cst_62 = arith.constant dense<0.000000e+00> : vector<2x1024xf32>
    %310 = tpu.matmul %309, %1, %cst_62 {dimension_numbers = #tpu.dot_dimension_numbers<[1], [0], [0], [1], [0, 0, 1, 1], [], []>} : vector<2x16xbf16>, vector<16x1024xbf16>, vector<2x1024xf32> -> vector<2x1024xf32>
    %311 = vector.extract_strided_slice %310 {offsets = [0, 0], sizes = [2, 512], strides = [1, 1]} : vector<2x1024xf32> to vector<2x512xf32>
    %312 = vector.extract_strided_slice %310 {offsets = [0, 512], sizes = [2, 512], strides = [1, 1]} : vector<2x1024xf32> to vector<2x512xf32>
    %313 = arith.addf %312, %13 : vector<2x512xf32>
    %314 = arith.addf %313, %259 : vector<2x512xf32>
    %315 = vector.extract_strided_slice %314 {offsets = [0, 0], sizes = [2, 128], strides = [1, 1]} : vector<2x512xf32> to vector<2x128xf32>
    %316 = arith.negf %315 : vector<2x128xf32>
    %317 = math.exp %316 : vector<2x128xf32>
    %cst_63 = arith.constant 1.000000e+00 : f32
    %318 = vector.broadcast %cst_63 : f32 to vector<2x128xf32>
    %319 = arith.addf %318, %317 : vector<2x128xf32>
    %320 = arith.divf %318, %319 : vector<2x128xf32>
    %321 = vector.extract_strided_slice %314 {offsets = [0, 128], sizes = [2, 128], strides = [1, 1]} : vector<2x512xf32> to vector<2x128xf32>
    %322 = arith.negf %321 : vector<2x128xf32>
    %323 = math.exp %322 : vector<2x128xf32>
    %cst_64 = arith.constant 1.000000e+00 : f32
    %324 = vector.broadcast %cst_64 : f32 to vector<2x128xf32>
    %325 = arith.addf %324, %323 : vector<2x128xf32>
    %326 = arith.divf %324, %325 : vector<2x128xf32>
    %327 = vector.extract_strided_slice %314 {offsets = [0, 256], sizes = [2, 128], strides = [1, 1]} : vector<2x512xf32> to vector<2x128xf32>
    %328 = math.tanh %327 : vector<2x128xf32>
    %329 = vector.extract_strided_slice %314 {offsets = [0, 384], sizes = [2, 128], strides = [1, 1]} : vector<2x512xf32> to vector<2x128xf32>
    %330 = arith.negf %329 : vector<2x128xf32>
    %331 = math.exp %330 : vector<2x128xf32>
    %cst_65 = arith.constant 1.000000e+00 : f32
    %332 = vector.broadcast %cst_65 : f32 to vector<2x128xf32>
    %333 = arith.addf %332, %331 : vector<2x128xf32>
    %334 = arith.divf %332, %333 : vector<2x128xf32>
    %335 = arith.mulf %326, %253 : vector<2x128xf32>
    %336 = arith.mulf %320, %328 : vector<2x128xf32>
    %337 = arith.addf %335, %336 : vector<2x128xf32>
    %338 = math.tanh %337 : vector<2x128xf32>
    %339 = arith.mulf %334, %338 : vector<2x128xf32>
    %340 = vector.extract_strided_slice %339 {offsets = [0, 0], sizes = [2, 32], strides = [1, 1]} : vector<2x128xf32> to vector<2x32xf32>
    %341 = arith.truncf %340 : vector<2x32xf32> to vector<2x32xbf16>
    %cst_66 = arith.constant dense<0.000000e+00> : vector<2x640xf32>
    %342 = tpu.matmul %341, %2, %cst_66 {dimension_numbers = #tpu.dot_dimension_numbers<[1], [0], [0], [1], [0, 0, 1, 1], [], []>} : vector<2x32xbf16>, vector<32x640xbf16>, vector<2x640xf32> -> vector<2x640xf32>
    %343 = vector.extract_strided_slice %342 {offsets = [0, 0], sizes = [2, 512], strides = [1, 1]} : vector<2x640xf32> to vector<2x512xf32>
    %344 = vector.extract_strided_slice %342 {offsets = [0, 512], sizes = [2, 128], strides = [1, 1]} : vector<2x640xf32> to vector<2x128xf32>
    %345 = arith.addf %344, %17 : vector<2x128xf32>
    %cst_67 = arith.constant 0.000000e+00 : f32
    %346 = vector.broadcast %cst_67 : f32 to vector<2x128xf32>
    %347 = arith.cmpf ogt, %345, %346 : vector<2x128xf32>
    %348 = arith.mulf %345, %345 : vector<2x128xf32>
    %cst_68 = arith.constant 1.000000e+00 : f32
    %349 = vector.broadcast %cst_68 : f32 to vector<2x128xf32>
    %350 = arith.addf %349, %348 : vector<2x128xf32>
    %351 = math.rsqrt %350 : vector<2x128xf32>
    %352 = arith.mulf %345, %351 : vector<2x128xf32>
    %353 = arith.select %347, %345, %352 : vector<2x128xi1>, vector<2x128xf32>
    %cst_69 = arith.constant 1.005000e+00 : f32
    %354 = vector.broadcast %cst_69 : f32 to vector<2x128xf32>
    %355 = arith.addf %354, %353 : vector<2x128xf32>
    %356 = math.tanh %345 : vector<2x128xf32>
    %cst_70 = arith.constant 9.990000e-01 : f32
    %357 = vector.broadcast %cst_70 : f32 to vector<2x128xf32>
    %358 = arith.mulf %357, %356 : vector<2x128xf32>
    %cst_71 = arith.constant 1.000000e+00 : f32
    %359 = vector.broadcast %cst_71 : f32 to vector<2x128xf32>
    %360 = arith.addf %359, %358 : vector<2x128xf32>
    %cst_72 = arith.constant 5.000000e-01 : f32
    %361 = vector.broadcast %cst_72 : f32 to vector<2x128xf32>
    %362 = arith.mulf %361, %360 : vector<2x128xf32>
    %363 = arith.select %25, %355, %362 : vector<2x128xi1>, vector<2x128xf32>
    %364 = arith.select %20, %345, %363 : vector<2x128xi1>, vector<2x128xf32>
    %c0_73 = arith.constant 0 : index
    %c384 = arith.constant 384 : index
    %365 = vector.load %arg2[%c0_73, %c384] : memref<2x1024xf32, #tpu.memory_space<vmem>>, vector<2x128xf32>
    tpu.vector_store %arg2[%c0_73, %c384], %364 {strides = array<i32>} : memref<2x1024xf32, #tpu.memory_space<vmem>>, vector<2x128xf32>,
    %366 = arith.addf %9, %311 : vector<2x512xf32>
    %367 = vector.extract_strided_slice %366 {offsets = [0, 0], sizes = [2, 128], strides = [1, 1]} : vector<2x512xf32> to vector<2x128xf32>
    %368 = arith.negf %367 : vector<2x128xf32>
    %369 = math.exp %368 : vector<2x128xf32>
    %cst_74 = arith.constant 1.000000e+00 : f32
    %370 = vector.broadcast %cst_74 : f32 to vector<2x128xf32>
    %371 = arith.addf %370, %369 : vector<2x128xf32>
    %372 = arith.divf %370, %371 : vector<2x128xf32>
    %373 = vector.extract_strided_slice %366 {offsets = [0, 128], sizes = [2, 128], strides = [1, 1]} : vector<2x512xf32> to vector<2x128xf32>
    %374 = arith.negf %373 : vector<2x128xf32>
    %375 = math.exp %374 : vector<2x128xf32>
    %cst_75 = arith.constant 1.000000e+00 : f32
    %376 = vector.broadcast %cst_75 : f32 to vector<2x128xf32>
    %377 = arith.addf %376, %375 : vector<2x128xf32>
    %378 = arith.divf %376, %377 : vector<2x128xf32>
    %379 = vector.extract_strided_slice %366 {offsets = [0, 256], sizes = [2, 128], strides = [1, 1]} : vector<2x512xf32> to vector<2x128xf32>
    %380 = math.tanh %379 : vector<2x128xf32>
    %381 = vector.extract_strided_slice %366 {offsets = [0, 384], sizes = [2, 128], strides = [1, 1]} : vector<2x512xf32> to vector<2x128xf32>
    %382 = arith.negf %381 : vector<2x128xf32>
    %383 = math.exp %382 : vector<2x128xf32>
    %cst_76 = arith.constant 1.000000e+00 : f32
    %384 = vector.broadcast %cst_76 : f32 to vector<2x128xf32>
    %385 = arith.addf %384, %383 : vector<2x128xf32>
    %386 = arith.divf %384, %385 : vector<2x128xf32>
    %387 = arith.mulf %378, %305 : vector<2x128xf32>
    %388 = arith.mulf %372, %380 : vector<2x128xf32>
    %389 = arith.addf %387, %388 : vector<2x128xf32>
    %390 = math.tanh %389 : vector<2x128xf32>
    %391 = arith.mulf %386, %390 : vector<2x128xf32>
    %392 = vector.extract_strided_slice %391 {offsets = [0, 0], sizes = [2, 16], strides = [1, 1]} : vector<2x128xf32> to vector<2x16xf32>
    %393 = arith.truncf %392 : vector<2x16xf32> to vector<2x16xbf16>
    %cst_77 = arith.constant dense<0.000000e+00> : vector<2x1024xf32>
    %394 = tpu.matmul %393, %1, %cst_77 {dimension_numbers = #tpu.dot_dimension_numbers<[1], [0], [0], [1], [0, 0, 1, 1], [], []>} : vector<2x16xbf16>, vector<16x1024xbf16>, vector<2x1024xf32> -> vector<2x1024xf32>
    %395 = vector.extract_strided_slice %394 {offsets = [0, 0], sizes = [2, 512], strides = [1, 1]} : vector<2x1024xf32> to vector<2x512xf32>
    %396 = vector.extract_strided_slice %394 {offsets = [0, 512], sizes = [2, 512], strides = [1, 1]} : vector<2x1024xf32> to vector<2x512xf32>
    %397 = arith.addf %396, %13 : vector<2x512xf32>
    %398 = arith.addf %397, %343 : vector<2x512xf32>
    %399 = vector.extract_strided_slice %398 {offsets = [0, 0], sizes = [2, 128], strides = [1, 1]} : vector<2x512xf32> to vector<2x128xf32>
    %400 = arith.negf %399 : vector<2x128xf32>
    %401 = math.exp %400 : vector<2x128xf32>
    %cst_78 = arith.constant 1.000000e+00 : f32
    %402 = vector.broadcast %cst_78 : f32 to vector<2x128xf32>
    %403 = arith.addf %402, %401 : vector<2x128xf32>
    %404 = arith.divf %402, %403 : vector<2x128xf32>
    %405 = vector.extract_strided_slice %398 {offsets = [0, 128], sizes = [2, 128], strides = [1, 1]} : vector<2x512xf32> to vector<2x128xf32>
    %406 = arith.negf %405 : vector<2x128xf32>
    %407 = math.exp %406 : vector<2x128xf32>
    %cst_79 = arith.constant 1.000000e+00 : f32
    %408 = vector.broadcast %cst_79 : f32 to vector<2x128xf32>
    %409 = arith.addf %408, %407 : vector<2x128xf32>
    %410 = arith.divf %408, %409 : vector<2x128xf32>
    %411 = vector.extract_strided_slice %398 {offsets = [0, 256], sizes = [2, 128], strides = [1, 1]} : vector<2x512xf32> to vector<2x128xf32>
    %412 = math.tanh %411 : vector<2x128xf32>
    %413 = vector.extract_strided_slice %398 {offsets = [0, 384], sizes = [2, 128], strides = [1, 1]} : vector<2x512xf32> to vector<2x128xf32>
    %414 = arith.negf %413 : vector<2x128xf32>
    %415 = math.exp %414 : vector<2x128xf32>
    %cst_80 = arith.constant 1.000000e+00 : f32
    %416 = vector.broadcast %cst_80 : f32 to vector<2x128xf32>
    %417 = arith.addf %416, %415 : vector<2x128xf32>
    %418 = arith.divf %416, %417 : vector<2x128xf32>
    %419 = arith.mulf %410, %337 : vector<2x128xf32>
    %420 = arith.mulf %404, %412 : vector<2x128xf32>
    %421 = arith.addf %419, %420 : vector<2x128xf32>
    %422 = math.tanh %421 : vector<2x128xf32>
    %423 = arith.mulf %418, %422 : vector<2x128xf32>
    %424 = vector.extract_strided_slice %423 {offsets = [0, 0], sizes = [2, 32], strides = [1, 1]} : vector<2x128xf32> to vector<2x32xf32>
    %425 = arith.truncf %424 : vector<2x32xf32> to vector<2x32xbf16>
    %cst_81 = arith.constant dense<0.000000e+00> : vector<2x640xf32>
    %426 = tpu.matmul %425, %2, %cst_81 {dimension_numbers = #tpu.dot_dimension_numbers<[1], [0], [0], [1], [0, 0, 1, 1], [], []>} : vector<2x32xbf16>, vector<32x640xbf16>, vector<2x640xf32> -> vector<2x640xf32>
    %427 = vector.extract_strided_slice %426 {offsets = [0, 0], sizes = [2, 512], strides = [1, 1]} : vector<2x640xf32> to vector<2x512xf32>
    %428 = vector.extract_strided_slice %426 {offsets = [0, 512], sizes = [2, 128], strides = [1, 1]} : vector<2x640xf32> to vector<2x128xf32>
    %429 = arith.addf %428, %17 : vector<2x128xf32>
    %cst_82 = arith.constant 0.000000e+00 : f32
    %430 = vector.broadcast %cst_82 : f32 to vector<2x128xf32>
    %431 = arith.cmpf ogt, %429, %430 : vector<2x128xf32>
    %432 = arith.mulf %429, %429 : vector<2x128xf32>
    %cst_83 = arith.constant 1.000000e+00 : f32
    %433 = vector.broadcast %cst_83 : f32 to vector<2x128xf32>
    %434 = arith.addf %433, %432 : vector<2x128xf32>
    %435 = math.rsqrt %434 : vector<2x128xf32>
    %436 = arith.mulf %429, %435 : vector<2x128xf32>
    %437 = arith.select %431, %429, %436 : vector<2x128xi1>, vector<2x128xf32>
    %cst_84 = arith.constant 1.005000e+00 : f32
    %438 = vector.broadcast %cst_84 : f32 to vector<2x128xf32>
    %439 = arith.addf %438, %437 : vector<2x128xf32>
    %440 = math.tanh %429 : vector<2x128xf32>
    %cst_85 = arith.constant 9.990000e-01 : f32
    %441 = vector.broadcast %cst_85 : f32 to vector<2x128xf32>
    %442 = arith.mulf %441, %440 : vector<2x128xf32>
    %cst_86 = arith.constant 1.000000e+00 : f32
    %443 = vector.broadcast %cst_86 : f32 to vector<2x128xf32>
    %444 = arith.addf %443, %442 : vector<2x128xf32>
    %cst_87 = arith.constant 5.000000e-01 : f32
    %445 = vector.broadcast %cst_87 : f32 to vector<2x128xf32>
    %446 = arith.mulf %445, %444 : vector<2x128xf32>
    %447 = arith.select %25, %439, %446 : vector<2x128xi1>, vector<2x128xf32>
    %448 = arith.select %20, %429, %447 : vector<2x128xi1>, vector<2x128xf32>
    %c0_88 = arith.constant 0 : index
    %c512 = arith.constant 512 : index
    %449 = vector.load %arg2[%c0_88, %c512] : memref<2x1024xf32, #tpu.memory_space<vmem>>, vector<2x128xf32>
    tpu.vector_store %arg2[%c0_88, %c512], %448 {strides = array<i32>} : memref<2x1024xf32, #tpu.memory_space<vmem>>, vector<2x128xf32>,
    %450 = arith.addf %9, %395 : vector<2x512xf32>
    %451 = vector.extract_strided_slice %450 {offsets = [0, 0], sizes = [2, 128], strides = [1, 1]} : vector<2x512xf32> to vector<2x128xf32>
    %452 = arith.negf %451 : vector<2x128xf32>
    %453 = math.exp %452 : vector<2x128xf32>
    %cst_89 = arith.constant 1.000000e+00 : f32
    %454 = vector.broadcast %cst_89 : f32 to vector<2x128xf32>
    %455 = arith.addf %454, %453 : vector<2x128xf32>
    %456 = arith.divf %454, %455 : vector<2x128xf32>
    %457 = vector.extract_strided_slice %450 {offsets = [0, 128], sizes = [2, 128], strides = [1, 1]} : vector<2x512xf32> to vector<2x128xf32>
    %458 = arith.negf %457 : vector<2x128xf32>
    %459 = math.exp %458 : vector<2x128xf32>
    %cst_90 = arith.constant 1.000000e+00 : f32
    %460 = vector.broadcast %cst_90 : f32 to vector<2x128xf32>
    %461 = arith.addf %460, %459 : vector<2x128xf32>
    %462 = arith.divf %460, %461 : vector<2x128xf32>
    %463 = vector.extract_strided_slice %450 {offsets = [0, 256], sizes = [2, 128], strides = [1, 1]} : vector<2x512xf32> to vector<2x128xf32>
    %464 = math.tanh %463 : vector<2x128xf32>
    %465 = vector.extract_strided_slice %450 {offsets = [0, 384], sizes = [2, 128], strides = [1, 1]} : vector<2x512xf32> to vector<2x128xf32>
    %466 = arith.negf %465 : vector<2x128xf32>
    %467 = math.exp %466 : vector<2x128xf32>
    %cst_91 = arith.constant 1.000000e+00 : f32
    %468 = vector.broadcast %cst_91 : f32 to vector<2x128xf32>
    %469 = arith.addf %468, %467 : vector<2x128xf32>
    %470 = arith.divf %468, %469 : vector<2x128xf32>
    %471 = arith.mulf %462, %389 : vector<2x128xf32>
    %472 = arith.mulf %456, %464 : vector<2x128xf32>
    %473 = arith.addf %471, %472 : vector<2x128xf32>
    %474 = math.tanh %473 : vector<2x128xf32>
    %475 = arith.mulf %470, %474 : vector<2x128xf32>
    %476 = vector.extract_strided_slice %475 {offsets = [0, 0], sizes = [2, 16], strides = [1, 1]} : vector<2x128xf32> to vector<2x16xf32>
    %477 = arith.truncf %476 : vector<2x16xf32> to vector<2x16xbf16>
    %cst_92 = arith.constant dense<0.000000e+00> : vector<2x1024xf32>
    %478 = tpu.matmul %477, %1, %cst_92 {dimension_numbers = #tpu.dot_dimension_numbers<[1], [0], [0], [1], [0, 0, 1, 1], [], []>} : vector<2x16xbf16>, vector<16x1024xbf16>, vector<2x1024xf32> -> vector<2x1024xf32>
    %479 = vector.extract_strided_slice %478 {offsets = [0, 0], sizes = [2, 512], strides = [1, 1]} : vector<2x1024xf32> to vector<2x512xf32>
    %480 = vector.extract_strided_slice %478 {offsets = [0, 512], sizes = [2, 512], strides = [1, 1]} : vector<2x1024xf32> to vector<2x512xf32>
    %481 = arith.addf %480, %13 : vector<2x512xf32>
    %482 = arith.addf %481, %427 : vector<2x512xf32>
    %483 = vector.extract_strided_slice %482 {offsets = [0, 0], sizes = [2, 128], strides = [1, 1]} : vector<2x512xf32> to vector<2x128xf32>
    %484 = arith.negf %483 : vector<2x128xf32>
    %485 = math.exp %484 : vector<2x128xf32>
    %cst_93 = arith.constant 1.000000e+00 : f32
    %486 = vector.broadcast %cst_93 : f32 to vector<2x128xf32>
    %487 = arith.addf %486, %485 : vector<2x128xf32>
    %488 = arith.divf %486, %487 : vector<2x128xf32>
    %489 = vector.extract_strided_slice %482 {offsets = [0, 128], sizes = [2, 128], strides = [1, 1]} : vector<2x512xf32> to vector<2x128xf32>
    %490 = arith.negf %489 : vector<2x128xf32>
    %491 = math.exp %490 : vector<2x128xf32>
    %cst_94 = arith.constant 1.000000e+00 : f32
    %492 = vector.broadcast %cst_94 : f32 to vector<2x128xf32>
    %493 = arith.addf %492, %491 : vector<2x128xf32>
    %494 = arith.divf %492, %493 : vector<2x128xf32>
    %495 = vector.extract_strided_slice %482 {offsets = [0, 256], sizes = [2, 128], strides = [1, 1]} : vector<2x512xf32> to vector<2x128xf32>
    %496 = math.tanh %495 : vector<2x128xf32>
    %497 = vector.extract_strided_slice %482 {offsets = [0, 384], sizes = [2, 128], strides = [1, 1]} : vector<2x512xf32> to vector<2x128xf32>
    %498 = arith.negf %497 : vector<2x128xf32>
    %499 = math.exp %498 : vector<2x128xf32>
    %cst_95 = arith.constant 1.000000e+00 : f32
    %500 = vector.broadcast %cst_95 : f32 to vector<2x128xf32>
    %501 = arith.addf %500, %499 : vector<2x128xf32>
    %502 = arith.divf %500, %501 : vector<2x128xf32>
    %503 = arith.mulf %494, %421 : vector<2x128xf32>
    %504 = arith.mulf %488, %496 : vector<2x128xf32>
    %505 = arith.addf %503, %504 : vector<2x128xf32>
    %506 = math.tanh %505 : vector<2x128xf32>
    %507 = arith.mulf %502, %506 : vector<2x128xf32>
    %508 = vector.extract_strided_slice %507 {offsets = [0, 0], sizes = [2, 32], strides = [1, 1]} : vector<2x128xf32> to vector<2x32xf32>
    %509 = arith.truncf %508 : vector<2x32xf32> to vector<2x32xbf16>
    %cst_96 = arith.constant dense<0.000000e+00> : vector<2x640xf32>
    %510 = tpu.matmul %509, %2, %cst_96 {dimension_numbers = #tpu.dot_dimension_numbers<[1], [0], [0], [1], [0, 0, 1, 1], [], []>} : vector<2x32xbf16>, vector<32x640xbf16>, vector<2x640xf32> -> vector<2x640xf32>
    %511 = vector.extract_strided_slice %510 {offsets = [0, 0], sizes = [2, 512], strides = [1, 1]} : vector<2x640xf32> to vector<2x512xf32>
    %512 = vector.extract_strided_slice %510 {offsets = [0, 512], sizes = [2, 128], strides = [1, 1]} : vector<2x640xf32> to vector<2x128xf32>
    %513 = arith.addf %512, %17 : vector<2x128xf32>
    %cst_97 = arith.constant 0.000000e+00 : f32
    %514 = vector.broadcast %cst_97 : f32 to vector<2x128xf32>
    %515 = arith.cmpf ogt, %513, %514 : vector<2x128xf32>
    %516 = arith.mulf %513, %513 : vector<2x128xf32>
    %cst_98 = arith.constant 1.000000e+00 : f32
    %517 = vector.broadcast %cst_98 : f32 to vector<2x128xf32>
    %518 = arith.addf %517, %516 : vector<2x128xf32>
    %519 = math.rsqrt %518 : vector<2x128xf32>
    %520 = arith.mulf %513, %519 : vector<2x128xf32>
    %521 = arith.select %515, %513, %520 : vector<2x128xi1>, vector<2x128xf32>
    %cst_99 = arith.constant 1.005000e+00 : f32
    %522 = vector.broadcast %cst_99 : f32 to vector<2x128xf32>
    %523 = arith.addf %522, %521 : vector<2x128xf32>
    %524 = math.tanh %513 : vector<2x128xf32>
    %cst_100 = arith.constant 9.990000e-01 : f32
    %525 = vector.broadcast %cst_100 : f32 to vector<2x128xf32>
    %526 = arith.mulf %525, %524 : vector<2x128xf32>
    %cst_101 = arith.constant 1.000000e+00 : f32
    %527 = vector.broadcast %cst_101 : f32 to vector<2x128xf32>
    %528 = arith.addf %527, %526 : vector<2x128xf32>
    %cst_102 = arith.constant 5.000000e-01 : f32
    %529 = vector.broadcast %cst_102 : f32 to vector<2x128xf32>
    %530 = arith.mulf %529, %528 : vector<2x128xf32>
    %531 = arith.select %25, %523, %530 : vector<2x128xi1>, vector<2x128xf32>
    %532 = arith.select %20, %513, %531 : vector<2x128xi1>, vector<2x128xf32>
    %c0_103 = arith.constant 0 : index
    %c640 = arith.constant 640 : index
    %533 = vector.load %arg2[%c0_103, %c640] : memref<2x1024xf32, #tpu.memory_space<vmem>>, vector<2x128xf32>
    tpu.vector_store %arg2[%c0_103, %c640], %532 {strides = array<i32>} : memref<2x1024xf32, #tpu.memory_space<vmem>>, vector<2x128xf32>,
    %534 = arith.addf %9, %479 : vector<2x512xf32>
    %535 = vector.extract_strided_slice %534 {offsets = [0, 0], sizes = [2, 128], strides = [1, 1]} : vector<2x512xf32> to vector<2x128xf32>
    %536 = arith.negf %535 : vector<2x128xf32>
    %537 = math.exp %536 : vector<2x128xf32>
    %cst_104 = arith.constant 1.000000e+00 : f32
    %538 = vector.broadcast %cst_104 : f32 to vector<2x128xf32>
    %539 = arith.addf %538, %537 : vector<2x128xf32>
    %540 = arith.divf %538, %539 : vector<2x128xf32>
    %541 = vector.extract_strided_slice %534 {offsets = [0, 128], sizes = [2, 128], strides = [1, 1]} : vector<2x512xf32> to vector<2x128xf32>
    %542 = arith.negf %541 : vector<2x128xf32>
    %543 = math.exp %542 : vector<2x128xf32>
    %cst_105 = arith.constant 1.000000e+00 : f32
    %544 = vector.broadcast %cst_105 : f32 to vector<2x128xf32>
    %545 = arith.addf %544, %543 : vector<2x128xf32>
    %546 = arith.divf %544, %545 : vector<2x128xf32>
    %547 = vector.extract_strided_slice %534 {offsets = [0, 256], sizes = [2, 128], strides = [1, 1]} : vector<2x512xf32> to vector<2x128xf32>
    %548 = math.tanh %547 : vector<2x128xf32>
    %549 = vector.extract_strided_slice %534 {offsets = [0, 384], sizes = [2, 128], strides = [1, 1]} : vector<2x512xf32> to vector<2x128xf32>
    %550 = arith.negf %549 : vector<2x128xf32>
    %551 = math.exp %550 : vector<2x128xf32>
    %cst_106 = arith.constant 1.000000e+00 : f32
    %552 = vector.broadcast %cst_106 : f32 to vector<2x128xf32>
    %553 = arith.addf %552, %551 : vector<2x128xf32>
    %554 = arith.divf %552, %553 : vector<2x128xf32>
    %555 = arith.mulf %546, %473 : vector<2x128xf32>
    %556 = arith.mulf %540, %548 : vector<2x128xf32>
    %557 = arith.addf %555, %556 : vector<2x128xf32>
    %558 = math.tanh %557 : vector<2x128xf32>
    %559 = arith.mulf %554, %558 : vector<2x128xf32>
    %560 = vector.extract_strided_slice %559 {offsets = [0, 0], sizes = [2, 16], strides = [1, 1]} : vector<2x128xf32> to vector<2x16xf32>
    %561 = arith.truncf %560 : vector<2x16xf32> to vector<2x16xbf16>
    %cst_107 = arith.constant dense<0.000000e+00> : vector<2x1024xf32>
    %562 = tpu.matmul %561, %1, %cst_107 {dimension_numbers = #tpu.dot_dimension_numbers<[1], [0], [0], [1], [0, 0, 1, 1], [], []>} : vector<2x16xbf16>, vector<16x1024xbf16>, vector<2x1024xf32> -> vector<2x1024xf32>
    %563 = vector.extract_strided_slice %562 {offsets = [0, 0], sizes = [2, 512], strides = [1, 1]} : vector<2x1024xf32> to vector<2x512xf32>
    %564 = vector.extract_strided_slice %562 {offsets = [0, 512], sizes = [2, 512], strides = [1, 1]} : vector<2x1024xf32> to vector<2x512xf32>
    %565 = arith.addf %564, %13 : vector<2x512xf32>
    %566 = arith.addf %565, %511 : vector<2x512xf32>
    %567 = vector.extract_strided_slice %566 {offsets = [0, 0], sizes = [2, 128], strides = [1, 1]} : vector<2x512xf32> to vector<2x128xf32>
    %568 = arith.negf %567 : vector<2x128xf32>
    %569 = math.exp %568 : vector<2x128xf32>
    %cst_108 = arith.constant 1.000000e+00 : f32
    %570 = vector.broadcast %cst_108 : f32 to vector<2x128xf32>
    %571 = arith.addf %570, %569 : vector<2x128xf32>
    %572 = arith.divf %570, %571 : vector<2x128xf32>
    %573 = vector.extract_strided_slice %566 {offsets = [0, 128], sizes = [2, 128], strides = [1, 1]} : vector<2x512xf32> to vector<2x128xf32>
    %574 = arith.negf %573 : vector<2x128xf32>
    %575 = math.exp %574 : vector<2x128xf32>
    %cst_109 = arith.constant 1.000000e+00 : f32
    %576 = vector.broadcast %cst_109 : f32 to vector<2x128xf32>
    %577 = arith.addf %576, %575 : vector<2x128xf32>
    %578 = arith.divf %576, %577 : vector<2x128xf32>
    %579 = vector.extract_strided_slice %566 {offsets = [0, 256], sizes = [2, 128], strides = [1, 1]} : vector<2x512xf32> to vector<2x128xf32>
    %580 = math.tanh %579 : vector<2x128xf32>
    %581 = vector.extract_strided_slice %566 {offsets = [0, 384], sizes = [2, 128], strides = [1, 1]} : vector<2x512xf32> to vector<2x128xf32>
    %582 = arith.negf %581 : vector<2x128xf32>
    %583 = math.exp %582 : vector<2x128xf32>
    %cst_110 = arith.constant 1.000000e+00 : f32
    %584 = vector.broadcast %cst_110 : f32 to vector<2x128xf32>
    %585 = arith.addf %584, %583 : vector<2x128xf32>
    %586 = arith.divf %584, %585 : vector<2x128xf32>
    %587 = arith.mulf %578, %505 : vector<2x128xf32>
    %588 = arith.mulf %572, %580 : vector<2x128xf32>
    %589 = arith.addf %587, %588 : vector<2x128xf32>
    %590 = math.tanh %589 : vector<2x128xf32>
    %591 = arith.mulf %586, %590 : vector<2x128xf32>
    %592 = vector.extract_strided_slice %591 {offsets = [0, 0], sizes = [2, 32], strides = [1, 1]} : vector<2x128xf32> to vector<2x32xf32>
    %593 = arith.truncf %592 : vector<2x32xf32> to vector<2x32xbf16>
    %cst_111 = arith.constant dense<0.000000e+00> : vector<2x640xf32>
    %594 = tpu.matmul %593, %2, %cst_111 {dimension_numbers = #tpu.dot_dimension_numbers<[1], [0], [0], [1], [0, 0, 1, 1], [], []>} : vector<2x32xbf16>, vector<32x640xbf16>, vector<2x640xf32> -> vector<2x640xf32>
    %595 = vector.extract_strided_slice %594 {offsets = [0, 0], sizes = [2, 512], strides = [1, 1]} : vector<2x640xf32> to vector<2x512xf32>
    %596 = vector.extract_strided_slice %594 {offsets = [0, 512], sizes = [2, 128], strides = [1, 1]} : vector<2x640xf32> to vector<2x128xf32>
    %597 = arith.addf %596, %17 : vector<2x128xf32>
    %cst_112 = arith.constant 0.000000e+00 : f32
    %598 = vector.broadcast %cst_112 : f32 to vector<2x128xf32>
    %599 = arith.cmpf ogt, %597, %598 : vector<2x128xf32>
    %600 = arith.mulf %597, %597 : vector<2x128xf32>
    %cst_113 = arith.constant 1.000000e+00 : f32
    %601 = vector.broadcast %cst_113 : f32 to vector<2x128xf32>
    %602 = arith.addf %601, %600 : vector<2x128xf32>
    %603 = math.rsqrt %602 : vector<2x128xf32>
    %604 = arith.mulf %597, %603 : vector<2x128xf32>
    %605 = arith.select %599, %597, %604 : vector<2x128xi1>, vector<2x128xf32>
    %cst_114 = arith.constant 1.005000e+00 : f32
    %606 = vector.broadcast %cst_114 : f32 to vector<2x128xf32>
    %607 = arith.addf %606, %605 : vector<2x128xf32>
    %608 = math.tanh %597 : vector<2x128xf32>
    %cst_115 = arith.constant 9.990000e-01 : f32
    %609 = vector.broadcast %cst_115 : f32 to vector<2x128xf32>
    %610 = arith.mulf %609, %608 : vector<2x128xf32>
    %cst_116 = arith.constant 1.000000e+00 : f32
    %611 = vector.broadcast %cst_116 : f32 to vector<2x128xf32>
    %612 = arith.addf %611, %610 : vector<2x128xf32>
    %cst_117 = arith.constant 5.000000e-01 : f32
    %613 = vector.broadcast %cst_117 : f32 to vector<2x128xf32>
    %614 = arith.mulf %613, %612 : vector<2x128xf32>
    %615 = arith.select %25, %607, %614 : vector<2x128xi1>, vector<2x128xf32>
    %616 = arith.select %20, %597, %615 : vector<2x128xi1>, vector<2x128xf32>
    %c0_118 = arith.constant 0 : index
    %c768 = arith.constant 768 : index
    %617 = vector.load %arg2[%c0_118, %c768] : memref<2x1024xf32, #tpu.memory_space<vmem>>, vector<2x128xf32>
    tpu.vector_store %arg2[%c0_118, %c768], %616 {strides = array<i32>} : memref<2x1024xf32, #tpu.memory_space<vmem>>, vector<2x128xf32>,
    %618 = arith.addf %9, %563 : vector<2x512xf32>
    %619 = vector.extract_strided_slice %618 {offsets = [0, 0], sizes = [2, 128], strides = [1, 1]} : vector<2x512xf32> to vector<2x128xf32>
    %620 = arith.negf %619 : vector<2x128xf32>
    %621 = math.exp %620 : vector<2x128xf32>
    %cst_119 = arith.constant 1.000000e+00 : f32
    %622 = vector.broadcast %cst_119 : f32 to vector<2x128xf32>
    %623 = arith.addf %622, %621 : vector<2x128xf32>
    %624 = arith.divf %622, %623 : vector<2x128xf32>
    %625 = vector.extract_strided_slice %618 {offsets = [0, 128], sizes = [2, 128], strides = [1, 1]} : vector<2x512xf32> to vector<2x128xf32>
    %626 = arith.negf %625 : vector<2x128xf32>
    %627 = math.exp %626 : vector<2x128xf32>
    %cst_120 = arith.constant 1.000000e+00 : f32
    %628 = vector.broadcast %cst_120 : f32 to vector<2x128xf32>
    %629 = arith.addf %628, %627 : vector<2x128xf32>
    %630 = arith.divf %628, %629 : vector<2x128xf32>
    %631 = vector.extract_strided_slice %618 {offsets = [0, 256], sizes = [2, 128], strides = [1, 1]} : vector<2x512xf32> to vector<2x128xf32>
    %632 = math.tanh %631 : vector<2x128xf32>
    %633 = vector.extract_strided_slice %618 {offsets = [0, 384], sizes = [2, 128], strides = [1, 1]} : vector<2x512xf32> to vector<2x128xf32>
    %634 = arith.negf %633 : vector<2x128xf32>
    %635 = math.exp %634 : vector<2x128xf32>
    %cst_121 = arith.constant 1.000000e+00 : f32
    %636 = vector.broadcast %cst_121 : f32 to vector<2x128xf32>
    %637 = arith.addf %636, %635 : vector<2x128xf32>
    %638 = arith.divf %636, %637 : vector<2x128xf32>
    %639 = arith.mulf %630, %557 : vector<2x128xf32>
    %640 = arith.mulf %624, %632 : vector<2x128xf32>
    %641 = arith.addf %639, %640 : vector<2x128xf32>
    %642 = math.tanh %641 : vector<2x128xf32>
    %643 = arith.mulf %638, %642 : vector<2x128xf32>
    %644 = vector.extract_strided_slice %643 {offsets = [0, 0], sizes = [2, 16], strides = [1, 1]} : vector<2x128xf32> to vector<2x16xf32>
    %645 = arith.truncf %644 : vector<2x16xf32> to vector<2x16xbf16>
    %cst_122 = arith.constant dense<0.000000e+00> : vector<2x1024xf32>
    %646 = tpu.matmul %645, %1, %cst_122 {dimension_numbers = #tpu.dot_dimension_numbers<[1], [0], [0], [1], [0, 0, 1, 1], [], []>} : vector<2x16xbf16>, vector<16x1024xbf16>, vector<2x1024xf32> -> vector<2x1024xf32>
    %647 = vector.extract_strided_slice %646 {offsets = [0, 512], sizes = [2, 512], strides = [1, 1]} : vector<2x1024xf32> to vector<2x512xf32>
    %648 = arith.addf %647, %13 : vector<2x512xf32>
    %649 = arith.addf %648, %595 : vector<2x512xf32>
    %650 = vector.extract_strided_slice %649 {offsets = [0, 0], sizes = [2, 128], strides = [1, 1]} : vector<2x512xf32> to vector<2x128xf32>
    %651 = arith.negf %650 : vector<2x128xf32>
    %652 = math.exp %651 : vector<2x128xf32>
    %cst_123 = arith.constant 1.000000e+00 : f32
    %653 = vector.broadcast %cst_123 : f32 to vector<2x128xf32>
    %654 = arith.addf %653, %652 : vector<2x128xf32>
    %655 = arith.divf %653, %654 : vector<2x128xf32>
    %656 = vector.extract_strided_slice %649 {offsets = [0, 128], sizes = [2, 128], strides = [1, 1]} : vector<2x512xf32> to vector<2x128xf32>
    %657 = arith.negf %656 : vector<2x128xf32>
    %658 = math.exp %657 : vector<2x128xf32>
    %cst_124 = arith.constant 1.000000e+00 : f32
    %659 = vector.broadcast %cst_124 : f32 to vector<2x128xf32>
    %660 = arith.addf %659, %658 : vector<2x128xf32>
    %661 = arith.divf %659, %660 : vector<2x128xf32>
    %662 = vector.extract_strided_slice %649 {offsets = [0, 256], sizes = [2, 128], strides = [1, 1]} : vector<2x512xf32> to vector<2x128xf32>
    %663 = math.tanh %662 : vector<2x128xf32>
    %664 = vector.extract_strided_slice %649 {offsets = [0, 384], sizes = [2, 128], strides = [1, 1]} : vector<2x512xf32> to vector<2x128xf32>
    %665 = arith.negf %664 : vector<2x128xf32>
    %666 = math.exp %665 : vector<2x128xf32>
    %cst_125 = arith.constant 1.000000e+00 : f32
    %667 = vector.broadcast %cst_125 : f32 to vector<2x128xf32>
    %668 = arith.addf %667, %666 : vector<2x128xf32>
    %669 = arith.divf %667, %668 : vector<2x128xf32>
    %670 = arith.mulf %661, %589 : vector<2x128xf32>
    %671 = arith.mulf %655, %663 : vector<2x128xf32>
    %672 = arith.addf %670, %671 : vector<2x128xf32>
    %673 = math.tanh %672 : vector<2x128xf32>
    %674 = arith.mulf %669, %673 : vector<2x128xf32>
    %675 = vector.extract_strided_slice %674 {offsets = [0, 0], sizes = [2, 32], strides = [1, 1]} : vector<2x128xf32> to vector<2x32xf32>
    %676 = arith.truncf %675 : vector<2x32xf32> to vector<2x32xbf16>
    %cst_126 = arith.constant dense<0.000000e+00> : vector<2x640xf32>
    %677 = tpu.matmul %676, %2, %cst_126 {dimension_numbers = #tpu.dot_dimension_numbers<[1], [0], [0], [1], [0, 0, 1, 1], [], []>} : vector<2x32xbf16>, vector<32x640xbf16>, vector<2x640xf32> -> vector<2x640xf32>
    %678 = vector.extract_strided_slice %677 {offsets = [0, 512], sizes = [2, 128], strides = [1, 1]} : vector<2x640xf32> to vector<2x128xf32>
    %679 = arith.addf %678, %17 : vector<2x128xf32>
    %cst_127 = arith.constant 0.000000e+00 : f32
    %680 = vector.broadcast %cst_127 : f32 to vector<2x128xf32>
    %681 = arith.cmpf ogt, %679, %680 : vector<2x128xf32>
    %682 = arith.mulf %679, %679 : vector<2x128xf32>
    %cst_128 = arith.constant 1.000000e+00 : f32
    %683 = vector.broadcast %cst_128 : f32 to vector<2x128xf32>
    %684 = arith.addf %683, %682 : vector<2x128xf32>
    %685 = math.rsqrt %684 : vector<2x128xf32>
    %686 = arith.mulf %679, %685 : vector<2x128xf32>
    %687 = arith.select %681, %679, %686 : vector<2x128xi1>, vector<2x128xf32>
    %cst_129 = arith.constant 1.005000e+00 : f32
    %688 = vector.broadcast %cst_129 : f32 to vector<2x128xf32>
    %689 = arith.addf %688, %687 : vector<2x128xf32>
    %690 = math.tanh %679 : vector<2x128xf32>
    %cst_130 = arith.constant 9.990000e-01 : f32
    %691 = vector.broadcast %cst_130 : f32 to vector<2x128xf32>
    %692 = arith.mulf %691, %690 : vector<2x128xf32>
    %cst_131 = arith.constant 1.000000e+00 : f32
    %693 = vector.broadcast %cst_131 : f32 to vector<2x128xf32>
    %694 = arith.addf %693, %692 : vector<2x128xf32>
    %cst_132 = arith.constant 5.000000e-01 : f32
    %695 = vector.broadcast %cst_132 : f32 to vector<2x128xf32>
    %696 = arith.mulf %695, %694 : vector<2x128xf32>
    %697 = arith.select %25, %689, %696 : vector<2x128xi1>, vector<2x128xf32>
    %698 = arith.select %20, %679, %697 : vector<2x128xi1>, vector<2x128xf32>
    %c0_133 = arith.constant 0 : index
    %c896 = arith.constant 896 : index
    %699 = vector.load %arg2[%c0_133, %c896] : memref<2x1024xf32, #tpu.memory_space<vmem>>, vector<2x128xf32>
    tpu.vector_store %arg2[%c0_133, %c896], %698 {strides = array<i32>} : memref<2x1024xf32, #tpu.memory_space<vmem>>, vector<2x128xf32>,
    return
  }
}

</mosaic_0001>

<llo_original>
// kernel: tpu_custom_call.1
$region0: #{tpu_custom_call.1}
  #allocation0 [shape = 'u32[]', space=smem, size = 0x4, offset = 0x4, fixed_abs, tag = 'smem constant byte address 0x4 - core index']
  #allocation1 [shape = 'u32[144,128]{1,0:T(1,128)}', space=vmem, size = 0x12000, scoped, tag = 'internal scratch']
  %s0 = inlined_call_operand.hbm [shape: f32[2,8], index: 0, kind: input, shape index: {}]
  %s1 = inlined_call_operand.hbm [shape: bf16[64,1024], index: 1, kind: input, shape index: {}]
  %s2 = inlined_call_operand.hbm [shape: f32[2,1024], index: 2, kind: output, shape index: {}]
  %s3 = sld [smem:[#allocation0]]
  $region26: #{tpu_custom_call.1} parent=0
    _
  %s5 = ssub.s32 1, %s3
  %s6 = scalar_select 0, %s5, %s3
  $region1: #{tpu_custom_call.1} parent=0
    #allocation2 [shape = 'u8[1024]{0}', space=vmem, size = 0x400, scoped, tag = 'input window, operand 0, single buffered']
    #allocation3 [shape = 's32[1]{0}', space=sflag, size = 0x4, scoped, tag = 'scoped memory for tpu_custom_call.1']
    #allocation4 [shape = 's32[1]{0}', space=sflag, size = 0x4, scoped, tag = 'scoped memory for tpu_custom_call.1']
    #allocation5 [shape = 'u8[131072]{0}', space=vmem, size = 0x20000, scoped, tag = 'input window, operand 1, single buffered']
    #allocation6 [shape = 's32[1]{0}', space=sflag, size = 0x4, scoped, tag = 'scoped memory for tpu_custom_call.1']
    #allocation7 [shape = 'u8[8192]{0}', space=vmem, size = 0x2000, scoped, tag = 'output window, operand 0, single buffered']
    %7 = vsyncpa [#allocation3], 0
    %8 = vsyncpa [#allocation6], 0
    %9 = vsyncpa [#allocation4], 0
    // Predicated region
    $region2: #{tpu_custom_call.1} parent=1 // pred_check
      _
    $region3: #{tpu_custom_call.1} parent=1 // pred_check_branch
      %11 = sbr.rel (0) target = $region5
    $region4: #{tpu_custom_call.1} parent=1 // pred_region
      %s13 = ssub.s32 32, 32
      %14 = vsyncadd [#allocation3], %s13
      %s16 = sshll.u32 [#allocation2], 4
      %s17 = int_to_ptr.vmem [resolvable:$true] %s16
      %19 = dma.hbm_to_vmem [thread:$0]  %s0, 32, %s17, [#allocation3]
    $region5: #{tpu_custom_call.1} parent=1 // pred_fallthru
      _
    // Predicated region
    $region6: #{tpu_custom_call.1} parent=1 // pred_check
      _
    $region7: #{tpu_custom_call.1} parent=1 // pred_check_branch
      %21 = sbr.rel (0) target = $region9
    $region8: #{tpu_custom_call.1} parent=1 // pred_region
      %s23 = ssub.s32 4096, 4096
      %24 = vsyncadd [#allocation6], %s23
      %s25 = sshll.u32 [#allocation5], 4
      %s26 = int_to_ptr.vmem [resolvable:$true] %s25
      %31 = dma.hbm_to_vmem [thread:$0]  %s1, 4096, %s26, [#allocation6], 512, 512, 32
    $region9: #{tpu_custom_call.1} parent=1 // pred_fallthru
      _
    // Predicated region
    $region10: #{tpu_custom_call.1} parent=1 // pred_check
      _
    $region11: #{tpu_custom_call.1} parent=1 // pred_check_branch
      %33 = sbr.rel (0) target = $region13
    $region12: #{tpu_custom_call.1} parent=1 // pred_region
      %34 = dma.done [#allocation3], 32
    $region13: #{tpu_custom_call.1} parent=1 // pred_fallthru
      _
    // Predicated region
    $region14: #{tpu_custom_call.1} parent=1 // pred_check
      _
    $region15: #{tpu_custom_call.1} parent=1 // pred_check_branch
      %36 = sbr.rel (0) target = $region17
    $region16: #{tpu_custom_call.1} parent=1 // pred_region
      %37 = dma.done [#allocation6], 4096
    $region17: #{tpu_custom_call.1} parent=1 // pred_fallthru
      _
    %v39 = vld [vmem:[#allocation5 + $0x20] sm:$0xff]
    %v40 = vld [vmem:[#allocation5 + $0x28] sm:$0xff]
    %v41 = vld [vmem:[#allocation5 + $0x40] sm:$0xff]
    %v42 = vld [vmem:[#allocation5 + $0x48] sm:$0xff]
    %v43 = vld [vmem:[#allocation5 + $0x50] sm:$0xff]
    %v44 = vld [vmem:[#allocation5 + $0x58] sm:$0xff]
    %v45 = vld [vmem:[#allocation5 + $0x60] sm:$0xff]
    %v46 = vld [vmem:[#allocation5 + $0x68] sm:$0xff]
    %v47 = vld [vmem:[#allocation5 + $0x70] sm:$0xff]
    %v48 = vld [vmem:[#allocation5 + $0x78] sm:$0xff]
    %v49 = vld [vmem:[#allocation5 + $0x80] sm:$0xff]
    %v50 = vld [vmem:[#allocation5 + $0x88] sm:$0xff]
    %v51 = vld [vmem:[#allocation5 + $0x90] sm:$0xf]
    %v52 = vld [vmem:[#allocation5 + $0xa0] sm:$0xff]
    %v53 = vld [vmem:[#allocation5 + $0xa8] sm:$0xff]
    %v54 = vld [vmem:[#allocation5 + $0xb0] sm:$0xf]
    %v55 = vld [vmem:[#allocation5 + $0xc0] sm:$0xff]
    %v56 = vld [vmem:[#allocation5 + $0xc8] sm:$0xff]
    %v57 = vld [vmem:[#allocation5 + $0xd0] sm:$0xf]
    %v58 = vld [vmem:[#allocation5 + $0xe0] sm:$0xff]
    %v59 = vld [vmem:[#allocation5 + $0xe8] sm:$0xff]
    %v60 = vld [vmem:[#allocation5 + $0xf0] sm:$0xf]
    %v61 = vld [vmem:[#allocation2] sm:$0x3]
    %v62 = vpack.c.bf16 %v61, %v61
    %v63 = vld [vmem:[#allocation5] sm:$0x11]
    %v64 = vld [vmem:[#allocation5 + $0x8] sm:$0x11]
    %v65 = vunpack.c.l.bf16 %v63
    %v66 = vunpack.c.h.bf16 %v63
    %v67 = vunpack.c.l.bf16 %v64
    %v68 = vunpack.c.h.bf16 %v64
    %v69 = vlaneseq
    %v70 = vshrl.u32 %v69, 7
    %v71 = vsub.s32 0, %v70
    %v72 = vrot.slane %v65, %v71
    %v73 = vlaneseq
    %v74 = vshrl.u32 %v73, 7
    %v75 = vsub.s32 0, %v74
    %v76 = vrot.slane %v66, %v75
    %v77 = vlaneseq
    %v78 = vshrl.u32 %v77, 7
    %v79 = vsub.s32 0, %v78
    %v80 = vrot.slane %v67, %v79
    %v81 = vlaneseq
    %v82 = vshrl.u32 %v81, 7
    %v83 = vsub.s32 0, %v82
    %v84 = vrot.slane %v68, %v83
    %v87 = vunpack.c.l.b16 %v39
    %v88 = vunpack.c.h.b16 %v39
    %v89 = vunpack.c.l.b16 %v40
    %v90 = vunpack.c.h.b16 %v40
    %v91 = vpack.c.b16 %v87, %v87
    %v92 = vpack.c.b16 %v88, %v88
    %v93 = vpack.c.b16 %v89, %v89
    %v94 = vpack.c.b16 %v90, %v90
    %vm95 = vcmask 64512
    %v97 = vsel %vm95, %v62, 0
    %vm99 = vcmask 1043456
    %v101 = vsel %vm99, %v91, 0
    %v104 = vsel %vm99, %v92, 0
    %v107 = vsel %vm99, %v93, 0
    %v110 = vsel %vm99, %v94, 0
    %112 = vmatprep.subr.bf16.mxu0 %v104
    %113 = vmatpush1.bf16.msra.mxu0 %v101
    %114 = vmatprep.subr.bf16.mxu0 0
    %115 = vmatpush1.bf16.msra.mxu0 0
    %116 = vmatprep.subr.bf16.mxu0 0
    %117 = vmatpush1.bf16.msra.mxu0 0
    %118 = vmatprep.subr.bf16.mxu0 0
    %119 = vmatpush1.bf16.msra.mxu0 0
    %120 = vmatprep.subr.bf16.mxu0 0
    %121 = vmatpush1.bf16.msra.mxu0 0
    %122 = vmatprep.subr.bf16.mxu0 0
    %123 = vmatpush1.bf16.msra.mxu0 0
    %124 = vmatprep.subr.bf16.mxu0 0
    %125 = vmatpush1.bf16.msra.mxu0 0
    %126 = vmatprep.subr.bf16.mxu0 0
    %127 = vmatpush1.bf16.msra.mxu0 0
    %128 = vmatprep.subr.bf16.mxu0 0
    %129 = vmatpush1.bf16.msra.mxu0 0
    %130 = vmatprep.subr.bf16.mxu0 0
    %131 = vmatpush1.bf16.msra.mxu0 0
    %132 = vmatprep.subr.bf16.mxu0 0
    %133 = vmatpush1.bf16.msra.mxu0 0
    %134 = vmatprep.subr.bf16.mxu0 0
    %135 = vmatpush1.bf16.msra.mxu0 0
    %136 = vmatprep.subr.bf16.mxu0 0
    %137 = vmatpush1.bf16.msra.mxu0 0
    %138 = vmatprep.subr.bf16.mxu0 0
    %139 = vmatpush1.bf16.msra.mxu0 0
    %140 = vmatprep.subr.bf16.mxu0 0
    %141 = vmatpush1.bf16.msra.mxu0 0
    %142 = vmatprep.subr.bf16.mxu0 0
    %143 = vmatpush1.bf16.msra.mxu0 0
    %144 = vmatprep.mubr.bf16.mxu0 0
    %145 = vmatmul.mubr.bf16.gmra.mrb[0].mxu0 %v97
    %v146 = vpop.f32.mrb[0].mxu0
    %v147 = vadd.f32 %v72, %v146
    %v148 = vpop.f32.mrb[0].mxu0
    %v149 = vadd.f32 %v76, %v148
    %v150 = vpop.f32.mrb[0].mxu0
    %v151 = vpop.f32.mrb[0].mxu0
    %152 = vdwg.mxu0
    %153 = vmatprep.subr.bf16.mxu0 %v110
    %154 = vmatpush1.bf16.msra.mxu0 %v107
    %155 = vmatprep.subr.bf16.mxu0 0
    %156 = vmatpush1.bf16.msra.mxu0 0
    %157 = vmatprep.subr.bf16.mxu0 0
    %158 = vmatpush1.bf16.msra.mxu0 0
    %159 = vmatprep.subr.bf16.mxu0 0
    %160 = vmatpush1.bf16.msra.mxu0 0
    %161 = vmatprep.subr.bf16.mxu0 0
    %162 = vmatpush1.bf16.msra.mxu0 0
    %163 = vmatprep.subr.bf16.mxu0 0
    %164 = vmatpush1.bf16.msra.mxu0 0
    %165 = vmatprep.subr.bf16.mxu0 0
    %166 = vmatpush1.bf16.msra.mxu0 0
    %167 = vmatprep.subr.bf16.mxu0 0
    %168 = vmatpush1.bf16.msra.mxu0 0
    %169 = vmatprep.subr.bf16.mxu0 0
    %170 = vmatpush1.bf16.msra.mxu0 0
    %171 = vmatprep.subr.bf16.mxu0 0
    %172 = vmatpush1.bf16.msra.mxu0 0
    %173 = vmatprep.subr.bf16.mxu0 0
    %174 = vmatpush1.bf16.msra.mxu0 0
    %175 = vmatprep.subr.bf16.mxu0 0
    %176 = vmatpush1.bf16.msra.mxu0 0
    %177 = vmatprep.subr.bf16.mxu0 0
    %178 = vmatpush1.bf16.msra.mxu0 0
    %179 = vmatprep.subr.bf16.mxu0 0
    %180 = vmatpush1.bf16.msra.mxu0 0
    %181 = vmatprep.subr.bf16.mxu0 0
    %182 = vmatpush1.bf16.msra.mxu0 0
    %183 = vmatprep.subr.bf16.mxu0 0
    %184 = vmatpush1.bf16.msra.mxu0 0
    %185 = vmatprep.mubr.bf16.mxu0 0
    %186 = vmatmul.mubr.bf16.gmra.mrb[0].mxu0 %v97
    %v187 = vpop.f32.mrb[0].mxu0
    %v188 = vadd.f32 %v80, %v187
    %v189 = vpop.f32.mrb[0].mxu0
    %v190 = vadd.f32 %v84, %v189
    %v191 = vpop.f32.mrb[0].mxu0
    %v192 = vpop.f32.mrb[0].mxu0
    %193 = vdwg.mxu0
    %v194 = vlaneseq
    %v195 = vshrl.u32 %v194, 7
    %v196 = vsub.s32 1, %v195
    %v197 = vrot.slane %v65, %v196
    %v198 = vlaneseq
    %v199 = vshrl.u32 %v198, 7
    %v200 = vsub.s32 1, %v199
    %v201 = vrot.slane %v66, %v200
    %v202 = vlaneseq
    %v203 = vshrl.u32 %v202, 7
    %v204 = vsub.s32 1, %v203
    %v205 = vrot.slane %v67, %v204
    %v206 = vlaneseq
    %v207 = vshrl.u32 %v206, 7
    %v208 = vsub.s32 1, %v207
    %v209 = vrot.slane %v68, %v208
    %v210 = vld [vmem:[#allocation5] sm:$0x2]
    %v211 = vunpack.c.l.bf16 %v210
    %v212 = vlaneseq
    %v213 = vshrl.u32 %v212, 7
    %v214 = vsub.s32 2, %v213
    %v215 = vrot.slane %v211, %v214
    %v216 = vlaneseq
    %v217 = vand.u32 %v216, 127
    %vm218 = vcmp.lt.s32.totalorder %v217, 4
    %vm219 = vcmp.ge.s32.totalorder %v217, 4
    %vm220 = vcmp.lt.s32.totalorder %v217, 8
    %vm221 = vmand %vm219, %vm220
    %v222 = vadd.f32 %v147, 0.0
    %v223 = vadd.f32 %v149, 0.0
    %v224 = vadd.f32 %v188, 0.0
    %v225 = vadd.f32 %v190, 0.0
    %v226 = vxor.u32 %v222, 2147483648
    %v227 = vmul.f32 %v226, 1.442695
    %v228 = vpow.pop %v227
    %v229 = vadd.f32 %v228, 1.0
    %v230 = vrcp.pop %v229
    %v231 = vmul.f32 1.0, %v230
    %v232 = vxor.u32 %v223, 2147483648
    %v233 = vmul.f32 %v232, 1.442695
    %v234 = vpow.pop %v233
    %v235 = vadd.f32 %v234, 1.0
    %v236 = vrcp.pop %v235
    %v237 = vmul.f32 1.0, %v236
    %v238 = vtanh.pop %v224
    %v239 = vxor.u32 %v225, 2147483648
    %v240 = vmul.f32 %v239, 1.442695
    %v241 = vpow.pop %v240
    %v242 = vadd.f32 %v241, 1.0
    %v243 = vrcp.pop %v242
    %v244 = vmul.f32 1.0, %v243
    %v245 = vmul.f32 %v237, 0.0
    %v246 = vmul.f32 %v231, %v238
    %v247 = vadd.f32 %v245, %v246
    %v248 = vtanh.pop %v247
    %v249 = vmul.f32 %v244, %v248
    %v250 = vpack.c.bf16 %v249, %v249
    %v259 = vunpack.c.l.b16 %v41
    %v260 = vunpack.c.h.b16 %v41
    %v261 = vunpack.c.l.b16 %v42
    %v262 = vunpack.c.h.b16 %v42
    %v263 = vunpack.c.l.b16 %v43
    %v264 = vunpack.c.h.b16 %v43
    %v265 = vunpack.c.l.b16 %v44
    %v266 = vunpack.c.h.b16 %v44
    %v267 = vunpack.c.l.b16 %v45
    %v268 = vunpack.c.h.b16 %v45
    %v269 = vunpack.c.l.b16 %v46
    %v270 = vunpack.c.h.b16 %v46
    %v271 = vunpack.c.l.b16 %v47
    %v272 = vunpack.c.h.b16 %v47
    %v273 = vunpack.c.l.b16 %v48
    %v274 = vunpack.c.h.b16 %v48
    %v275 = vpack.c.b16 %v267, %v259
    %v276 = vpack.c.b16 %v268, %v260
    %v277 = vpack.c.b16 %v269, %v261
    %v278 = vpack.c.b16 %v270, %v262
    %v279 = vpack.c.b16 %v271, %v263
    %v280 = vpack.c.b16 %v272, %v264
    %v281 = vpack.c.b16 %v273, %v265
    %v282 = vpack.c.b16 %v274, %v266
    %vm291 = vcmask 130048
    %v293 = vsel %vm291, %v250, 0
    %295 = vmatprep.subr.bf16.mxu0 %v276
    %296 = vmatpush1.bf16.msra.mxu0 %v275
    %297 = vmatprep.subr.bf16.mxu0 0
    %298 = vmatpush1.bf16.msra.mxu0 0
    %299 = vmatprep.subr.bf16.mxu0 0
    %300 = vmatpush1.bf16.msra.mxu0 0
    %301 = vmatprep.subr.bf16.mxu0 0
    %302 = vmatpush1.bf16.msra.mxu0 0
    %303 = vmatprep.subr.bf16.mxu0 0
    %304 = vmatpush1.bf16.msra.mxu0 0
    %305 = vmatprep.subr.bf16.mxu0 0
    %306 = vmatpush1.bf16.msra.mxu0 0
    %307 = vmatprep.subr.bf16.mxu0 0
    %308 = vmatpush1.bf16.msra.mxu0 0
    %309 = vmatprep.subr.bf16.mxu0 0
    %310 = vmatpush1.bf16.msra.mxu0 0
    %311 = vmatprep.subr.bf16.mxu0 0
    %312 = vmatpush1.bf16.msra.mxu0 0
    %313 = vmatprep.subr.bf16.mxu0 0
    %314 = vmatpush1.bf16.msra.mxu0 0
    %315 = vmatprep.subr.bf16.mxu0 0
    %316 = vmatpush1.bf16.msra.mxu0 0
    %317 = vmatprep.subr.bf16.mxu0 0
    %318 = vmatpush1.bf16.msra.mxu0 0
    %319 = vmatprep.subr.bf16.mxu0 0
    %320 = vmatpush1.bf16.msra.mxu0 0
    %321 = vmatprep.subr.bf16.mxu0 0
    %322 = vmatpush1.bf16.msra.mxu0 0
    %323 = vmatprep.subr.bf16.mxu0 0
    %324 = vmatpush1.bf16.msra.mxu0 0
    %325 = vmatprep.subr.bf16.mxu0 0
    %326 = vmatpush1.bf16.msra.mxu0 0
    %327 = vmatprep.mubr.bf16.mxu0 0
    %328 = vmatmul.mubr.bf16.gmra.mrb[0].mxu0 %v293
    %v329 = vpop.f32.mrb[0].mxu0
    %v330 = vadd.f32 0.0, %v329
    %v331 = vpop.f32.mrb[0].mxu0
    %v332 = vadd.f32 0.0, %v331
    %v333 = vpop.f32.mrb[0].mxu0
    %v334 = vpop.f32.mrb[0].mxu0
    %335 = vdwg.mxu0
    %336 = vmatprep.subr.bf16.mxu0 %v278
    %337 = vmatpush1.bf16.msra.mxu0 %v277
    %338 = vmatprep.subr.bf16.mxu0 0
    %339 = vmatpush1.bf16.msra.mxu0 0
    %340 = vmatprep.subr.bf16.mxu0 0
    %341 = vmatpush1.bf16.msra.mxu0 0
    %342 = vmatprep.subr.bf16.mxu0 0
    %343 = vmatpush1.bf16.msra.mxu0 0
    %344 = vmatprep.subr.bf16.mxu0 0
    %345 = vmatpush1.bf16.msra.mxu0 0
    %346 = vmatprep.subr.bf16.mxu0 0
    %347 = vmatpush1.bf16.msra.mxu0 0
    %348 = vmatprep.subr.bf16.mxu0 0
    %349 = vmatpush1.bf16.msra.mxu0 0
    %350 = vmatprep.subr.bf16.mxu0 0
    %351 = vmatpush1.bf16.msra.mxu0 0
    %352 = vmatprep.subr.bf16.mxu0 0
    %353 = vmatpush1.bf16.msra.mxu0 0
    %354 = vmatprep.subr.bf16.mxu0 0
    %355 = vmatpush1.bf16.msra.mxu0 0
    %356 = vmatprep.subr.bf16.mxu0 0
    %357 = vmatpush1.bf16.msra.mxu0 0
    %358 = vmatprep.subr.bf16.mxu0 0
    %359 = vmatpush1.bf16.msra.mxu0 0
    %360 = vmatprep.subr.bf16.mxu0 0
    %361 = vmatpush1.bf16.msra.mxu0 0
    %362 = vmatprep.subr.bf16.mxu0 0
    %363 = vmatpush1.bf16.msra.mxu0 0
    %364 = vmatprep.subr.bf16.mxu0 0
    %365 = vmatpush1.bf16.msra.mxu0 0
    %366 = vmatprep.subr.bf16.mxu0 0
    %367 = vmatpush1.bf16.msra.mxu0 0
    %368 = vmatprep.mubr.bf16.mxu0 0
    %369 = vmatmul.mubr.bf16.gmra.mrb[0].mxu0 %v293
    %v370 = vpop.f32.mrb[0].mxu0
    %v371 = vadd.f32 0.0, %v370
    %v372 = vpop.f32.mrb[0].mxu0
    %v373 = vadd.f32 0.0, %v372
    %v374 = vpop.f32.mrb[0].mxu0
    %v375 = vpop.f32.mrb[0].mxu0
    %376 = vdwg.mxu0
    %377 = vmatprep.subr.bf16.mxu0 %v280
    %378 = vmatpush1.bf16.msra.mxu0 %v279
    %379 = vmatprep.subr.bf16.mxu0 0
    %380 = vmatpush1.bf16.msra.mxu0 0
    %381 = vmatprep.subr.bf16.mxu0 0
    %382 = vmatpush1.bf16.msra.mxu0 0
    %383 = vmatprep.subr.bf16.mxu0 0
    %384 = vmatpush1.bf16.msra.mxu0 0
    %385 = vmatprep.subr.bf16.mxu0 0
    %386 = vmatpush1.bf16.msra.mxu0 0
    %387 = vmatprep.subr.bf16.mxu0 0
    %388 = vmatpush1.bf16.msra.mxu0 0
    %389 = vmatprep.subr.bf16.mxu0 0
    %390 = vmatpush1.bf16.msra.mxu0 0
    %391 = vmatprep.subr.bf16.mxu0 0
    %392 = vmatpush1.bf16.msra.mxu0 0
    %393 = vmatprep.subr.bf16.mxu0 0
    %394 = vmatpush1.bf16.msra.mxu0 0
    %395 = vmatprep.subr.bf16.mxu0 0
    %396 = vmatpush1.bf16.msra.mxu0 0
    %397 = vmatprep.subr.bf16.mxu0 0
    %398 = vmatpush1.bf16.msra.mxu0 0
    %399 = vmatprep.subr.bf16.mxu0 0
    %400 = vmatpush1.bf16.msra.mxu0 0
    %401 = vmatprep.subr.bf16.mxu0 0
    %402 = vmatpush1.bf16.msra.mxu0 0
    %403 = vmatprep.subr.bf16.mxu0 0
    %404 = vmatpush1.bf16.msra.mxu0 0
    %405 = vmatprep.subr.bf16.mxu0 0
    %406 = vmatpush1.bf16.msra.mxu0 0
    %407 = vmatprep.subr.bf16.mxu0 0
    %408 = vmatpush1.bf16.msra.mxu0 0
    %409 = vmatprep.mubr.bf16.mxu0 0
    %410 = vmatmul.mubr.bf16.gmra.mrb[0].mxu0 %v293
    %v411 = vpop.f32.mrb[0].mxu0
    %v412 = vadd.f32 0.0, %v411
    %v413 = vpop.f32.mrb[0].mxu0
    %v414 = vadd.f32 0.0, %v413
    %v415 = vpop.f32.mrb[0].mxu0
    %v416 = vpop.f32.mrb[0].mxu0
    %417 = vdwg.mxu0
    %418 = vmatprep.subr.bf16.mxu0 %v282
    %419 = vmatpush1.bf16.msra.mxu0 %v281
    %420 = vmatprep.subr.bf16.mxu0 0
    %421 = vmatpush1.bf16.msra.mxu0 0
    %422 = vmatprep.subr.bf16.mxu0 0
    %423 = vmatpush1.bf16.msra.mxu0 0
    %424 = vmatprep.subr.bf16.mxu0 0
    %425 = vmatpush1.bf16.msra.mxu0 0
    %426 = vmatprep.subr.bf16.mxu0 0
    %427 = vmatpush1.bf16.msra.mxu0 0
    %428 = vmatprep.subr.bf16.mxu0 0
    %429 = vmatpush1.bf16.msra.mxu0 0
    %430 = vmatprep.subr.bf16.mxu0 0
    %431 = vmatpush1.bf16.msra.mxu0 0
    %432 = vmatprep.subr.bf16.mxu0 0
    %433 = vmatpush1.bf16.msra.mxu0 0
    %434 = vmatprep.subr.bf16.mxu0 0
    %435 = vmatpush1.bf16.msra.mxu0 0
    %436 = vmatprep.subr.bf16.mxu0 0
    %437 = vmatpush1.bf16.msra.mxu0 0
    %438 = vmatprep.subr.bf16.mxu0 0
    %439 = vmatpush1.bf16.msra.mxu0 0
    %440 = vmatprep.subr.bf16.mxu0 0
    %441 = vmatpush1.bf16.msra.mxu0 0
    %442 = vmatprep.subr.bf16.mxu0 0
    %443 = vmatpush1.bf16.msra.mxu0 0
    %444 = vmatprep.subr.bf16.mxu0 0
    %445 = vmatpush1.bf16.msra.mxu0 0
    %446 = vmatprep.subr.bf16.mxu0 0
    %447 = vmatpush1.bf16.msra.mxu0 0
    %448 = vmatprep.subr.bf16.mxu0 0
    %449 = vmatpush1.bf16.msra.mxu0 0
    %450 = vmatprep.mubr.bf16.mxu0 0
    %451 = vmatmul.mubr.bf16.gmra.mrb[0].mxu0 %v293
    %v452 = vpop.f32.mrb[0].mxu0
    %v453 = vadd.f32 0.0, %v452
    %v454 = vpop.f32.mrb[0].mxu0
    %v455 = vadd.f32 0.0, %v454
    %v456 = vpop.f32.mrb[0].mxu0
    %v457 = vpop.f32.mrb[0].mxu0
    %458 = vdwg.mxu0
    %v459 = vadd.f32 %v412, %v197
    %v460 = vadd.f32 %v414, %v201
    %v461 = vadd.f32 %v453, %v205
    %v462 = vadd.f32 %v455, %v209
    %v463 = vadd.f32 %v459, 0.0
    %v464 = vadd.f32 %v460, 0.0
    %v465 = vadd.f32 %v461, 0.0
    %v466 = vadd.f32 %v462, 0.0
    %v467 = vxor.u32 %v463, 2147483648
    %v468 = vmul.f32 %v467, 1.442695
    %v469 = vpow.pop %v468
    %v470 = vadd.f32 %v469, 1.0
    %v471 = vrcp.pop %v470
    %v472 = vmul.f32 1.0, %v471
    %v473 = vxor.u32 %v464, 2147483648
    %v474 = vmul.f32 %v473, 1.442695
    %v475 = vpow.pop %v474
    %v476 = vadd.f32 %v475, 1.0
    %v477 = vrcp.pop %v476
    %v478 = vmul.f32 1.0, %v477
    %v479 = vtanh.pop %v465
    %v480 = vxor.u32 %v466, 2147483648
    %v481 = vmul.f32 %v480, 1.442695
    %v482 = vpow.pop %v481
    %v483 = vadd.f32 %v482, 1.0
    %v484 = vrcp.pop %v483
    %v485 = vmul.f32 1.0, %v484
    %v486 = vmul.f32 %v478, 0.0
    %v487 = vmul.f32 %v472, %v479
    %v488 = vadd.f32 %v486, %v487
    %v489 = vtanh.pop %v488
    %v490 = vmul.f32 %v485, %v489
    %v491 = vpack.c.bf16 %v490, %v490
    %v504 = vunpack.c.l.b16 %v49
    %v505 = vunpack.c.h.b16 %v49
    %v506 = vunpack.c.l.b16 %v50
    %v507 = vunpack.c.h.b16 %v50
    %v508 = vunpack.c.l.b16 %v51
    %v509 = vunpack.c.l.b16 %v52
    %v510 = vunpack.c.h.b16 %v52
    %v511 = vunpack.c.l.b16 %v53
    %v512 = vunpack.c.h.b16 %v53
    %v513 = vunpack.c.l.b16 %v54
    %v514 = vunpack.c.l.b16 %v55
    %v515 = vunpack.c.h.b16 %v55
    %v516 = vunpack.c.l.b16 %v56
    %v517 = vunpack.c.h.b16 %v56
    %v518 = vunpack.c.l.b16 %v57
    %v519 = vunpack.c.l.b16 %v58
    %v520 = vunpack.c.h.b16 %v58
    %v521 = vunpack.c.l.b16 %v59
    %v522 = vunpack.c.h.b16 %v59
    %v523 = vunpack.c.l.b16 %v60
    %v524 = vpack.c.b16 %v509, %v504
    %v525 = vpack.c.b16 %v510, %v505
    %v526 = vpack.c.b16 %v511, %v506
    %v527 = vpack.c.b16 %v512, %v507
    %v528 = vpack.c.b16 %v513, %v508
    %v529 = vpack.c.b16 %v519, %v514
    %v530 = vpack.c.b16 %v520, %v515
    %v531 = vpack.c.b16 %v521, %v516
    %v532 = vpack.c.b16 %v522, %v517
    %v533 = vpack.c.b16 %v523, %v518
    %vm544 = vcmask 261120
    %v546 = vsel %vm544, %v491, 0
    %548 = vmatprep.subr.bf16.mxu0 %v525
    %549 = vmatpush1.bf16.msra.mxu0 %v524
    %550 = vmatprep.subr.bf16.mxu0 %v530
    %551 = vmatpush1.bf16.msra.mxu0 %v529
    %552 = vmatprep.subr.bf16.mxu0 0
    %553 = vmatpush1.bf16.msra.mxu0 0
    %554 = vmatprep.subr.bf16.mxu0 0
    %555 = vmatpush1.bf16.msra.mxu0 0
    %556 = vmatprep.subr.bf16.mxu0 0
    %557 = vmatpush1.bf16.msra.mxu0 0
    %558 = vmatprep.subr.bf16.mxu0 0
    %559 = vmatpush1.bf16.msra.mxu0 0
    %560 = vmatprep.subr.bf16.mxu0 0
    %561 = vmatpush1.bf16.msra.mxu0 0
    %562 = vmatprep.subr.bf16.mxu0 0
    %563 = vmatpush1.bf16.msra.mxu0 0
    %564 = vmatprep.subr.bf16.mxu0 0
    %565 = vmatpush1.bf16.msra.mxu0 0
    %566 = vmatprep.subr.bf16.mxu0 0
    %567 = vmatpush1.bf16.msra.mxu0 0
    %568 = vmatprep.subr.bf16.mxu0 0
    %569 = vmatpush1.bf16.msra.mxu0 0
    %570 = vmatprep.subr.bf16.mxu0 0
    %571 = vmatpush1.bf16.msra.mxu0 0
    %572 = vmatprep.subr.bf16.mxu0 0
    %573 = vmatpush1.bf16.msra.mxu0 0
    %574 = vmatprep.subr.bf16.mxu0 0
    %575 = vmatpush1.bf16.msra.mxu0 0
    %576 = vmatprep.subr.bf16.mxu0 0
    %577 = vmatpush1.bf16.msra.mxu0 0
    %578 = vmatprep.subr.bf16.mxu0 0
    %579 = vmatpush1.bf16.msra.mxu0 0
    %580 = vmatprep.mubr.bf16.mxu0 0
    %581 = vmatmul.mubr.bf16.gmra.mrb[0].mxu0 %v546
    %v582 = vpop.f32.mrb[0].mxu0
    %v583 = vadd.f32 0.0, %v582
    %v584 = vpop.f32.mrb[0].mxu0
    %v585 = vadd.f32 0.0, %v584
    %v586 = vpop.f32.mrb[0].mxu0
    %v587 = vpop.f32.mrb[0].mxu0
    %588 = vdwg.mxu0
    %589 = vmatprep.subr.bf16.mxu0 %v527
    %590 = vmatpush1.bf16.msra.mxu0 %v526
    %591 = vmatprep.subr.bf16.mxu0 %v532
    %592 = vmatpush1.bf16.msra.mxu0 %v531
    %593 = vmatprep.subr.bf16.mxu0 0
    %594 = vmatpush1.bf16.msra.mxu0 0
    %595 = vmatprep.subr.bf16.mxu0 0
    %596 = vmatpush1.bf16.msra.mxu0 0
    %597 = vmatprep.subr.bf16.mxu0 0
    %598 = vmatpush1.bf16.msra.mxu0 0
    %599 = vmatprep.subr.bf16.mxu0 0
    %600 = vmatpush1.bf16.msra.mxu0 0
    %601 = vmatprep.subr.bf16.mxu0 0
    %602 = vmatpush1.bf16.msra.mxu0 0
    %603 = vmatprep.subr.bf16.mxu0 0
    %604 = vmatpush1.bf16.msra.mxu0 0
    %605 = vmatprep.subr.bf16.mxu0 0
    %606 = vmatpush1.bf16.msra.mxu0 0
    %607 = vmatprep.subr.bf16.mxu0 0
    %608 = vmatpush1.bf16.msra.mxu0 0
    %609 = vmatprep.subr.bf16.mxu0 0
    %610 = vmatpush1.bf16.msra.mxu0 0
    %611 = vmatprep.subr.bf16.mxu0 0
    %612 = vmatpush1.bf16.msra.mxu0 0
    %613 = vmatprep.subr.bf16.mxu0 0
    %614 = vmatpush1.bf16.msra.mxu0 0
    %615 = vmatprep.subr.bf16.mxu0 0
    %616 = vmatpush1.bf16.msra.mxu0 0
    %617 = vmatprep.subr.bf16.mxu0 0
    %618 = vmatpush1.bf16.msra.mxu0 0
    %619 = vmatprep.subr.bf16.mxu0 0
    %620 = vmatpush1.bf16.msra.mxu0 0
    %621 = vmatprep.mubr.bf16.mxu0 0
    %622 = vmatmul.mubr.bf16.gmra.mrb[0].mxu0 %v546
    %v623 = vpop.f32.mrb[0].mxu0
    %v624 = vadd.f32 0.0, %v623
    %v625 = vpop.f32.mrb[0].mxu0
    %v626 = vadd.f32 0.0, %v625
    %v627 = vpop.f32.mrb[0].mxu0
    %v628 = vpop.f32.mrb[0].mxu0
    %629 = vdwg.mxu0
    %630 = vmatprep.subr.bf16.mxu0 0
    %631 = vmatpush1.bf16.msra.mxu0 %v528
    %632 = vmatprep.subr.bf16.mxu0 0
    %633 = vmatpush1.bf16.msra.mxu0 %v533
    %634 = vmatprep.subr.bf16.mxu0 0
    %635 = vmatpush1.bf16.msra.mxu0 0
    %636 = vmatprep.subr.bf16.mxu0 0
    %637 = vmatpush1.bf16.msra.mxu0 0
    %638 = vmatprep.subr.bf16.mxu0 0
    %639 = vmatpush1.bf16.msra.mxu0 0
    %640 = vmatprep.subr.bf16.mxu0 0
    %641 = vmatpush1.bf16.msra.mxu0 0
    %642 = vmatprep.subr.bf16.mxu0 0
    %643 = vmatpush1.bf16.msra.mxu0 0
    %644 = vmatprep.subr.bf16.mxu0 0
    %645 = vmatpush1.bf16.msra.mxu0 0
    %646 = vmatprep.subr.bf16.mxu0 0
    %647 = vmatpush1.bf16.msra.mxu0 0
    %648 = vmatprep.subr.bf16.mxu0 0
    %649 = vmatpush1.bf16.msra.mxu0 0
    %650 = vmatprep.subr.bf16.mxu0 0
    %651 = vmatpush1.bf16.msra.mxu0 0
    %652 = vmatprep.subr.bf16.mxu0 0
    %653 = vmatpush1.bf16.msra.mxu0 0
    %654 = vmatprep.subr.bf16.mxu0 0
    %655 = vmatpush1.bf16.msra.mxu0 0
    %656 = vmatprep.subr.bf16.mxu0 0
    %657 = vmatpush1.bf16.msra.mxu0 0
    %658 = vmatprep.subr.bf16.mxu0 0
    %659 = vmatpush1.bf16.msra.mxu0 0
    %660 = vmatprep.subr.bf16.mxu0 0
    %661 = vmatpush1.bf16.msra.mxu0 0
    %662 = vmatprep.mubr.bf16.mxu0 0
    %663 = vmatmul.mubr.bf16.gmra.mrb[0].mxu0 %v546
    %v664 = vpop.f32.mrb[0].mxu0
    %v665 = vadd.f32 0.0, %v664
    %v666 = vpop.f32.mrb[0].mxu0
    %v667 = vpop.f32.mrb[0].mxu0
    %v668 = vpop.f32.mrb[0].mxu0
    %669 = vdwg.mxu0
    %v670 = vadd.f32 %v665, %v215
    %vm671 = vcmp.gt.f32.partialorder %v670, 0.0
    %v672 = vmul.f32 %v670, %v670
    %v673 = vadd.f32 %v672, 1.0
    %v674 = vrsqrt.pop %v673
    %v675 = vmul.f32 %v670, %v674
    %v676 = vsel %vm671, %v670, %v675
    %v677 = vadd.f32 %v676, 1.005
    %v678 = vtanh.pop %v670
    %v679 = vmul.f32 %v678, 0.999
    %v680 = vadd.f32 %v679, 1.0
    %v681 = vmul.f32 %v680, 0.5
    %v682 = vsel %vm221, %v677, %v681
    %v683 = vsel %vm218, %v670, %v682
    %684 = vst [vmem:[#allocation7] sm:$0x3] %v683
    %v685 = vadd.f32 %v147, %v330
    %v686 = vadd.f32 %v149, %v332
    %v687 = vadd.f32 %v188, %v371
    %v688 = vadd.f32 %v190, %v373
    %v689 = vxor.u32 %v685, 2147483648
    %v690 = vmul.f32 %v689, 1.442695
    %v691 = vpow.pop %v690
    %v692 = vadd.f32 %v691, 1.0
    %v693 = vrcp.pop %v692
    %v694 = vmul.f32 1.0, %v693
    %v695 = vxor.u32 %v686, 2147483648
    %v696 = vmul.f32 %v695, 1.442695
    %v697 = vpow.pop %v696
    %v698 = vadd.f32 %v697, 1.0
    %v699 = vrcp.pop %v698
    %v700 = vmul.f32 1.0, %v699
    %v701 = vtanh.pop %v687
    %v702 = vxor.u32 %v688, 2147483648
    %v703 = vmul.f32 %v702, 1.442695
    %v704 = vpow.pop %v703
    %v705 = vadd.f32 %v704, 1.0
    %v706 = vrcp.pop %v705
    %v707 = vmul.f32 1.0, %v706
    %v708 = vmul.f32 %v700, %v247
    %v709 = vmul.f32 %v694, %v701
    %v710 = vadd.f32 %v708, %v709
    %v711 = vtanh.pop %v710
    %v712 = vmul.f32 %v707, %v711
    %v713 = vpack.c.bf16 %v712, %v712
    %v715 = vsel %vm291, %v713, 0
    %717 = vmatprep.subr.bf16.mxu0 %v276
    %718 = vmatpush1.bf16.msra.mxu0 %v275
    %719 = vmatprep.subr.bf16.mxu0 0
    %720 = vmatpush1.bf16.msra.mxu0 0
    %721 = vmatprep.subr.bf16.mxu0 0
    %722 = vmatpush1.bf16.msra.mxu0 0
    %723 = vmatprep.subr.bf16.mxu0 0
    %724 = vmatpush1.bf16.msra.mxu0 0
    %725 = vmatprep.subr.bf16.mxu0 0
    %726 = vmatpush1.bf16.msra.mxu0 0
    %727 = vmatprep.subr.bf16.mxu0 0
    %728 = vmatpush1.bf16.msra.mxu0 0
    %729 = vmatprep.subr.bf16.mxu0 0
    %730 = vmatpush1.bf16.msra.mxu0 0
    %731 = vmatprep.subr.bf16.mxu0 0
    %732 = vmatpush1.bf16.msra.mxu0 0
    %733 = vmatprep.subr.bf16.mxu0 0
    %734 = vmatpush1.bf16.msra.mxu0 0
    %735 = vmatprep.subr.bf16.mxu0 0
    %736 = vmatpush1.bf16.msra.mxu0 0
    %737 = vmatprep.subr.bf16.mxu0 0
    %738 = vmatpush1.bf16.msra.mxu0 0
    %739 = vmatprep.subr.bf16.mxu0 0
    %740 = vmatpush1.bf16.msra.mxu0 0
    %741 = vmatprep.subr.bf16.mxu0 0
    %742 = vmatpush1.bf16.msra.mxu0 0
    %743 = vmatprep.subr.bf16.mxu0 0
    %744 = vmatpush1.bf16.msra.mxu0 0
    %745 = vmatprep.subr.bf16.mxu0 0
    %746 = vmatpush1.bf16.msra.mxu0 0
    %747 = vmatprep.subr.bf16.mxu0 0
    %748 = vmatpush1.bf16.msra.mxu0 0
    %749 = vmatprep.mubr.bf16.mxu0 0
    %750 = vmatmul.mubr.bf16.gmra.mrb[0].mxu0 %v715
    %v751 = vpop.f32.mrb[0].mxu0
    %v752 = vadd.f32 0.0, %v751
    %v753 = vpop.f32.mrb[0].mxu0
    %v754 = vadd.f32 0.0, %v753
    %v755 = vpop.f32.mrb[0].mxu0
    %v756 = vpop.f32.mrb[0].mxu0
    %757 = vdwg.mxu0
    %758 = vmatprep.subr.bf16.mxu0 %v278
    %759 = vmatpush1.bf16.msra.mxu0 %v277
    %760 = vmatprep.subr.bf16.mxu0 0
    %761 = vmatpush1.bf16.msra.mxu0 0
    %762 = vmatprep.subr.bf16.mxu0 0
    %763 = vmatpush1.bf16.msra.mxu0 0
    %764 = vmatprep.subr.bf16.mxu0 0
    %765 = vmatpush1.bf16.msra.mxu0 0
    %766 = vmatprep.subr.bf16.mxu0 0
    %767 = vmatpush1.bf16.msra.mxu0 0
    %768 = vmatprep.subr.bf16.mxu0 0
    %769 = vmatpush1.bf16.msra.mxu0 0
    %770 = vmatprep.subr.bf16.mxu0 0
    %771 = vmatpush1.bf16.msra.mxu0 0
    %772 = vmatprep.subr.bf16.mxu0 0
    %773 = vmatpush1.bf16.msra.mxu0 0
    %774 = vmatprep.subr.bf16.mxu0 0
    %775 = vmatpush1.bf16.msra.mxu0 0
    %776 = vmatprep.subr.bf16.mxu0 0
    %777 = vmatpush1.bf16.msra.mxu0 0
    %778 = vmatprep.subr.bf16.mxu0 0
    %779 = vmatpush1.bf16.msra.mxu0 0
    %780 = vmatprep.subr.bf16.mxu0 0
    %781 = vmatpush1.bf16.msra.mxu0 0
    %782 = vmatprep.subr.bf16.mxu0 0
    %783 = vmatpush1.bf16.msra.mxu0 0
    %784 = vmatprep.subr.bf16.mxu0 0
    %785 = vmatpush1.bf16.msra.mxu0 0
    %786 = vmatprep.subr.bf16.mxu0 0
    %787 = vmatpush1.bf16.msra.mxu0 0
    %788 = vmatprep.subr.bf16.mxu0 0
    %789 = vmatpush1.bf16.msra.mxu0 0
    %790 = vmatprep.mubr.bf16.mxu0 0
    %791 = vmatmul.mubr.bf16.gmra.mrb[0].mxu0 %v715
    %v792 = vpop.f32.mrb[0].mxu0
    %v793 = vadd.f32 0.0, %v792
    %v794 = vpop.f32.mrb[0].mxu0
    %v795 = vadd.f32 0.0, %v794
    %v796 = vpop.f32.mrb[0].mxu0
    %v797 = vpop.f32.mrb[0].mxu0
    %798 = vdwg.mxu0
    %799 = vmatprep.subr.bf16.mxu0 %v280
    %800 = vmatpush1.bf16.msra.mxu0 %v279
    %801 = vmatprep.subr.bf16.mxu0 0
    %802 = vmatpush1.bf16.msra.mxu0 0
    %803 = vmatprep.subr.bf16.mxu0 0
    %804 = vmatpush1.bf16.msra.mxu0 0
    %805 = vmatprep.subr.bf16.mxu0 0
    %806 = vmatpush1.bf16.msra.mxu0 0
    %807 = vmatprep.subr.bf16.mxu0 0
    %808 = vmatpush1.bf16.msra.mxu0 0
    %809 = vmatprep.subr.bf16.mxu0 0
    %810 = vmatpush1.bf16.msra.mxu0 0
    %811 = vmatprep.subr.bf16.mxu0 0
    %812 = vmatpush1.bf16.msra.mxu0 0
    %813 = vmatprep.subr.bf16.mxu0 0
    %814 = vmatpush1.bf16.msra.mxu0 0
    %815 = vmatprep.subr.bf16.mxu0 0
    %816 = vmatpush1.bf16.msra.mxu0 0
    %817 = vmatprep.subr.bf16.mxu0 0
    %818 = vmatpush1.bf16.msra.mxu0 0
    %819 = vmatprep.subr.bf16.mxu0 0
    %820 = vmatpush1.bf16.msra.mxu0 0
    %821 = vmatprep.subr.bf16.mxu0 0
    %822 = vmatpush1.bf16.msra.mxu0 0
    %823 = vmatprep.subr.bf16.mxu0 0
    %824 = vmatpush1.bf16.msra.mxu0 0
    %825 = vmatprep.subr.bf16.mxu0 0
    %826 = vmatpush1.bf16.msra.mxu0 0
    %827 = vmatprep.subr.bf16.mxu0 0
    %828 = vmatpush1.bf16.msra.mxu0 0
    %829 = vmatprep.subr.bf16.mxu0 0
    %830 = vmatpush1.bf16.msra.mxu0 0
    %831 = vmatprep.mubr.bf16.mxu0 0
    %832 = vmatmul.mubr.bf16.gmra.mrb[0].mxu0 %v715
    %v833 = vpop.f32.mrb[0].mxu0
    %v834 = vadd.f32 0.0, %v833
    %v835 = vpop.f32.mrb[0].mxu0
    %v836 = vadd.f32 0.0, %v835
    %v837 = vpop.f32.mrb[0].mxu0
    %v838 = vpop.f32.mrb[0].mxu0
    %839 = vdwg.mxu0
    %840 = vmatprep.subr.bf16.mxu0 %v282
    %841 = vmatpush1.bf16.msra.mxu0 %v281
    %842 = vmatprep.subr.bf16.mxu0 0
    %843 = vmatpush1.bf16.msra.mxu0 0
    %844 = vmatprep.subr.bf16.mxu0 0
    %845 = vmatpush1.bf16.msra.mxu0 0
    %846 = vmatprep.subr.bf16.mxu0 0
    %847 = vmatpush1.bf16.msra.mxu0 0
    %848 = vmatprep.subr.bf16.mxu0 0
    %849 = vmatpush1.bf16.msra.mxu0 0
    %850 = vmatprep.subr.bf16.mxu0 0
    %851 = vmatpush1.bf16.msra.mxu0 0
    %852 = vmatprep.subr.bf16.mxu0 0
    %853 = vmatpush1.bf16.msra.mxu0 0
    %854 = vmatprep.subr.bf16.mxu0 0
    %855 = vmatpush1.bf16.msra.mxu0 0
    %856 = vmatprep.subr.bf16.mxu0 0
    %857 = vmatpush1.bf16.msra.mxu0 0
    %858 = vmatprep.subr.bf16.mxu0 0
    %859 = vmatpush1.bf16.msra.mxu0 0
    %860 = vmatprep.subr.bf16.mxu0 0
    %861 = vmatpush1.bf16.msra.mxu0 0
    %862 = vmatprep.subr.bf16.mxu0 0
    %863 = vmatpush1.bf16.msra.mxu0 0
    %864 = vmatprep.subr.bf16.mxu0 0
    %865 = vmatpush1.bf16.msra.mxu0 0
    %866 = vmatprep.subr.bf16.mxu0 0
    %867 = vmatpush1.bf16.msra.mxu0 0
    %868 = vmatprep.subr.bf16.mxu0 0
    %869 = vmatpush1.bf16.msra.mxu0 0
    %870 = vmatprep.subr.bf16.mxu0 0
    %871 = vmatpush1.bf16.msra.mxu0 0
    %872 = vmatprep.mubr.bf16.mxu0 0
    %873 = vmatmul.mubr.bf16.gmra.mrb[0].mxu0 %v715
    %v874 = vpop.f32.mrb[0].mxu0
    %v875 = vadd.f32 0.0, %v874
    %v876 = vpop.f32.mrb[0].mxu0
    %v877 = vadd.f32 0.0, %v876
    %v878 = vpop.f32.mrb[0].mxu0
    %v879 = vpop.f32.mrb[0].mxu0
    %880 = vdwg.mxu0
    %v881 = vadd.f32 %v834, %v197
    %v882 = vadd.f32 %v836, %v201
    %v883 = vadd.f32 %v875, %v205
    %v884 = vadd.f32 %v877, %v209
    %v885 = vadd.f32 %v881, %v583
    %v886 = vadd.f32 %v882, %v585
    %v887 = vadd.f32 %v883, %v624
    %v888 = vadd.f32 %v884, %v626
    %v889 = vxor.u32 %v885, 2147483648
    %v890 = vmul.f32 %v889, 1.442695
    %v891 = vpow.pop %v890
    %v892 = vadd.f32 %v891, 1.0
    %v893 = vrcp.pop %v892
    %v894 = vmul.f32 1.0, %v893
    %v895 = vxor.u32 %v886, 2147483648
    %v896 = vmul.f32 %v895, 1.442695
    %v897 = vpow.pop %v896
    %v898 = vadd.f32 %v897, 1.0
    %v899 = vrcp.pop %v898
    %v900 = vmul.f32 1.0, %v899
    %v901 = vtanh.pop %v887
    %v902 = vxor.u32 %v888, 2147483648
    %v903 = vmul.f32 %v902, 1.442695
    %v904 = vpow.pop %v903
    %v905 = vadd.f32 %v904, 1.0
    %v906 = vrcp.pop %v905
    %v907 = vmul.f32 1.0, %v906
    %v908 = vmul.f32 %v900, %v488
    %v909 = vmul.f32 %v894, %v901
    %v910 = vadd.f32 %v908, %v909
    %v911 = vtanh.pop %v910
    %v912 = vmul.f32 %v907, %v911
    %v913 = vpack.c.bf16 %v912, %v912
    %v915 = vsel %vm544, %v913, 0
    %917 = vmatprep.subr.bf16.mxu0 %v525
    %918 = vmatpush1.bf16.msra.mxu0 %v524
    %919 = vmatprep.subr.bf16.mxu0 %v530
    %920 = vmatpush1.bf16.msra.mxu0 %v529
    %921 = vmatprep.subr.bf16.mxu0 0
    %922 = vmatpush1.bf16.msra.mxu0 0
    %923 = vmatprep.subr.bf16.mxu0 0
    %924 = vmatpush1.bf16.msra.mxu0 0
    %925 = vmatprep.subr.bf16.mxu0 0
    %926 = vmatpush1.bf16.msra.mxu0 0
    %927 = vmatprep.subr.bf16.mxu0 0
    %928 = vmatpush1.bf16.msra.mxu0 0
    %929 = vmatprep.subr.bf16.mxu0 0
    %930 = vmatpush1.bf16.msra.mxu0 0
    %931 = vmatprep.subr.bf16.mxu0 0
    %932 = vmatpush1.bf16.msra.mxu0 0
    %933 = vmatprep.subr.bf16.mxu0 0
    %934 = vmatpush1.bf16.msra.mxu0 0
    %935 = vmatprep.subr.bf16.mxu0 0
    %936 = vmatpush1.bf16.msra.mxu0 0
    %937 = vmatprep.subr.bf16.mxu0 0
    %938 = vmatpush1.bf16.msra.mxu0 0
    %939 = vmatprep.subr.bf16.mxu0 0
    %940 = vmatpush1.bf16.msra.mxu0 0
    %941 = vmatprep.subr.bf16.mxu0 0
    %942 = vmatpush1.bf16.msra.mxu0 0
    %943 = vmatprep.subr.bf16.mxu0 0
    %944 = vmatpush1.bf16.msra.mxu0 0
    %945 = vmatprep.subr.bf16.mxu0 0
    %946 = vmatpush1.bf16.msra.mxu0 0
    %947 = vmatprep.subr.bf16.mxu0 0
    %948 = vmatpush1.bf16.msra.mxu0 0
    %949 = vmatprep.mubr.bf16.mxu0 0
    %950 = vmatmul.mubr.bf16.gmra.mrb[0].mxu0 %v915
    %v951 = vpop.f32.mrb[0].mxu0
    %v952 = vadd.f32 0.0, %v951
    %v953 = vpop.f32.mrb[0].mxu0
    %v954 = vadd.f32 0.0, %v953
    %v955 = vpop.f32.mrb[0].mxu0
    %v956 = vpop.f32.mrb[0].mxu0
    %957 = vdwg.mxu0
    %958 = vmatprep.subr.bf16.mxu0 %v527
    %959 = vmatpush1.bf16.msra.mxu0 %v526
    %960 = vmatprep.subr.bf16.mxu0 %v532
    %961 = vmatpush1.bf16.msra.mxu0 %v531
    %962 = vmatprep.subr.bf16.mxu0 0
    %963 = vmatpush1.bf16.msra.mxu0 0
    %964 = vmatprep.subr.bf16.mxu0 0
    %965 = vmatpush1.bf16.msra.mxu0 0
    %966 = vmatprep.subr.bf16.mxu0 0
    %967 = vmatpush1.bf16.msra.mxu0 0
    %968 = vmatprep.subr.bf16.mxu0 0
    %969 = vmatpush1.bf16.msra.mxu0 0
    %970 = vmatprep.subr.bf16.mxu0 0
    %971 = vmatpush1.bf16.msra.mxu0 0
    %972 = vmatprep.subr.bf16.mxu0 0
    %973 = vmatpush1.bf16.msra.mxu0 0
    %974 = vmatprep.subr.bf16.mxu0 0
    %975 = vmatpush1.bf16.msra.mxu0 0
    %976 = vmatprep.subr.bf16.mxu0 0
    %977 = vmatpush1.bf16.msra.mxu0 0
    %978 = vmatprep.subr.bf16.mxu0 0
    %979 = vmatpush1.bf16.msra.mxu0 0
    %980 = vmatprep.subr.bf16.mxu0 0
    %981 = vmatpush1.bf16.msra.mxu0 0
    %982 = vmatprep.subr.bf16.mxu0 0
    %983 = vmatpush1.bf16.msra.mxu0 0
    %984 = vmatprep.subr.bf16.mxu0 0
    %985 = vmatpush1.bf16.msra.mxu0 0
    %986 = vmatprep.subr.bf16.mxu0 0
    %987 = vmatpush1.bf16.msra.mxu0 0
    %988 = vmatprep.subr.bf16.mxu0 0
    %989 = vmatpush1.bf16.msra.mxu0 0
    %990 = vmatprep.mubr.bf16.mxu0 0
    %991 = vmatmul.mubr.bf16.gmra.mrb[0].mxu0 %v915
    %v992 = vpop.f32.mrb[0].mxu0
    %v993 = vadd.f32 0.0, %v992
    %v994 = vpop.f32.mrb[0].mxu0
    %v995 = vadd.f32 0.0, %v994
    %v996 = vpop.f32.mrb[0].mxu0
    %v997 = vpop.f32.mrb[0].mxu0
    %998 = vdwg.mxu0
    %999 = vmatprep.subr.bf16.mxu0 0
    %1000 = vmatpush1.bf16.msra.mxu0 %v528
    %1001 = vmatprep.subr.bf16.mxu0 0
    %1002 = vmatpush1.bf16.msra.mxu0 %v533
    %1003 = vmatprep.subr.bf16.mxu0 0
    %1004 = vmatpush1.bf16.msra.mxu0 0
    %1005 = vmatprep.subr.bf16.mxu0 0
    %1006 = vmatpush1.bf16.msra.mxu0 0
    %1007 = vmatprep.subr.bf16.mxu0 0
    %1008 = vmatpush1.bf16.msra.mxu0 0
    %1009 = vmatprep.subr.bf16.mxu0 0
    %1010 = vmatpush1.bf16.msra.mxu0 0
    %1011 = vmatprep.subr.bf16.mxu0 0
    %1012 = vmatpush1.bf16.msra.mxu0 0
    %1013 = vmatprep.subr.bf16.mxu0 0
    %1014 = vmatpush1.bf16.msra.mxu0 0
    %1015 = vmatprep.subr.bf16.mxu0 0
    %1016 = vmatpush1.bf16.msra.mxu0 0
    %1017 = vmatprep.subr.bf16.mxu0 0
    %1018 = vmatpush1.bf16.msra.mxu0 0
    %1019 = vmatprep.subr.bf16.mxu0 0
    %1020 = vmatpush1.bf16.msra.mxu0 0
    %1021 = vmatprep.subr.bf16.mxu0 0
    %1022 = vmatpush1.bf16.msra.mxu0 0
    %1023 = vmatprep.subr.bf16.mxu0 0
    %1024 = vmatpush1.bf16.msra.mxu0 0
    %1025 = vmatprep.subr.bf16.mxu0 0
    %1026 = vmatpush1.bf16.msra.mxu0 0
    %1027 = vmatprep.subr.bf16.mxu0 0
    %1028 = vmatpush1.bf16.msra.mxu0 0
    %1029 = vmatprep.subr.bf16.mxu0 0
    %1030 = vmatpush1.bf16.msra.mxu0 0
    %1031 = vmatprep.mubr.bf16.mxu0 0
    %1032 = vmatmul.mubr.bf16.gmra.mrb[0].mxu0 %v915
    %v1033 = vpop.f32.mrb[0].mxu0
    %v1034 = vadd.f32 0.0, %v1033
    %v1035 = vpop.f32.mrb[0].mxu0
    %v1036 = vpop.f32.mrb[0].mxu0
    %v1037 = vpop.f32.mrb[0].mxu0
    %1038 = vdwg.mxu0
    %v1039 = vadd.f32 %v1034, %v215
    %vm1040 = vcmp.gt.f32.partialorder %v1039, 0.0
    %v1041 = vmul.f32 %v1039, %v1039
    %v1042 = vadd.f32 %v1041, 1.0
    %v1043 = vrsqrt.pop %v1042
    %v1044 = vmul.f32 %v1039, %v1043
    %v1045 = vsel %vm1040, %v1039, %v1044
    %v1046 = vadd.f32 %v1045, 1.005
    %v1047 = vtanh.pop %v1039
    %v1048 = vmul.f32 %v1047, 0.999
    %v1049 = vadd.f32 %v1048, 1.0
    %v1050 = vmul.f32 %v1049, 0.5
    %v1051 = vsel %vm221, %v1046, %v1050
    %v1052 = vsel %vm218, %v1039, %v1051
    %1053 = vst [vmem:[#allocation7 + $0x2] sm:$0x3] %v1052
    %v1054 = vadd.f32 %v147, %v752
    %v1055 = vadd.f32 %v149, %v754
    %v1056 = vadd.f32 %v188, %v793
    %v1057 = vadd.f32 %v190, %v795
    %v1058 = vxor.u32 %v1054, 2147483648
    %v1059 = vmul.f32 %v1058, 1.442695
    %v1060 = vpow.pop %v1059
    %v1061 = vadd.f32 %v1060, 1.0
    %v1062 = vrcp.pop %v1061
    %v1063 = vmul.f32 1.0, %v1062
    %v1064 = vxor.u32 %v1055, 2147483648
    %v1065 = vmul.f32 %v1064, 1.442695
    %v1066 = vpow.pop %v1065
    %v1067 = vadd.f32 %v1066, 1.0
    %v1068 = vrcp.pop %v1067
    %v1069 = vmul.f32 1.0, %v1068
    %v1070 = vtanh.pop %v1056
    %v1071 = vxor.u32 %v1057, 2147483648
    %v1072 = vmul.f32 %v1071, 1.442695
    %v1073 = vpow.pop %v1072
    %v1074 = vadd.f32 %v1073, 1.0
    %v1075 = vrcp.pop %v1074
    %v1076 = vmul.f32 1.0, %v1075
    %v1077 = vmul.f32 %v1069, %v710
    %v1078 = vmul.f32 %v1063, %v1070
    %v1079 = vadd.f32 %v1077, %v1078
    %v1080 = vtanh.pop %v1079
    %v1081 = vmul.f32 %v1076, %v1080
    %v1082 = vpack.c.bf16 %v1081, %v1081
    %v1084 = vsel %vm291, %v1082, 0
    %1086 = vmatprep.subr.bf16.mxu0 %v276
    %1087 = vmatpush1.bf16.msra.mxu0 %v275
    %1088 = vmatprep.subr.bf16.mxu0 0
    %1089 = vmatpush1.bf16.msra.mxu0 0
    %1090 = vmatprep.subr.bf16.mxu0 0
    %1091 = vmatpush1.bf16.msra.mxu0 0
    %1092 = vmatprep.subr.bf16.mxu0 0
    %1093 = vmatpush1.bf16.msra.mxu0 0
    %1094 = vmatprep.subr.bf16.mxu0 0
    %1095 = vmatpush1.bf16.msra.mxu0 0
    %1096 = vmatprep.subr.bf16.mxu0 0
    %1097 = vmatpush1.bf16.msra.mxu0 0
    %1098 = vmatprep.subr.bf16.mxu0 0
    %1099 = vmatpush1.bf16.msra.mxu0 0
    %1100 = vmatprep.subr.bf16.mxu0 0
    %1101 = vmatpush1.bf16.msra.mxu0 0
    %1102 = vmatprep.subr.bf16.mxu0 0
    %1103 = vmatpush1.bf16.msra.mxu0 0
    %1104 = vmatprep.subr.bf16.mxu0 0
    %1105 = vmatpush1.bf16.msra.mxu0 0
    %1106 = vmatprep.subr.bf16.mxu0 0
    %1107 = vmatpush1.bf16.msra.mxu0 0
    %1108 = vmatprep.subr.bf16.mxu0 0
    %1109 = vmatpush1.bf16.msra.mxu0 0
    %1110 = vmatprep.subr.bf16.mxu0 0
    %1111 = vmatpush1.bf16.msra.mxu0 0
    %1112 = vmatprep.subr.bf16.mxu0 0
    %1113 = vmatpush1.bf16.msra.mxu0 0
    %1114 = vmatprep.subr.bf16.mxu0 0
    %1115 = vmatpush1.bf16.msra.mxu0 0
    %1116 = vmatprep.subr.bf16.mxu0 0
    %1117 = vmatpush1.bf16.msra.mxu0 0
    %1118 = vmatprep.mubr.bf16.mxu0 0
    %1119 = vmatmul.mubr.bf16.gmra.mrb[0].mxu0 %v1084
    %v1120 = vpop.f32.mrb[0].mxu0
    %v1121 = vadd.f32 0.0, %v1120
    %v1122 = vpop.f32.mrb[0].mxu0
    %v1123 = vadd.f32 0.0, %v1122
    %v1124 = vpop.f32.mrb[0].mxu0
    %v1125 = vpop.f32.mrb[0].mxu0
    %1126 = vdwg.mxu0
    %1127 = vmatprep.subr.bf16.mxu0 %v278
    %1128 = vmatpush1.bf16.msra.mxu0 %v277
    %1129 = vmatprep.subr.bf16.mxu0 0
    %1130 = vmatpush1.bf16.msra.mxu0 0
    %1131 = vmatprep.subr.bf16.mxu0 0
    %1132 = vmatpush1.bf16.msra.mxu0 0
    %1133 = vmatprep.subr.bf16.mxu0 0
    %1134 = vmatpush1.bf16.msra.mxu0 0
    %1135 = vmatprep.subr.bf16.mxu0 0
    %1136 = vmatpush1.bf16.msra.mxu0 0
    %1137 = vmatprep.subr.bf16.mxu0 0
    %1138 = vmatpush1.bf16.msra.mxu0 0
    %1139 = vmatprep.subr.bf16.mxu0 0
    %1140 = vmatpush1.bf16.msra.mxu0 0
    %1141 = vmatprep.subr.bf16.mxu0 0
    %1142 = vmatpush1.bf16.msra.mxu0 0
    %1143 = vmatprep.subr.bf16.mxu0 0
    %1144 = vmatpush1.bf16.msra.mxu0 0
    %1145 = vmatprep.subr.bf16.mxu0 0
    %1146 = vmatpush1.bf16.msra.mxu0 0
    %1147 = vmatprep.subr.bf16.mxu0 0
    %1148 = vmatpush1.bf16.msra.mxu0 0
    %1149 = vmatprep.subr.bf16.mxu0 0
    %1150 = vmatpush1.bf16.msra.mxu0 0
    %1151 = vmatprep.subr.bf16.mxu0 0
    %1152 = vmatpush1.bf16.msra.mxu0 0
    %1153 = vmatprep.subr.bf16.mxu0 0
    %1154 = vmatpush1.bf16.msra.mxu0 0
    %1155 = vmatprep.subr.bf16.mxu0 0
    %1156 = vmatpush1.bf16.msra.mxu0 0
    %1157 = vmatprep.subr.bf16.mxu0 0
    %1158 = vmatpush1.bf16.msra.mxu0 0
    %1159 = vmatprep.mubr.bf16.mxu0 0
    %1160 = vmatmul.mubr.bf16.gmra.mrb[0].mxu0 %v1084
    %v1161 = vpop.f32.mrb[0].mxu0
    %v1162 = vadd.f32 0.0, %v1161
    %v1163 = vpop.f32.mrb[0].mxu0
    %v1164 = vadd.f32 0.0, %v1163
    %v1165 = vpop.f32.mrb[0].mxu0
    %v1166 = vpop.f32.mrb[0].mxu0
    %1167 = vdwg.mxu0
    %1168 = vmatprep.subr.bf16.mxu0 %v280
    %1169 = vmatpush1.bf16.msra.mxu0 %v279
    %1170 = vmatprep.subr.bf16.mxu0 0
    %1171 = vmatpush1.bf16.msra.mxu0 0
    %1172 = vmatprep.subr.bf16.mxu0 0
    %1173 = vmatpush1.bf16.msra.mxu0 0
    %1174 = vmatprep.subr.bf16.mxu0 0
    %1175 = vmatpush1.bf16.msra.mxu0 0
    %1176 = vmatprep.subr.bf16.mxu0 0
    %1177 = vmatpush1.bf16.msra.mxu0 0
    %1178 = vmatprep.subr.bf16.mxu0 0
    %1179 = vmatpush1.bf16.msra.mxu0 0
    %1180 = vmatprep.subr.bf16.mxu0 0
    %1181 = vmatpush1.bf16.msra.mxu0 0
    %1182 = vmatprep.subr.bf16.mxu0 0
    %1183 = vmatpush1.bf16.msra.mxu0 0
    %1184 = vmatprep.subr.bf16.mxu0 0
    %1185 = vmatpush1.bf16.msra.mxu0 0
    %1186 = vmatprep.subr.bf16.mxu0 0
    %1187 = vmatpush1.bf16.msra.mxu0 0
    %1188 = vmatprep.subr.bf16.mxu0 0
    %1189 = vmatpush1.bf16.msra.mxu0 0
    %1190 = vmatprep.subr.bf16.mxu0 0
    %1191 = vmatpush1.bf16.msra.mxu0 0
    %1192 = vmatprep.subr.bf16.mxu0 0
    %1193 = vmatpush1.bf16.msra.mxu0 0
    %1194 = vmatprep.subr.bf16.mxu0 0
    %1195 = vmatpush1.bf16.msra.mxu0 0
    %1196 = vmatprep.subr.bf16.mxu0 0
    %1197 = vmatpush1.bf16.msra.mxu0 0
    %1198 = vmatprep.subr.bf16.mxu0 0
    %1199 = vmatpush1.bf16.msra.mxu0 0
    %1200 = vmatprep.mubr.bf16.mxu0 0
    %1201 = vmatmul.mubr.bf16.gmra.mrb[0].mxu0 %v1084
    %v1202 = vpop.f32.mrb[0].mxu0
    %v1203 = vadd.f32 0.0, %v1202
    %v1204 = vpop.f32.mrb[0].mxu0
    %v1205 = vadd.f32 0.0, %v1204
    %v1206 = vpop.f32.mrb[0].mxu0
    %v1207 = vpop.f32.mrb[0].mxu0
    %1208 = vdwg.mxu0
    %1209 = vmatprep.subr.bf16.mxu0 %v282
    %1210 = vmatpush1.bf16.msra.mxu0 %v281
    %1211 = vmatprep.subr.bf16.mxu0 0
    %1212 = vmatpush1.bf16.msra.mxu0 0
    %1213 = vmatprep.subr.bf16.mxu0 0
    %1214 = vmatpush1.bf16.msra.mxu0 0
    %1215 = vmatprep.subr.bf16.mxu0 0
    %1216 = vmatpush1.bf16.msra.mxu0 0
    %1217 = vmatprep.subr.bf16.mxu0 0
    %1218 = vmatpush1.bf16.msra.mxu0 0
    %1219 = vmatprep.subr.bf16.mxu0 0
    %1220 = vmatpush1.bf16.msra.mxu0 0
    %1221 = vmatprep.subr.bf16.mxu0 0
    %1222 = vmatpush1.bf16.msra.mxu0 0
    %1223 = vmatprep.subr.bf16.mxu0 0
    %1224 = vmatpush1.bf16.msra.mxu0 0
    %1225 = vmatprep.subr.bf16.mxu0 0
    %1226 = vmatpush1.bf16.msra.mxu0 0
    %1227 = vmatprep.subr.bf16.mxu0 0
    %1228 = vmatpush1.bf16.msra.mxu0 0
    %1229 = vmatprep.subr.bf16.mxu0 0
    %1230 = vmatpush1.bf16.msra.mxu0 0
    %1231 = vmatprep.subr.bf16.mxu0 0
    %1232 = vmatpush1.bf16.msra.mxu0 0
    %1233 = vmatprep.subr.bf16.mxu0 0
    %1234 = vmatpush1.bf16.msra.mxu0 0
    %1235 = vmatprep.subr.bf16.mxu0 0
    %1236 = vmatpush1.bf16.msra.mxu0 0
    %1237 = vmatprep.subr.bf16.mxu0 0
    %1238 = vmatpush1.bf16.msra.mxu0 0
    %1239 = vmatprep.subr.bf16.mxu0 0
    %1240 = vmatpush1.bf16.msra.mxu0 0
    %1241 = vmatprep.mubr.bf16.mxu0 0
    %1242 = vmatmul.mubr.bf16.gmra.mrb[0].mxu0 %v1084
    %v1243 = vpop.f32.mrb[0].mxu0
    %v1244 = vadd.f32 0.0, %v1243
    %v1245 = vpop.f32.mrb[0].mxu0
    %v1246 = vadd.f32 0.0, %v1245
    %v1247 = vpop.f32.mrb[0].mxu0
    %v1248 = vpop.f32.mrb[0].mxu0
    %1249 = vdwg.mxu0
    %v1250 = vadd.f32 %v1203, %v197
    %v1251 = vadd.f32 %v1205, %v201
    %v1252 = vadd.f32 %v1244, %v205
    %v1253 = vadd.f32 %v1246, %v209
    %v1254 = vadd.f32 %v1250, %v952
    %v1255 = vadd.f32 %v1251, %v954
    %v1256 = vadd.f32 %v1252, %v993
    %v1257 = vadd.f32 %v1253, %v995
    %v1258 = vxor.u32 %v1254, 2147483648
    %v1259 = vmul.f32 %v1258, 1.442695
    %v1260 = vpow.pop %v1259
    %v1261 = vadd.f32 %v1260, 1.0
    %v1262 = vrcp.pop %v1261
    %v1263 = vmul.f32 1.0, %v1262
    %v1264 = vxor.u32 %v1255, 2147483648
    %v1265 = vmul.f32 %v1264, 1.442695
    %v1266 = vpow.pop %v1265
    %v1267 = vadd.f32 %v1266, 1.0
    %v1268 = vrcp.pop %v1267
    %v1269 = vmul.f32 1.0, %v1268
    %v1270 = vtanh.pop %v1256
    %v1271 = vxor.u32 %v1257, 2147483648
    %v1272 = vmul.f32 %v1271, 1.442695
    %v1273 = vpow.pop %v1272
    %v1274 = vadd.f32 %v1273, 1.0
    %v1275 = vrcp.pop %v1274
    %v1276 = vmul.f32 1.0, %v1275
    %v1277 = vmul.f32 %v1269, %v910
    %v1278 = vmul.f32 %v1263, %v1270
    %v1279 = vadd.f32 %v1277, %v1278
    %v1280 = vtanh.pop %v1279
    %v1281 = vmul.f32 %v1276, %v1280
    %v1282 = vpack.c.bf16 %v1281, %v1281
    %v1284 = vsel %vm544, %v1282, 0
    %1286 = vmatprep.subr.bf16.mxu0 %v525
    %1287 = vmatpush1.bf16.msra.mxu0 %v524
    %1288 = vmatprep.subr.bf16.mxu0 %v530
    %1289 = vmatpush1.bf16.msra.mxu0 %v529
    %1290 = vmatprep.subr.bf16.mxu0 0
    %1291 = vmatpush1.bf16.msra.mxu0 0
    %1292 = vmatprep.subr.bf16.mxu0 0
    %1293 = vmatpush1.bf16.msra.mxu0 0
    %1294 = vmatprep.subr.bf16.mxu0 0
    %1295 = vmatpush1.bf16.msra.mxu0 0
    %1296 = vmatprep.subr.bf16.mxu0 0
    %1297 = vmatpush1.bf16.msra.mxu0 0
    %1298 = vmatprep.subr.bf16.mxu0 0
    %1299 = vmatpush1.bf16.msra.mxu0 0
    %1300 = vmatprep.subr.bf16.mxu0 0
    %1301 = vmatpush1.bf16.msra.mxu0 0
    %1302 = vmatprep.subr.bf16.mxu0 0
    %1303 = vmatpush1.bf16.msra.mxu0 0
    %1304 = vmatprep.subr.bf16.mxu0 0
    %1305 = vmatpush1.bf16.msra.mxu0 0
    %1306 = vmatprep.subr.bf16.mxu0 0
    %1307 = vmatpush1.bf16.msra.mxu0 0
    %1308 = vmatprep.subr.bf16.mxu0 0
    %1309 = vmatpush1.bf16.msra.mxu0 0
    %1310 = vmatprep.subr.bf16.mxu0 0
    %1311 = vmatpush1.bf16.msra.mxu0 0
    %1312 = vmatprep.subr.bf16.mxu0 0
    %1313 = vmatpush1.bf16.msra.mxu0 0
    %1314 = vmatprep.subr.bf16.mxu0 0
    %1315 = vmatpush1.bf16.msra.mxu0 0
    %1316 = vmatprep.subr.bf16.mxu0 0
    %1317 = vmatpush1.bf16.msra.mxu0 0
    %1318 = vmatprep.mubr.bf16.mxu0 0
    %1319 = vmatmul.mubr.bf16.gmra.mrb[0].mxu0 %v1284
    %v1320 = vpop.f32.mrb[0].mxu0
    %v1321 = vadd.f32 0.0, %v1320
    %v1322 = vpop.f32.mrb[0].mxu0
    %v1323 = vadd.f32 0.0, %v1322
    %v1324 = vpop.f32.mrb[0].mxu0
    %v1325 = vpop.f32.mrb[0].mxu0
    %1326 = vdwg.mxu0
    %1327 = vmatprep.subr.bf16.mxu0 %v527
    %1328 = vmatpush1.bf16.msra.mxu0 %v526
    %1329 = vmatprep.subr.bf16.mxu0 %v532
    %1330 = vmatpush1.bf16.msra.mxu0 %v531
    %1331 = vmatprep.subr.bf16.mxu0 0
    %1332 = vmatpush1.bf16.msra.mxu0 0
    %1333 = vmatprep.subr.bf16.mxu0 0
    %1334 = vmatpush1.bf16.msra.mxu0 0
    %1335 = vmatprep.subr.bf16.mxu0 0
    %1336 = vmatpush1.bf16.msra.mxu0 0
    %1337 = vmatprep.subr.bf16.mxu0 0
    %1338 = vmatpush1.bf16.msra.mxu0 0
    %1339 = vmatprep.subr.bf16.mxu0 0
    %1340 = vmatpush1.bf16.msra.mxu0 0
    %1341 = vmatprep.subr.bf16.mxu0 0
    %1342 = vmatpush1.bf16.msra.mxu0 0
    %1343 = vmatprep.subr.bf16.mxu0 0
    %1344 = vmatpush1.bf16.msra.mxu0 0
    %1345 = vmatprep.subr.bf16.mxu0 0
    %1346 = vmatpush1.bf16.msra.mxu0 0
    %1347 = vmatprep.subr.bf16.mxu0 0
    %1348 = vmatpush1.bf16.msra.mxu0 0
    %1349 = vmatprep.subr.bf16.mxu0 0
    %1350 = vmatpush1.bf16.msra.mxu0 0
    %1351 = vmatprep.subr.bf16.mxu0 0
    %1352 = vmatpush1.bf16.msra.mxu0 0
    %1353 = vmatprep.subr.bf16.mxu0 0
    %1354 = vmatpush1.bf16.msra.mxu0 0
    %1355 = vmatprep.subr.bf16.mxu0 0
    %1356 = vmatpush1.bf16.msra.mxu0 0
    %1357 = vmatprep.subr.bf16.mxu0 0
    %1358 = vmatpush1.bf16.msra.mxu0 0
    %1359 = vmatprep.mubr.bf16.mxu0 0
    %1360 = vmatmul.mubr.bf16.gmra.mrb[0].mxu0 %v1284
    %v1361 = vpop.f32.mrb[0].mxu0
    %v1362 = vadd.f32 0.0, %v1361
    %v1363 = vpop.f32.mrb[0].mxu0
    %v1364 = vadd.f32 0.0, %v1363
    %v1365 = vpop.f32.mrb[0].mxu0
    %v1366 = vpop.f32.mrb[0].mxu0
    %1367 = vdwg.mxu0
    %1368 = vmatprep.subr.bf16.mxu0 0
    %1369 = vmatpush1.bf16.msra.mxu0 %v528
    %1370 = vmatprep.subr.bf16.mxu0 0
    %1371 = vmatpush1.bf16.msra.mxu0 %v533
    %1372 = vmatprep.subr.bf16.mxu0 0
    %1373 = vmatpush1.bf16.msra.mxu0 0
    %1374 = vmatprep.subr.bf16.mxu0 0
    %1375 = vmatpush1.bf16.msra.mxu0 0
    %1376 = vmatprep.subr.bf16.mxu0 0
    %1377 = vmatpush1.bf16.msra.mxu0 0
    %1378 = vmatprep.subr.bf16.mxu0 0
    %1379 = vmatpush1.bf16.msra.mxu0 0
    %1380 = vmatprep.subr.bf16.mxu0 0
    %1381 = vmatpush1.bf16.msra.mxu0 0
    %1382 = vmatprep.subr.bf16.mxu0 0
    %1383 = vmatpush1.bf16.msra.mxu0 0
    %1384 = vmatprep.subr.bf16.mxu0 0
    %1385 = vmatpush1.bf16.msra.mxu0 0
    %1386 = vmatprep.subr.bf16.mxu0 0
    %1387 = vmatpush1.bf16.msra.mxu0 0
    %1388 = vmatprep.subr.bf16.mxu0 0
    %1389 = vmatpush1.bf16.msra.mxu0 0
    %1390 = vmatprep.subr.bf16.mxu0 0
    %1391 = vmatpush1.bf16.msra.mxu0 0
    %1392 = vmatprep.subr.bf16.mxu0 0
    %1393 = vmatpush1.bf16.msra.mxu0 0
    %1394 = vmatprep.subr.bf16.mxu0 0
    %1395 = vmatpush1.bf16.msra.mxu0 0
    %1396 = vmatprep.subr.bf16.mxu0 0
    %1397 = vmatpush1.bf16.msra.mxu0 0
    %1398 = vmatprep.subr.bf16.mxu0 0
    %1399 = vmatpush1.bf16.msra.mxu0 0
    %1400 = vmatprep.mubr.bf16.mxu0 0
    %1401 = vmatmul.mubr.bf16.gmra.mrb[0].mxu0 %v1284
    %v1402 = vpop.f32.mrb[0].mxu0
    %v1403 = vadd.f32 0.0, %v1402
    %v1404 = vpop.f32.mrb[0].mxu0
    %v1405 = vpop.f32.mrb[0].mxu0
    %v1406 = vpop.f32.mrb[0].mxu0
    %1407 = vdwg.mxu0
    %v1408 = vadd.f32 %v1403, %v215
    %vm1409 = vcmp.gt.f32.partialorder %v1408, 0.0
    %v1410 = vmul.f32 %v1408, %v1408
    %v1411 = vadd.f32 %v1410, 1.0
    %v1412 = vrsqrt.pop %v1411
    %v1413 = vmul.f32 %v1408, %v1412
    %v1414 = vsel %vm1409, %v1408, %v1413
    %v1415 = vadd.f32 %v1414, 1.005
    %v1416 = vtanh.pop %v1408
    %v1417 = vmul.f32 %v1416, 0.999
    %v1418 = vadd.f32 %v1417, 1.0
    %v1419 = vmul.f32 %v1418, 0.5
    %v1420 = vsel %vm221, %v1415, %v1419
    %v1421 = vsel %vm218, %v1408, %v1420
    %1422 = vst [vmem:[#allocation7 + $0x4] sm:$0x3] %v1421
    %v1423 = vadd.f32 %v147, %v1121
    %v1424 = vadd.f32 %v149, %v1123
    %v1425 = vadd.f32 %v188, %v1162
    %v1426 = vadd.f32 %v190, %v1164
    %v1427 = vxor.u32 %v1423, 2147483648
    %v1428 = vmul.f32 %v1427, 1.442695
    %v1429 = vpow.pop %v1428
    %v1430 = vadd.f32 %v1429, 1.0
    %v1431 = vrcp.pop %v1430
    %v1432 = vmul.f32 1.0, %v1431
    %v1433 = vxor.u32 %v1424, 2147483648
    %v1434 = vmul.f32 %v1433, 1.442695
    %v1435 = vpow.pop %v1434
    %v1436 = vadd.f32 %v1435, 1.0
    %v1437 = vrcp.pop %v1436
    %v1438 = vmul.f32 1.0, %v1437
    %v1439 = vtanh.pop %v1425
    %v1440 = vxor.u32 %v1426, 2147483648
    %v1441 = vmul.f32 %v1440, 1.442695
    %v1442 = vpow.pop %v1441
    %v1443 = vadd.f32 %v1442, 1.0
    %v1444 = vrcp.pop %v1443
    %v1445 = vmul.f32 1.0, %v1444
    %v1446 = vmul.f32 %v1438, %v1079
    %v1447 = vmul.f32 %v1432, %v1439
    %v1448 = vadd.f32 %v1446, %v1447
    %v1449 = vtanh.pop %v1448
    %v1450 = vmul.f32 %v1445, %v1449
    %v1451 = vpack.c.bf16 %v1450, %v1450
    %v1453 = vsel %vm291, %v1451, 0
    %1455 = vmatprep.subr.bf16.mxu0 %v276
    %1456 = vmatpush1.bf16.msra.mxu0 %v275
    %1457 = vmatprep.subr.bf16.mxu0 0
    %1458 = vmatpush1.bf16.msra.mxu0 0
    %1459 = vmatprep.subr.bf16.mxu0 0
    %1460 = vmatpush1.bf16.msra.mxu0 0
    %1461 = vmatprep.subr.bf16.mxu0 0
    %1462 = vmatpush1.bf16.msra.mxu0 0
    %1463 = vmatprep.subr.bf16.mxu0 0
    %1464 = vmatpush1.bf16.msra.mxu0 0
    %1465 = vmatprep.subr.bf16.mxu0 0
    %1466 = vmatpush1.bf16.msra.mxu0 0
    %1467 = vmatprep.subr.bf16.mxu0 0
    %1468 = vmatpush1.bf16.msra.mxu0 0
    %1469 = vmatprep.subr.bf16.mxu0 0
    %1470 = vmatpush1.bf16.msra.mxu0 0
    %1471 = vmatprep.subr.bf16.mxu0 0
    %1472 = vmatpush1.bf16.msra.mxu0 0
    %1473 = vmatprep.subr.bf16.mxu0 0
    %1474 = vmatpush1.bf16.msra.mxu0 0
    %1475 = vmatprep.subr.bf16.mxu0 0
    %1476 = vmatpush1.bf16.msra.mxu0 0
    %1477 = vmatprep.subr.bf16.mxu0 0
    %1478 = vmatpush1.bf16.msra.mxu0 0
    %1479 = vmatprep.subr.bf16.mxu0 0
    %1480 = vmatpush1.bf16.msra.mxu0 0
    %1481 = vmatprep.subr.bf16.mxu0 0
    %1482 = vmatpush1.bf16.msra.mxu0 0
    %1483 = vmatprep.subr.bf16.mxu0 0
    %1484 = vmatpush1.bf16.msra.mxu0 0
    %1485 = vmatprep.subr.bf16.mxu0 0
    %1486 = vmatpush1.bf16.msra.mxu0 0
    %1487 = vmatprep.mubr.bf16.mxu0 0
    %1488 = vmatmul.mubr.bf16.gmra.mrb[0].mxu0 %v1453
    %v1489 = vpop.f32.mrb[0].mxu0
    %v1490 = vadd.f32 0.0, %v1489
    %v1491 = vpop.f32.mrb[0].mxu0
    %v1492 = vadd.f32 0.0, %v1491
    %v1493 = vpop.f32.mrb[0].mxu0
    %v1494 = vpop.f32.mrb[0].mxu0
    %1495 = vdwg.mxu0
    %1496 = vmatprep.subr.bf16.mxu0 %v278
    %1497 = vmatpush1.bf16.msra.mxu0 %v277
    %1498 = vmatprep.subr.bf16.mxu0 0
    %1499 = vmatpush1.bf16.msra.mxu0 0
    %1500 = vmatprep.subr.bf16.mxu0 0
    %1501 = vmatpush1.bf16.msra.mxu0 0
    %1502 = vmatprep.subr.bf16.mxu0 0
    %1503 = vmatpush1.bf16.msra.mxu0 0
    %1504 = vmatprep.subr.bf16.mxu0 0
    %1505 = vmatpush1.bf16.msra.mxu0 0
    %1506 = vmatprep.subr.bf16.mxu0 0
    %1507 = vmatpush1.bf16.msra.mxu0 0
    %1508 = vmatprep.subr.bf16.mxu0 0
    %1509 = vmatpush1.bf16.msra.mxu0 0
    %1510 = vmatprep.subr.bf16.mxu0 0
    %1511 = vmatpush1.bf16.msra.mxu0 0
    %1512 = vmatprep.subr.bf16.mxu0 0
    %1513 = vmatpush1.bf16.msra.mxu0 0
    %1514 = vmatprep.subr.bf16.mxu0 0
    %1515 = vmatpush1.bf16.msra.mxu0 0
    %1516 = vmatprep.subr.bf16.mxu0 0
    %1517 = vmatpush1.bf16.msra.mxu0 0
    %1518 = vmatprep.subr.bf16.mxu0 0
    %1519 = vmatpush1.bf16.msra.mxu0 0
    %1520 = vmatprep.subr.bf16.mxu0 0
    %1521 = vmatpush1.bf16.msra.mxu0 0
    %1522 = vmatprep.subr.bf16.mxu0 0
    %1523 = vmatpush1.bf16.msra.mxu0 0
    %1524 = vmatprep.subr.bf16.mxu0 0
    %1525 = vmatpush1.bf16.msra.mxu0 0
    %1526 = vmatprep.subr.bf16.mxu0 0
    %1527 = vmatpush1.bf16.msra.mxu0 0
    %1528 = vmatprep.mubr.bf16.mxu0 0
    %1529 = vmatmul.mubr.bf16.gmra.mrb[0].mxu0 %v1453
    %v1530 = vpop.f32.mrb[0].mxu0
    %v1531 = vadd.f32 0.0, %v1530
    %v1532 = vpop.f32.mrb[0].mxu0
    %v1533 = vadd.f32 0.0, %v1532
    %v1534 = vpop.f32.mrb[0].mxu0
    %v1535 = vpop.f32.mrb[0].mxu0
    %1536 = vdwg.mxu0
    %1537 = vmatprep.subr.bf16.mxu0 %v280
    %1538 = vmatpush1.bf16.msra.mxu0 %v279
    %1539 = vmatprep.subr.bf16.mxu0 0
    %1540 = vmatpush1.bf16.msra.mxu0 0
    %1541 = vmatprep.subr.bf16.mxu0 0
    %1542 = vmatpush1.bf16.msra.mxu0 0
    %1543 = vmatprep.subr.bf16.mxu0 0
    %1544 = vmatpush1.bf16.msra.mxu0 0
    %1545 = vmatprep.subr.bf16.mxu0 0
    %1546 = vmatpush1.bf16.msra.mxu0 0
    %1547 = vmatprep.subr.bf16.mxu0 0
    %1548 = vmatpush1.bf16.msra.mxu0 0
    %1549 = vmatprep.subr.bf16.mxu0 0
    %1550 = vmatpush1.bf16.msra.mxu0 0
    %1551 = vmatprep.subr.bf16.mxu0 0
    %1552 = vmatpush1.bf16.msra.mxu0 0
    %1553 = vmatprep.subr.bf16.mxu0 0
    %1554 = vmatpush1.bf16.msra.mxu0 0
    %1555 = vmatprep.subr.bf16.mxu0 0
    %1556 = vmatpush1.bf16.msra.mxu0 0
    %1557 = vmatprep.subr.bf16.mxu0 0
    %1558 = vmatpush1.bf16.msra.mxu0 0
    %1559 = vmatprep.subr.bf16.mxu0 0
    %1560 = vmatpush1.bf16.msra.mxu0 0
    %1561 = vmatprep.subr.bf16.mxu0 0
    %1562 = vmatpush1.bf16.msra.mxu0 0
    %1563 = vmatprep.subr.bf16.mxu0 0
    %1564 = vmatpush1.bf16.msra.mxu0 0
    %1565 = vmatprep.subr.bf16.mxu0 0
    %1566 = vmatpush1.bf16.msra.mxu0 0
    %1567 = vmatprep.subr.bf16.mxu0 0
    %1568 = vmatpush1.bf16.msra.mxu0 0
    %1569 = vmatprep.mubr.bf16.mxu0 0
    %1570 = vmatmul.mubr.bf16.gmra.mrb[0].mxu0 %v1453
    %v1571 = vpop.f32.mrb[0].mxu0
    %v1572 = vadd.f32 0.0, %v1571
    %v1573 = vpop.f32.mrb[0].mxu0
    %v1574 = vadd.f32 0.0, %v1573
    %v1575 = vpop.f32.mrb[0].mxu0
    %v1576 = vpop.f32.mrb[0].mxu0
    %1577 = vdwg.mxu0
    %1578 = vmatprep.subr.bf16.mxu0 %v282
    %1579 = vmatpush1.bf16.msra.mxu0 %v281
    %1580 = vmatprep.subr.bf16.mxu0 0
    %1581 = vmatpush1.bf16.msra.mxu0 0
    %1582 = vmatprep.subr.bf16.mxu0 0
    %1583 = vmatpush1.bf16.msra.mxu0 0
    %1584 = vmatprep.subr.bf16.mxu0 0
    %1585 = vmatpush1.bf16.msra.mxu0 0
    %1586 = vmatprep.subr.bf16.mxu0 0
    %1587 = vmatpush1.bf16.msra.mxu0 0
    %1588 = vmatprep.subr.bf16.mxu0 0
    %1589 = vmatpush1.bf16.msra.mxu0 0
    %1590 = vmatprep.subr.bf16.mxu0 0
    %1591 = vmatpush1.bf16.msra.mxu0 0
    %1592 = vmatprep.subr.bf16.mxu0 0
    %1593 = vmatpush1.bf16.msra.mxu0 0
    %1594 = vmatprep.subr.bf16.mxu0 0
    %1595 = vmatpush1.bf16.msra.mxu0 0
    %1596 = vmatprep.subr.bf16.mxu0 0
    %1597 = vmatpush1.bf16.msra.mxu0 0
    %1598 = vmatprep.subr.bf16.mxu0 0
    %1599 = vmatpush1.bf16.msra.mxu0 0
    %1600 = vmatprep.subr.bf16.mxu0 0
    %1601 = vmatpush1.bf16.msra.mxu0 0
    %1602 = vmatprep.subr.bf16.mxu0 0
    %1603 = vmatpush1.bf16.msra.mxu0 0
    %1604 = vmatprep.subr.bf16.mxu0 0
    %1605 = vmatpush1.bf16.msra.mxu0 0
    %1606 = vmatprep.subr.bf16.mxu0 0
    %1607 = vmatpush1.bf16.msra.mxu0 0
    %1608 = vmatprep.subr.bf16.mxu0 0
    %1609 = vmatpush1.bf16.msra.mxu0 0
    %1610 = vmatprep.mubr.bf16.mxu0 0
    %1611 = vmatmul.mubr.bf16.gmra.mrb[0].mxu0 %v1453
    %v1612 = vpop.f32.mrb[0].mxu0
    %v1613 = vadd.f32 0.0, %v1612
    %v1614 = vpop.f32.mrb[0].mxu0
    %v1615 = vadd.f32 0.0, %v1614
    %v1616 = vpop.f32.mrb[0].mxu0
    %v1617 = vpop.f32.mrb[0].mxu0
    %1618 = vdwg.mxu0
    %v1619 = vadd.f32 %v1572, %v197
    %v1620 = vadd.f32 %v1574, %v201
    %v1621 = vadd.f32 %v1613, %v205
    %v1622 = vadd.f32 %v1615, %v209
    %v1623 = vadd.f32 %v1619, %v1321
    %v1624 = vadd.f32 %v1620, %v1323
    %v1625 = vadd.f32 %v1621, %v1362
    %v1626 = vadd.f32 %v1622, %v1364
    %v1627 = vxor.u32 %v1623, 2147483648
    %v1628 = vmul.f32 %v1627, 1.442695
    %v1629 = vpow.pop %v1628
    %v1630 = vadd.f32 %v1629, 1.0
    %v1631 = vrcp.pop %v1630
    %v1632 = vmul.f32 1.0, %v1631
    %v1633 = vxor.u32 %v1624, 2147483648
    %v1634 = vmul.f32 %v1633, 1.442695
    %v1635 = vpow.pop %v1634
    %v1636 = vadd.f32 %v1635, 1.0
    %v1637 = vrcp.pop %v1636
    %v1638 = vmul.f32 1.0, %v1637
    %v1639 = vtanh.pop %v1625
    %v1640 = vxor.u32 %v1626, 2147483648
    %v1641 = vmul.f32 %v1640, 1.442695
    %v1642 = vpow.pop %v1641
    %v1643 = vadd.f32 %v1642, 1.0
    %v1644 = vrcp.pop %v1643
    %v1645 = vmul.f32 1.0, %v1644
    %v1646 = vmul.f32 %v1638, %v1279
    %v1647 = vmul.f32 %v1632, %v1639
    %v1648 = vadd.f32 %v1646, %v1647
    %v1649 = vtanh.pop %v1648
    %v1650 = vmul.f32 %v1645, %v1649
    %v1651 = vpack.c.bf16 %v1650, %v1650
    %v1653 = vsel %vm544, %v1651, 0
    %1655 = vmatprep.subr.bf16.mxu0 %v525
    %1656 = vmatpush1.bf16.msra.mxu0 %v524
    %1657 = vmatprep.subr.bf16.mxu0 %v530
    %1658 = vmatpush1.bf16.msra.mxu0 %v529
    %1659 = vmatprep.subr.bf16.mxu0 0
    %1660 = vmatpush1.bf16.msra.mxu0 0
    %1661 = vmatprep.subr.bf16.mxu0 0
    %1662 = vmatpush1.bf16.msra.mxu0 0
    %1663 = vmatprep.subr.bf16.mxu0 0
    %1664 = vmatpush1.bf16.msra.mxu0 0
    %1665 = vmatprep.subr.bf16.mxu0 0
    %1666 = vmatpush1.bf16.msra.mxu0 0
    %1667 = vmatprep.subr.bf16.mxu0 0
    %1668 = vmatpush1.bf16.msra.mxu0 0
    %1669 = vmatprep.subr.bf16.mxu0 0
    %1670 = vmatpush1.bf16.msra.mxu0 0
    %1671 = vmatprep.subr.bf16.mxu0 0
    %1672 = vmatpush1.bf16.msra.mxu0 0
    %1673 = vmatprep.subr.bf16.mxu0 0
    %1674 = vmatpush1.bf16.msra.mxu0 0
    %1675 = vmatprep.subr.bf16.mxu0 0
    %1676 = vmatpush1.bf16.msra.mxu0 0
    %1677 = vmatprep.subr.bf16.mxu0 0
    %1678 = vmatpush1.bf16.msra.mxu0 0
    %1679 = vmatprep.subr.bf16.mxu0 0
    %1680 = vmatpush1.bf16.msra.mxu0 0
    %1681 = vmatprep.subr.bf16.mxu0 0
    %1682 = vmatpush1.bf16.msra.mxu0 0
    %1683 = vmatprep.subr.bf16.mxu0 0
    %1684 = vmatpush1.bf16.msra.mxu0 0
    %1685 = vmatprep.subr.bf16.mxu0 0
    %1686 = vmatpush1.bf16.msra.mxu0 0
    %1687 = vmatprep.mubr.bf16.mxu0 0
    %1688 = vmatmul.mubr.bf16.gmra.mrb[0].mxu0 %v1653
    %v1689 = vpop.f32.mrb[0].mxu0
    %v1690 = vadd.f32 0.0, %v1689
    %v1691 = vpop.f32.mrb[0].mxu0
    %v1692 = vadd.f32 0.0, %v1691
    %v1693 = vpop.f32.mrb[0].mxu0
    %v1694 = vpop.f32.mrb[0].mxu0
    %1695 = vdwg.mxu0
    %1696 = vmatprep.subr.bf16.mxu0 %v527
    %1697 = vmatpush1.bf16.msra.mxu0 %v526
    %1698 = vmatprep.subr.bf16.mxu0 %v532
    %1699 = vmatpush1.bf16.msra.mxu0 %v531
    %1700 = vmatprep.subr.bf16.mxu0 0
    %1701 = vmatpush1.bf16.msra.mxu0 0
    %1702 = vmatprep.subr.bf16.mxu0 0
    %1703 = vmatpush1.bf16.msra.mxu0 0
    %1704 = vmatprep.subr.bf16.mxu0 0
    %1705 = vmatpush1.bf16.msra.mxu0 0
    %1706 = vmatprep.subr.bf16.mxu0 0
    %1707 = vmatpush1.bf16.msra.mxu0 0
    %1708 = vmatprep.subr.bf16.mxu0 0
    %1709 = vmatpush1.bf16.msra.mxu0 0
    %1710 = vmatprep.subr.bf16.mxu0 0
    %1711 = vmatpush1.bf16.msra.mxu0 0
    %1712 = vmatprep.subr.bf16.mxu0 0
    %1713 = vmatpush1.bf16.msra.mxu0 0
    %1714 = vmatprep.subr.bf16.mxu0 0
    %1715 = vmatpush1.bf16.msra.mxu0 0
    %1716 = vmatprep.subr.bf16.mxu0 0
    %1717 = vmatpush1.bf16.msra.mxu0 0
    %1718 = vmatprep.subr.bf16.mxu0 0
    %1719 = vmatpush1.bf16.msra.mxu0 0
    %1720 = vmatprep.subr.bf16.mxu0 0
    %1721 = vmatpush1.bf16.msra.mxu0 0
    %1722 = vmatprep.subr.bf16.mxu0 0
    %1723 = vmatpush1.bf16.msra.mxu0 0
    %1724 = vmatprep.subr.bf16.mxu0 0
    %1725 = vmatpush1.bf16.msra.mxu0 0
    %1726 = vmatprep.subr.bf16.mxu0 0
    %1727 = vmatpush1.bf16.msra.mxu0 0
    %1728 = vmatprep.mubr.bf16.mxu0 0
    %1729 = vmatmul.mubr.bf16.gmra.mrb[0].mxu0 %v1653
    %v1730 = vpop.f32.mrb[0].mxu0
    %v1731 = vadd.f32 0.0, %v1730
    %v1732 = vpop.f32.mrb[0].mxu0
    %v1733 = vadd.f32 0.0, %v1732
    %v1734 = vpop.f32.mrb[0].mxu0
    %v1735 = vpop.f32.mrb[0].mxu0
    %1736 = vdwg.mxu0
    %1737 = vmatprep.subr.bf16.mxu0 0
    %1738 = vmatpush1.bf16.msra.mxu0 %v528
    %1739 = vmatprep.subr.bf16.mxu0 0
    %1740 = vmatpush1.bf16.msra.mxu0 %v533
    %1741 = vmatprep.subr.bf16.mxu0 0
    %1742 = vmatpush1.bf16.msra.mxu0 0
    %1743 = vmatprep.subr.bf16.mxu0 0
    %1744 = vmatpush1.bf16.msra.mxu0 0
    %1745 = vmatprep.subr.bf16.mxu0 0
    %1746 = vmatpush1.bf16.msra.mxu0 0
    %1747 = vmatprep.subr.bf16.mxu0 0
    %1748 = vmatpush1.bf16.msra.mxu0 0
    %1749 = vmatprep.subr.bf16.mxu0 0
    %1750 = vmatpush1.bf16.msra.mxu0 0
    %1751 = vmatprep.subr.bf16.mxu0 0
    %1752 = vmatpush1.bf16.msra.mxu0 0
    %1753 = vmatprep.subr.bf16.mxu0 0
    %1754 = vmatpush1.bf16.msra.mxu0 0
    %1755 = vmatprep.subr.bf16.mxu0 0
    %1756 = vmatpush1.bf16.msra.mxu0 0
    %1757 = vmatprep.subr.bf16.mxu0 0
    %1758 = vmatpush1.bf16.msra.mxu0 0
    %1759 = vmatprep.subr.bf16.mxu0 0
    %1760 = vmatpush1.bf16.msra.mxu0 0
    %1761 = vmatprep.subr.bf16.mxu0 0
    %1762 = vmatpush1.bf16.msra.mxu0 0
    %1763 = vmatprep.subr.bf16.mxu0 0
    %1764 = vmatpush1.bf16.msra.mxu0 0
    %1765 = vmatprep.subr.bf16.mxu0 0
    %1766 = vmatpush1.bf16.msra.mxu0 0
    %1767 = vmatprep.subr.bf16.mxu0 0
    %1768 = vmatpush1.bf16.msra.mxu0 0
    %1769 = vmatprep.mubr.bf16.mxu0 0
    %1770 = vmatmul.mubr.bf16.gmra.mrb[0].mxu0 %v1653
    %v1771 = vpop.f32.mrb[0].mxu0
    %v1772 = vadd.f32 0.0, %v1771
    %v1773 = vpop.f32.mrb[0].mxu0
    %v1774 = vpop.f32.mrb[0].mxu0
    %v1775 = vpop.f32.mrb[0].mxu0
    %1776 = vdwg.mxu0
    %v1777 = vadd.f32 %v1772, %v215
    %vm1778 = vcmp.gt.f32.partialorder %v1777, 0.0
    %v1779 = vmul.f32 %v1777, %v1777
    %v1780 = vadd.f32 %v1779, 1.0
    %v1781 = vrsqrt.pop %v1780
    %v1782 = vmul.f32 %v1777, %v1781
    %v1783 = vsel %vm1778, %v1777, %v1782
    %v1784 = vadd.f32 %v1783, 1.005
    %v1785 = vtanh.pop %v1777
    %v1786 = vmul.f32 %v1785, 0.999
    %v1787 = vadd.f32 %v1786, 1.0
    %v1788 = vmul.f32 %v1787, 0.5
    %v1789 = vsel %vm221, %v1784, %v1788
    %v1790 = vsel %vm218, %v1777, %v1789
    %1791 = vst [vmem:[#allocation7 + $0x6] sm:$0x3] %v1790
    %v1792 = vadd.f32 %v147, %v1490
    %v1793 = vadd.f32 %v149, %v1492
    %v1794 = vadd.f32 %v188, %v1531
    %v1795 = vadd.f32 %v190, %v1533
    %v1796 = vxor.u32 %v1792, 2147483648
    %v1797 = vmul.f32 %v1796, 1.442695
    %v1798 = vpow.pop %v1797
    %v1799 = vadd.f32 %v1798, 1.0
    %v1800 = vrcp.pop %v1799
    %v1801 = vmul.f32 1.0, %v1800
    %v1802 = vxor.u32 %v1793, 2147483648
    %v1803 = vmul.f32 %v1802, 1.442695
    %v1804 = vpow.pop %v1803
    %v1805 = vadd.f32 %v1804, 1.0
    %v1806 = vrcp.pop %v1805
    %v1807 = vmul.f32 1.0, %v1806
    %v1808 = vtanh.pop %v1794
    %v1809 = vxor.u32 %v1795, 2147483648
    %v1810 = vmul.f32 %v1809, 1.442695
    %v1811 = vpow.pop %v1810
    %v1812 = vadd.f32 %v1811, 1.0
    %v1813 = vrcp.pop %v1812
    %v1814 = vmul.f32 1.0, %v1813
    %v1815 = vmul.f32 %v1807, %v1448
    %v1816 = vmul.f32 %v1801, %v1808
    %v1817 = vadd.f32 %v1815, %v1816
    %v1818 = vtanh.pop %v1817
    %v1819 = vmul.f32 %v1814, %v1818
    %v1820 = vpack.c.bf16 %v1819, %v1819
    %v1822 = vsel %vm291, %v1820, 0
    %1824 = vmatprep.subr.bf16.mxu0 %v276
    %1825 = vmatpush1.bf16.msra.mxu0 %v275
    %1826 = vmatprep.subr.bf16.mxu0 0
    %1827 = vmatpush1.bf16.msra.mxu0 0
    %1828 = vmatprep.subr.bf16.mxu0 0
    %1829 = vmatpush1.bf16.msra.mxu0 0
    %1830 = vmatprep.subr.bf16.mxu0 0
    %1831 = vmatpush1.bf16.msra.mxu0 0
    %1832 = vmatprep.subr.bf16.mxu0 0
    %1833 = vmatpush1.bf16.msra.mxu0 0
    %1834 = vmatprep.subr.bf16.mxu0 0
    %1835 = vmatpush1.bf16.msra.mxu0 0
    %1836 = vmatprep.subr.bf16.mxu0 0
    %1837 = vmatpush1.bf16.msra.mxu0 0
    %1838 = vmatprep.subr.bf16.mxu0 0
    %1839 = vmatpush1.bf16.msra.mxu0 0
    %1840 = vmatprep.subr.bf16.mxu0 0
    %1841 = vmatpush1.bf16.msra.mxu0 0
    %1842 = vmatprep.subr.bf16.mxu0 0
    %1843 = vmatpush1.bf16.msra.mxu0 0
    %1844 = vmatprep.subr.bf16.mxu0 0
    %1845 = vmatpush1.bf16.msra.mxu0 0
    %1846 = vmatprep.subr.bf16.mxu0 0
    %1847 = vmatpush1.bf16.msra.mxu0 0
    %1848 = vmatprep.subr.bf16.mxu0 0
    %1849 = vmatpush1.bf16.msra.mxu0 0
    %1850 = vmatprep.subr.bf16.mxu0 0
    %1851 = vmatpush1.bf16.msra.mxu0 0
    %1852 = vmatprep.subr.bf16.mxu0 0
    %1853 = vmatpush1.bf16.msra.mxu0 0
    %1854 = vmatprep.subr.bf16.mxu0 0
    %1855 = vmatpush1.bf16.msra.mxu0 0
    %1856 = vmatprep.mubr.bf16.mxu0 0
    %1857 = vmatmul.mubr.bf16.gmra.mrb[0].mxu0 %v1822
    %v1858 = vpop.f32.mrb[0].mxu0
    %v1859 = vadd.f32 0.0, %v1858
    %v1860 = vpop.f32.mrb[0].mxu0
    %v1861 = vadd.f32 0.0, %v1860
    %v1862 = vpop.f32.mrb[0].mxu0
    %v1863 = vpop.f32.mrb[0].mxu0
    %1864 = vdwg.mxu0
    %1865 = vmatprep.subr.bf16.mxu0 %v278
    %1866 = vmatpush1.bf16.msra.mxu0 %v277
    %1867 = vmatprep.subr.bf16.mxu0 0
    %1868 = vmatpush1.bf16.msra.mxu0 0
    %1869 = vmatprep.subr.bf16.mxu0 0
    %1870 = vmatpush1.bf16.msra.mxu0 0
    %1871 = vmatprep.subr.bf16.mxu0 0
    %1872 = vmatpush1.bf16.msra.mxu0 0
    %1873 = vmatprep.subr.bf16.mxu0 0
    %1874 = vmatpush1.bf16.msra.mxu0 0
    %1875 = vmatprep.subr.bf16.mxu0 0
    %1876 = vmatpush1.bf16.msra.mxu0 0
    %1877 = vmatprep.subr.bf16.mxu0 0
    %1878 = vmatpush1.bf16.msra.mxu0 0
    %1879 = vmatprep.subr.bf16.mxu0 0
    %1880 = vmatpush1.bf16.msra.mxu0 0
    %1881 = vmatprep.subr.bf16.mxu0 0
    %1882 = vmatpush1.bf16.msra.mxu0 0
    %1883 = vmatprep.subr.bf16.mxu0 0
    %1884 = vmatpush1.bf16.msra.mxu0 0
    %1885 = vmatprep.subr.bf16.mxu0 0
    %1886 = vmatpush1.bf16.msra.mxu0 0
    %1887 = vmatprep.subr.bf16.mxu0 0
    %1888 = vmatpush1.bf16.msra.mxu0 0
    %1889 = vmatprep.subr.bf16.mxu0 0
    %1890 = vmatpush1.bf16.msra.mxu0 0
    %1891 = vmatprep.subr.bf16.mxu0 0
    %1892 = vmatpush1.bf16.msra.mxu0 0
    %1893 = vmatprep.subr.bf16.mxu0 0
    %1894 = vmatpush1.bf16.msra.mxu0 0
    %1895 = vmatprep.subr.bf16.mxu0 0
    %1896 = vmatpush1.bf16.msra.mxu0 0
    %1897 = vmatprep.mubr.bf16.mxu0 0
    %1898 = vmatmul.mubr.bf16.gmra.mrb[0].mxu0 %v1822
    %v1899 = vpop.f32.mrb[0].mxu0
    %v1900 = vadd.f32 0.0, %v1899
    %v1901 = vpop.f32.mrb[0].mxu0
    %v1902 = vadd.f32 0.0, %v1901
    %v1903 = vpop.f32.mrb[0].mxu0
    %v1904 = vpop.f32.mrb[0].mxu0
    %1905 = vdwg.mxu0
    %1906 = vmatprep.subr.bf16.mxu0 %v280
    %1907 = vmatpush1.bf16.msra.mxu0 %v279
    %1908 = vmatprep.subr.bf16.mxu0 0
    %1909 = vmatpush1.bf16.msra.mxu0 0
    %1910 = vmatprep.subr.bf16.mxu0 0
    %1911 = vmatpush1.bf16.msra.mxu0 0
    %1912 = vmatprep.subr.bf16.mxu0 0
    %1913 = vmatpush1.bf16.msra.mxu0 0
    %1914 = vmatprep.subr.bf16.mxu0 0
    %1915 = vmatpush1.bf16.msra.mxu0 0
    %1916 = vmatprep.subr.bf16.mxu0 0
    %1917 = vmatpush1.bf16.msra.mxu0 0
    %1918 = vmatprep.subr.bf16.mxu0 0
    %1919 = vmatpush1.bf16.msra.mxu0 0
    %1920 = vmatprep.subr.bf16.mxu0 0
    %1921 = vmatpush1.bf16.msra.mxu0 0
    %1922 = vmatprep.subr.bf16.mxu0 0
    %1923 = vmatpush1.bf16.msra.mxu0 0
    %1924 = vmatprep.subr.bf16.mxu0 0
    %1925 = vmatpush1.bf16.msra.mxu0 0
    %1926 = vmatprep.subr.bf16.mxu0 0
    %1927 = vmatpush1.bf16.msra.mxu0 0
    %1928 = vmatprep.subr.bf16.mxu0 0
    %1929 = vmatpush1.bf16.msra.mxu0 0
    %1930 = vmatprep.subr.bf16.mxu0 0
    %1931 = vmatpush1.bf16.msra.mxu0 0
    %1932 = vmatprep.subr.bf16.mxu0 0
    %1933 = vmatpush1.bf16.msra.mxu0 0
    %1934 = vmatprep.subr.bf16.mxu0 0
    %1935 = vmatpush1.bf16.msra.mxu0 0
    %1936 = vmatprep.subr.bf16.mxu0 0
    %1937 = vmatpush1.bf16.msra.mxu0 0
    %1938 = vmatprep.mubr.bf16.mxu0 0
    %1939 = vmatmul.mubr.bf16.gmra.mrb[0].mxu0 %v1822
    %v1940 = vpop.f32.mrb[0].mxu0
    %v1941 = vadd.f32 0.0, %v1940
    %v1942 = vpop.f32.mrb[0].mxu0
    %v1943 = vadd.f32 0.0, %v1942
    %v1944 = vpop.f32.mrb[0].mxu0
    %v1945 = vpop.f32.mrb[0].mxu0
    %1946 = vdwg.mxu0
    %1947 = vmatprep.subr.bf16.mxu0 %v282
    %1948 = vmatpush1.bf16.msra.mxu0 %v281
    %1949 = vmatprep.subr.bf16.mxu0 0
    %1950 = vmatpush1.bf16.msra.mxu0 0
    %1951 = vmatprep.subr.bf16.mxu0 0
    %1952 = vmatpush1.bf16.msra.mxu0 0
    %1953 = vmatprep.subr.bf16.mxu0 0
    %1954 = vmatpush1.bf16.msra.mxu0 0
    %1955 = vmatprep.subr.bf16.mxu0 0
    %1956 = vmatpush1.bf16.msra.mxu0 0
    %1957 = vmatprep.subr.bf16.mxu0 0
    %1958 = vmatpush1.bf16.msra.mxu0 0
    %1959 = vmatprep.subr.bf16.mxu0 0
    %1960 = vmatpush1.bf16.msra.mxu0 0
    %1961 = vmatprep.subr.bf16.mxu0 0
    %1962 = vmatpush1.bf16.msra.mxu0 0
    %1963 = vmatprep.subr.bf16.mxu0 0
    %1964 = vmatpush1.bf16.msra.mxu0 0
    %1965 = vmatprep.subr.bf16.mxu0 0
    %1966 = vmatpush1.bf16.msra.mxu0 0
    %1967 = vmatprep.subr.bf16.mxu0 0
    %1968 = vmatpush1.bf16.msra.mxu0 0
    %1969 = vmatprep.subr.bf16.mxu0 0
    %1970 = vmatpush1.bf16.msra.mxu0 0
    %1971 = vmatprep.subr.bf16.mxu0 0
    %1972 = vmatpush1.bf16.msra.mxu0 0
    %1973 = vmatprep.subr.bf16.mxu0 0
    %1974 = vmatpush1.bf16.msra.mxu0 0
    %1975 = vmatprep.subr.bf16.mxu0 0
    %1976 = vmatpush1.bf16.msra.mxu0 0
    %1977 = vmatprep.subr.bf16.mxu0 0
    %1978 = vmatpush1.bf16.msra.mxu0 0
    %1979 = vmatprep.mubr.bf16.mxu0 0
    %1980 = vmatmul.mubr.bf16.gmra.mrb[0].mxu0 %v1822
    %v1981 = vpop.f32.mrb[0].mxu0
    %v1982 = vadd.f32 0.0, %v1981
    %v1983 = vpop.f32.mrb[0].mxu0
    %v1984 = vadd.f32 0.0, %v1983
    %v1985 = vpop.f32.mrb[0].mxu0
    %v1986 = vpop.f32.mrb[0].mxu0
    %1987 = vdwg.mxu0
    %v1988 = vadd.f32 %v1941, %v197
    %v1989 = vadd.f32 %v1943, %v201
    %v1990 = vadd.f32 %v1982, %v205
    %v1991 = vadd.f32 %v1984, %v209
    %v1992 = vadd.f32 %v1988, %v1690
    %v1993 = vadd.f32 %v1989, %v1692
    %v1994 = vadd.f32 %v1990, %v1731
    %v1995 = vadd.f32 %v1991, %v1733
    %v1996 = vxor.u32 %v1992, 2147483648
    %v1997 = vmul.f32 %v1996, 1.442695
    %v1998 = vpow.pop %v1997
    %v1999 = vadd.f32 %v1998, 1.0
    %v2000 = vrcp.pop %v1999
    %v2001 = vmul.f32 1.0, %v2000
    %v2002 = vxor.u32 %v1993, 2147483648
    %v2003 = vmul.f32 %v2002, 1.442695
    %v2004 = vpow.pop %v2003
    %v2005 = vadd.f32 %v2004, 1.0
    %v2006 = vrcp.pop %v2005
    %v2007 = vmul.f32 1.0, %v2006
    %v2008 = vtanh.pop %v1994
    %v2009 = vxor.u32 %v1995, 2147483648
    %v2010 = vmul.f32 %v2009, 1.442695
    %v2011 = vpow.pop %v2010
    %v2012 = vadd.f32 %v2011, 1.0
    %v2013 = vrcp.pop %v2012
    %v2014 = vmul.f32 1.0, %v2013
    %v2015 = vmul.f32 %v2007, %v1648
    %v2016 = vmul.f32 %v2001, %v2008
    %v2017 = vadd.f32 %v2015, %v2016
    %v2018 = vtanh.pop %v2017
    %v2019 = vmul.f32 %v2014, %v2018
    %v2020 = vpack.c.bf16 %v2019, %v2019
    %v2022 = vsel %vm544, %v2020, 0
    %2024 = vmatprep.subr.bf16.mxu0 %v525
    %2025 = vmatpush1.bf16.msra.mxu0 %v524
    %2026 = vmatprep.subr.bf16.mxu0 %v530
    %2027 = vmatpush1.bf16.msra.mxu0 %v529
    %2028 = vmatprep.subr.bf16.mxu0 0
    %2029 = vmatpush1.bf16.msra.mxu0 0
    %2030 = vmatprep.subr.bf16.mxu0 0
    %2031 = vmatpush1.bf16.msra.mxu0 0
    %2032 = vmatprep.subr.bf16.mxu0 0
    %2033 = vmatpush1.bf16.msra.mxu0 0
    %2034 = vmatprep.subr.bf16.mxu0 0
    %2035 = vmatpush1.bf16.msra.mxu0 0
    %2036 = vmatprep.subr.bf16.mxu0 0
    %2037 = vmatpush1.bf16.msra.mxu0 0
    %2038 = vmatprep.subr.bf16.mxu0 0
    %2039 = vmatpush1.bf16.msra.mxu0 0
    %2040 = vmatprep.subr.bf16.mxu0 0
    %2041 = vmatpush1.bf16.msra.mxu0 0
    %2042 = vmatprep.subr.bf16.mxu0 0
    %2043 = vmatpush1.bf16.msra.mxu0 0
    %2044 = vmatprep.subr.bf16.mxu0 0
    %2045 = vmatpush1.bf16.msra.mxu0 0
    %2046 = vmatprep.subr.bf16.mxu0 0
    %2047 = vmatpush1.bf16.msra.mxu0 0
    %2048 = vmatprep.subr.bf16.mxu0 0
    %2049 = vmatpush1.bf16.msra.mxu0 0
    %2050 = vmatprep.subr.bf16.mxu0 0
    %2051 = vmatpush1.bf16.msra.mxu0 0
    %2052 = vmatprep.subr.bf16.mxu0 0
    %2053 = vmatpush1.bf16.msra.mxu0 0
    %2054 = vmatprep.subr.bf16.mxu0 0
    %2055 = vmatpush1.bf16.msra.mxu0 0
    %2056 = vmatprep.mubr.bf16.mxu0 0
    %2057 = vmatmul.mubr.bf16.gmra.mrb[0].mxu0 %v2022
    %v2058 = vpop.f32.mrb[0].mxu0
    %v2059 = vadd.f32 0.0, %v2058
    %v2060 = vpop.f32.mrb[0].mxu0
    %v2061 = vadd.f32 0.0, %v2060
    %v2062 = vpop.f32.mrb[0].mxu0
    %v2063 = vpop.f32.mrb[0].mxu0
    %2064 = vdwg.mxu0
    %2065 = vmatprep.subr.bf16.mxu0 %v527
    %2066 = vmatpush1.bf16.msra.mxu0 %v526
    %2067 = vmatprep.subr.bf16.mxu0 %v532
    %2068 = vmatpush1.bf16.msra.mxu0 %v531
    %2069 = vmatprep.subr.bf16.mxu0 0
    %2070 = vmatpush1.bf16.msra.mxu0 0
    %2071 = vmatprep.subr.bf16.mxu0 0
    %2072 = vmatpush1.bf16.msra.mxu0 0
    %2073 = vmatprep.subr.bf16.mxu0 0
    %2074 = vmatpush1.bf16.msra.mxu0 0
    %2075 = vmatprep.subr.bf16.mxu0 0
    %2076 = vmatpush1.bf16.msra.mxu0 0
    %2077 = vmatprep.subr.bf16.mxu0 0
    %2078 = vmatpush1.bf16.msra.mxu0 0
    %2079 = vmatprep.subr.bf16.mxu0 0
    %2080 = vmatpush1.bf16.msra.mxu0 0
    %2081 = vmatprep.subr.bf16.mxu0 0
    %2082 = vmatpush1.bf16.msra.mxu0 0
    %2083 = vmatprep.subr.bf16.mxu0 0
    %2084 = vmatpush1.bf16.msra.mxu0 0
    %2085 = vmatprep.subr.bf16.mxu0 0
    %2086 = vmatpush1.bf16.msra.mxu0 0
    %2087 = vmatprep.subr.bf16.mxu0 0
    %2088 = vmatpush1.bf16.msra.mxu0 0
    %2089 = vmatprep.subr.bf16.mxu0 0
    %2090 = vmatpush1.bf16.msra.mxu0 0
    %2091 = vmatprep.subr.bf16.mxu0 0
    %2092 = vmatpush1.bf16.msra.mxu0 0
    %2093 = vmatprep.subr.bf16.mxu0 0
    %2094 = vmatpush1.bf16.msra.mxu0 0
    %2095 = vmatprep.subr.bf16.mxu0 0
    %2096 = vmatpush1.bf16.msra.mxu0 0
    %2097 = vmatprep.mubr.bf16.mxu0 0
    %2098 = vmatmul.mubr.bf16.gmra.mrb[0].mxu0 %v2022
    %v2099 = vpop.f32.mrb[0].mxu0
    %v2100 = vadd.f32 0.0, %v2099
    %v2101 = vpop.f32.mrb[0].mxu0
    %v2102 = vadd.f32 0.0, %v2101
    %v2103 = vpop.f32.mrb[0].mxu0
    %v2104 = vpop.f32.mrb[0].mxu0
    %2105 = vdwg.mxu0
    %2106 = vmatprep.subr.bf16.mxu0 0
    %2107 = vmatpush1.bf16.msra.mxu0 %v528
    %2108 = vmatprep.subr.bf16.mxu0 0
    %2109 = vmatpush1.bf16.msra.mxu0 %v533
    %2110 = vmatprep.subr.bf16.mxu0 0
    %2111 = vmatpush1.bf16.msra.mxu0 0
    %2112 = vmatprep.subr.bf16.mxu0 0
    %2113 = vmatpush1.bf16.msra.mxu0 0
    %2114 = vmatprep.subr.bf16.mxu0 0
    %2115 = vmatpush1.bf16.msra.mxu0 0
    %2116 = vmatprep.subr.bf16.mxu0 0
    %2117 = vmatpush1.bf16.msra.mxu0 0
    %2118 = vmatprep.subr.bf16.mxu0 0
    %2119 = vmatpush1.bf16.msra.mxu0 0
    %2120 = vmatprep.subr.bf16.mxu0 0
    %2121 = vmatpush1.bf16.msra.mxu0 0
    %2122 = vmatprep.subr.bf16.mxu0 0
    %2123 = vmatpush1.bf16.msra.mxu0 0
    %2124 = vmatprep.subr.bf16.mxu0 0
    %2125 = vmatpush1.bf16.msra.mxu0 0
    %2126 = vmatprep.subr.bf16.mxu0 0
    %2127 = vmatpush1.bf16.msra.mxu0 0
    %2128 = vmatprep.subr.bf16.mxu0 0
    %2129 = vmatpush1.bf16.msra.mxu0 0
    %2130 = vmatprep.subr.bf16.mxu0 0
    %2131 = vmatpush1.bf16.msra.mxu0 0
    %2132 = vmatprep.subr.bf16.mxu0 0
    %2133 = vmatpush1.bf16.msra.mxu0 0
    %2134 = vmatprep.subr.bf16.mxu0 0
    %2135 = vmatpush1.bf16.msra.mxu0 0
    %2136 = vmatprep.subr.bf16.mxu0 0
    %2137 = vmatpush1.bf16.msra.mxu0 0
    %2138 = vmatprep.mubr.bf16.mxu0 0
    %2139 = vmatmul.mubr.bf16.gmra.mrb[0].mxu0 %v2022
    %v2140 = vpop.f32.mrb[0].mxu0
    %v2141 = vadd.f32 0.0, %v2140
    %v2142 = vpop.f32.mrb[0].mxu0
    %v2143 = vpop.f32.mrb[0].mxu0
    %v2144 = vpop.f32.mrb[0].mxu0
    %2145 = vdwg.mxu0
    %v2146 = vadd.f32 %v2141, %v215
    %vm2147 = vcmp.gt.f32.partialorder %v2146, 0.0
    %v2148 = vmul.f32 %v2146, %v2146
    %v2149 = vadd.f32 %v2148, 1.0
    %v2150 = vrsqrt.pop %v2149
    %v2151 = vmul.f32 %v2146, %v2150
    %v2152 = vsel %vm2147, %v2146, %v2151
    %v2153 = vadd.f32 %v2152, 1.005
    %v2154 = vtanh.pop %v2146
    %v2155 = vmul.f32 %v2154, 0.999
    %v2156 = vadd.f32 %v2155, 1.0
    %v2157 = vmul.f32 %v2156, 0.5
    %v2158 = vsel %vm221, %v2153, %v2157
    %v2159 = vsel %vm218, %v2146, %v2158
    %2160 = vst [vmem:[#allocation7 + $0x8] sm:$0x3] %v2159
    %v2161 = vadd.f32 %v147, %v1859
    %v2162 = vadd.f32 %v149, %v1861
    %v2163 = vadd.f32 %v188, %v1900
    %v2164 = vadd.f32 %v190, %v1902
    %v2165 = vxor.u32 %v2161, 2147483648
    %v2166 = vmul.f32 %v2165, 1.442695
    %v2167 = vpow.pop %v2166
    %v2168 = vadd.f32 %v2167, 1.0
    %v2169 = vrcp.pop %v2168
    %v2170 = vmul.f32 1.0, %v2169
    %v2171 = vxor.u32 %v2162, 2147483648
    %v2172 = vmul.f32 %v2171, 1.442695
    %v2173 = vpow.pop %v2172
    %v2174 = vadd.f32 %v2173, 1.0
    %v2175 = vrcp.pop %v2174
    %v2176 = vmul.f32 1.0, %v2175
    %v2177 = vtanh.pop %v2163
    %v2178 = vxor.u32 %v2164, 2147483648
    %v2179 = vmul.f32 %v2178, 1.442695
    %v2180 = vpow.pop %v2179
    %v2181 = vadd.f32 %v2180, 1.0
    %v2182 = vrcp.pop %v2181
    %v2183 = vmul.f32 1.0, %v2182
    %v2184 = vmul.f32 %v2176, %v1817
    %v2185 = vmul.f32 %v2170, %v2177
    %v2186 = vadd.f32 %v2184, %v2185
    %v2187 = vtanh.pop %v2186
    %v2188 = vmul.f32 %v2183, %v2187
    %v2189 = vpack.c.bf16 %v2188, %v2188
    %v2191 = vsel %vm291, %v2189, 0
    %2193 = vmatprep.subr.bf16.mxu0 %v276
    %2194 = vmatpush1.bf16.msra.mxu0 %v275
    %2195 = vmatprep.subr.bf16.mxu0 0
    %2196 = vmatpush1.bf16.msra.mxu0 0
    %2197 = vmatprep.subr.bf16.mxu0 0
    %2198 = vmatpush1.bf16.msra.mxu0 0
    %2199 = vmatprep.subr.bf16.mxu0 0
    %2200 = vmatpush1.bf16.msra.mxu0 0
    %2201 = vmatprep.subr.bf16.mxu0 0
    %2202 = vmatpush1.bf16.msra.mxu0 0
    %2203 = vmatprep.subr.bf16.mxu0 0
    %2204 = vmatpush1.bf16.msra.mxu0 0
    %2205 = vmatprep.subr.bf16.mxu0 0
    %2206 = vmatpush1.bf16.msra.mxu0 0
    %2207 = vmatprep.subr.bf16.mxu0 0
    %2208 = vmatpush1.bf16.msra.mxu0 0
    %2209 = vmatprep.subr.bf16.mxu0 0
    %2210 = vmatpush1.bf16.msra.mxu0 0
    %2211 = vmatprep.subr.bf16.mxu0 0
    %2212 = vmatpush1.bf16.msra.mxu0 0
    %2213 = vmatprep.subr.bf16.mxu0 0
    %2214 = vmatpush1.bf16.msra.mxu0 0
    %2215 = vmatprep.subr.bf16.mxu0 0
    %2216 = vmatpush1.bf16.msra.mxu0 0
    %2217 = vmatprep.subr.bf16.mxu0 0
    %2218 = vmatpush1.bf16.msra.mxu0 0
    %2219 = vmatprep.subr.bf16.mxu0 0
    %2220 = vmatpush1.bf16.msra.mxu0 0
    %2221 = vmatprep.subr.bf16.mxu0 0
    %2222 = vmatpush1.bf16.msra.mxu0 0
    %2223 = vmatprep.subr.bf16.mxu0 0
    %2224 = vmatpush1.bf16.msra.mxu0 0
    %2225 = vmatprep.mubr.bf16.mxu0 0
    %2226 = vmatmul.mubr.bf16.gmra.mrb[0].mxu0 %v2191
    %v2227 = vpop.f32.mrb[0].mxu0
    %v2228 = vadd.f32 0.0, %v2227
    %v2229 = vpop.f32.mrb[0].mxu0
    %v2230 = vadd.f32 0.0, %v2229
    %v2231 = vpop.f32.mrb[0].mxu0
    %v2232 = vpop.f32.mrb[0].mxu0
    %2233 = vdwg.mxu0
    %2234 = vmatprep.subr.bf16.mxu0 %v278
    %2235 = vmatpush1.bf16.msra.mxu0 %v277
    %2236 = vmatprep.subr.bf16.mxu0 0
    %2237 = vmatpush1.bf16.msra.mxu0 0
    %2238 = vmatprep.subr.bf16.mxu0 0
    %2239 = vmatpush1.bf16.msra.mxu0 0
    %2240 = vmatprep.subr.bf16.mxu0 0
    %2241 = vmatpush1.bf16.msra.mxu0 0
    %2242 = vmatprep.subr.bf16.mxu0 0
    %2243 = vmatpush1.bf16.msra.mxu0 0
    %2244 = vmatprep.subr.bf16.mxu0 0
    %2245 = vmatpush1.bf16.msra.mxu0 0
    %2246 = vmatprep.subr.bf16.mxu0 0
    %2247 = vmatpush1.bf16.msra.mxu0 0
    %2248 = vmatprep.subr.bf16.mxu0 0
    %2249 = vmatpush1.bf16.msra.mxu0 0
    %2250 = vmatprep.subr.bf16.mxu0 0
    %2251 = vmatpush1.bf16.msra.mxu0 0
    %2252 = vmatprep.subr.bf16.mxu0 0
    %2253 = vmatpush1.bf16.msra.mxu0 0
    %2254 = vmatprep.subr.bf16.mxu0 0
    %2255 = vmatpush1.bf16.msra.mxu0 0
    %2256 = vmatprep.subr.bf16.mxu0 0
    %2257 = vmatpush1.bf16.msra.mxu0 0
    %2258 = vmatprep.subr.bf16.mxu0 0
    %2259 = vmatpush1.bf16.msra.mxu0 0
    %2260 = vmatprep.subr.bf16.mxu0 0
    %2261 = vmatpush1.bf16.msra.mxu0 0
    %2262 = vmatprep.subr.bf16.mxu0 0
    %2263 = vmatpush1.bf16.msra.mxu0 0
    %2264 = vmatprep.subr.bf16.mxu0 0
    %2265 = vmatpush1.bf16.msra.mxu0 0
    %2266 = vmatprep.mubr.bf16.mxu0 0
    %2267 = vmatmul.mubr.bf16.gmra.mrb[0].mxu0 %v2191
    %v2268 = vpop.f32.mrb[0].mxu0
    %v2269 = vadd.f32 0.0, %v2268
    %v2270 = vpop.f32.mrb[0].mxu0
    %v2271 = vadd.f32 0.0, %v2270
    %v2272 = vpop.f32.mrb[0].mxu0
    %v2273 = vpop.f32.mrb[0].mxu0
    %2274 = vdwg.mxu0
    %2275 = vmatprep.subr.bf16.mxu0 %v280
    %2276 = vmatpush1.bf16.msra.mxu0 %v279
    %2277 = vmatprep.subr.bf16.mxu0 0
    %2278 = vmatpush1.bf16.msra.mxu0 0
    %2279 = vmatprep.subr.bf16.mxu0 0
    %2280 = vmatpush1.bf16.msra.mxu0 0
    %2281 = vmatprep.subr.bf16.mxu0 0
    %2282 = vmatpush1.bf16.msra.mxu0 0
    %2283 = vmatprep.subr.bf16.mxu0 0
    %2284 = vmatpush1.bf16.msra.mxu0 0
    %2285 = vmatprep.subr.bf16.mxu0 0
    %2286 = vmatpush1.bf16.msra.mxu0 0
    %2287 = vmatprep.subr.bf16.mxu0 0
    %2288 = vmatpush1.bf16.msra.mxu0 0
    %2289 = vmatprep.subr.bf16.mxu0 0
    %2290 = vmatpush1.bf16.msra.mxu0 0
    %2291 = vmatprep.subr.bf16.mxu0 0
    %2292 = vmatpush1.bf16.msra.mxu0 0
    %2293 = vmatprep.subr.bf16.mxu0 0
    %2294 = vmatpush1.bf16.msra.mxu0 0
    %2295 = vmatprep.subr.bf16.mxu0 0
    %2296 = vmatpush1.bf16.msra.mxu0 0
    %2297 = vmatprep.subr.bf16.mxu0 0
    %2298 = vmatpush1.bf16.msra.mxu0 0
    %2299 = vmatprep.subr.bf16.mxu0 0
    %2300 = vmatpush1.bf16.msra.mxu0 0
    %2301 = vmatprep.subr.bf16.mxu0 0
    %2302 = vmatpush1.bf16.msra.mxu0 0
    %2303 = vmatprep.subr.bf16.mxu0 0
    %2304 = vmatpush1.bf16.msra.mxu0 0
    %2305 = vmatprep.subr.bf16.mxu0 0
    %2306 = vmatpush1.bf16.msra.mxu0 0
    %2307 = vmatprep.mubr.bf16.mxu0 0
    %2308 = vmatmul.mubr.bf16.gmra.mrb[0].mxu0 %v2191
    %v2309 = vpop.f32.mrb[0].mxu0
    %v2310 = vadd.f32 0.0, %v2309
    %v2311 = vpop.f32.mrb[0].mxu0
    %v2312 = vadd.f32 0.0, %v2311
    %v2313 = vpop.f32.mrb[0].mxu0
    %v2314 = vpop.f32.mrb[0].mxu0
    %2315 = vdwg.mxu0
    %2316 = vmatprep.subr.bf16.mxu0 %v282
    %2317 = vmatpush1.bf16.msra.mxu0 %v281
    %2318 = vmatprep.subr.bf16.mxu0 0
    %2319 = vmatpush1.bf16.msra.mxu0 0
    %2320 = vmatprep.subr.bf16.mxu0 0
    %2321 = vmatpush1.bf16.msra.mxu0 0
    %2322 = vmatprep.subr.bf16.mxu0 0
    %2323 = vmatpush1.bf16.msra.mxu0 0
    %2324 = vmatprep.subr.bf16.mxu0 0
    %2325 = vmatpush1.bf16.msra.mxu0 0
    %2326 = vmatprep.subr.bf16.mxu0 0
    %2327 = vmatpush1.bf16.msra.mxu0 0
    %2328 = vmatprep.subr.bf16.mxu0 0
    %2329 = vmatpush1.bf16.msra.mxu0 0
    %2330 = vmatprep.subr.bf16.mxu0 0
    %2331 = vmatpush1.bf16.msra.mxu0 0
    %2332 = vmatprep.subr.bf16.mxu0 0
    %2333 = vmatpush1.bf16.msra.mxu0 0
    %2334 = vmatprep.subr.bf16.mxu0 0
    %2335 = vmatpush1.bf16.msra.mxu0 0
    %2336 = vmatprep.subr.bf16.mxu0 0
    %2337 = vmatpush1.bf16.msra.mxu0 0
    %2338 = vmatprep.subr.bf16.mxu0 0
    %2339 = vmatpush1.bf16.msra.mxu0 0
    %2340 = vmatprep.subr.bf16.mxu0 0
    %2341 = vmatpush1.bf16.msra.mxu0 0
    %2342 = vmatprep.subr.bf16.mxu0 0
    %2343 = vmatpush1.bf16.msra.mxu0 0
    %2344 = vmatprep.subr.bf16.mxu0 0
    %2345 = vmatpush1.bf16.msra.mxu0 0
    %2346 = vmatprep.subr.bf16.mxu0 0
    %2347 = vmatpush1.bf16.msra.mxu0 0
    %2348 = vmatprep.mubr.bf16.mxu0 0
    %2349 = vmatmul.mubr.bf16.gmra.mrb[0].mxu0 %v2191
    %v2350 = vpop.f32.mrb[0].mxu0
    %v2351 = vadd.f32 0.0, %v2350
    %v2352 = vpop.f32.mrb[0].mxu0
    %v2353 = vadd.f32 0.0, %v2352
    %v2354 = vpop.f32.mrb[0].mxu0
    %v2355 = vpop.f32.mrb[0].mxu0
    %2356 = vdwg.mxu0
    %v2357 = vadd.f32 %v2310, %v197
    %v2358 = vadd.f32 %v2312, %v201
    %v2359 = vadd.f32 %v2351, %v205
    %v2360 = vadd.f32 %v2353, %v209
    %v2361 = vadd.f32 %v2357, %v2059
    %v2362 = vadd.f32 %v2358, %v2061
    %v2363 = vadd.f32 %v2359, %v2100
    %v2364 = vadd.f32 %v2360, %v2102
    %v2365 = vxor.u32 %v2361, 2147483648
    %v2366 = vmul.f32 %v2365, 1.442695
    %v2367 = vpow.pop %v2366
    %v2368 = vadd.f32 %v2367, 1.0
    %v2369 = vrcp.pop %v2368
    %v2370 = vmul.f32 1.0, %v2369
    %v2371 = vxor.u32 %v2362, 2147483648
    %v2372 = vmul.f32 %v2371, 1.442695
    %v2373 = vpow.pop %v2372
    %v2374 = vadd.f32 %v2373, 1.0
    %v2375 = vrcp.pop %v2374
    %v2376 = vmul.f32 1.0, %v2375
    %v2377 = vtanh.pop %v2363
    %v2378 = vxor.u32 %v2364, 2147483648
    %v2379 = vmul.f32 %v2378, 1.442695
    %v2380 = vpow.pop %v2379
    %v2381 = vadd.f32 %v2380, 1.0
    %v2382 = vrcp.pop %v2381
    %v2383 = vmul.f32 1.0, %v2382
    %v2384 = vmul.f32 %v2376, %v2017
    %v2385 = vmul.f32 %v2370, %v2377
    %v2386 = vadd.f32 %v2384, %v2385
    %v2387 = vtanh.pop %v2386
    %v2388 = vmul.f32 %v2383, %v2387
    %v2389 = vpack.c.bf16 %v2388, %v2388
    %v2391 = vsel %vm544, %v2389, 0
    %2393 = vmatprep.subr.bf16.mxu0 %v525
    %2394 = vmatpush1.bf16.msra.mxu0 %v524
    %2395 = vmatprep.subr.bf16.mxu0 %v530
    %2396 = vmatpush1.bf16.msra.mxu0 %v529
    %2397 = vmatprep.subr.bf16.mxu0 0
    %2398 = vmatpush1.bf16.msra.mxu0 0
    %2399 = vmatprep.subr.bf16.mxu0 0
    %2400 = vmatpush1.bf16.msra.mxu0 0
    %2401 = vmatprep.subr.bf16.mxu0 0
    %2402 = vmatpush1.bf16.msra.mxu0 0
    %2403 = vmatprep.subr.bf16.mxu0 0
    %2404 = vmatpush1.bf16.msra.mxu0 0
    %2405 = vmatprep.subr.bf16.mxu0 0
    %2406 = vmatpush1.bf16.msra.mxu0 0
    %2407 = vmatprep.subr.bf16.mxu0 0
    %2408 = vmatpush1.bf16.msra.mxu0 0
    %2409 = vmatprep.subr.bf16.mxu0 0
    %2410 = vmatpush1.bf16.msra.mxu0 0
    %2411 = vmatprep.subr.bf16.mxu0 0
    %2412 = vmatpush1.bf16.msra.mxu0 0
    %2413 = vmatprep.subr.bf16.mxu0 0
    %2414 = vmatpush1.bf16.msra.mxu0 0
    %2415 = vmatprep.subr.bf16.mxu0 0
    %2416 = vmatpush1.bf16.msra.mxu0 0
    %2417 = vmatprep.subr.bf16.mxu0 0
    %2418 = vmatpush1.bf16.msra.mxu0 0
    %2419 = vmatprep.subr.bf16.mxu0 0
    %2420 = vmatpush1.bf16.msra.mxu0 0
    %2421 = vmatprep.subr.bf16.mxu0 0
    %2422 = vmatpush1.bf16.msra.mxu0 0
    %2423 = vmatprep.subr.bf16.mxu0 0
    %2424 = vmatpush1.bf16.msra.mxu0 0
    %2425 = vmatprep.mubr.bf16.mxu0 0
    %2426 = vmatmul.mubr.bf16.gmra.mrb[0].mxu0 %v2391
    %v2427 = vpop.f32.mrb[0].mxu0
    %v2428 = vadd.f32 0.0, %v2427
    %v2429 = vpop.f32.mrb[0].mxu0
    %v2430 = vadd.f32 0.0, %v2429
    %v2431 = vpop.f32.mrb[0].mxu0
    %v2432 = vpop.f32.mrb[0].mxu0
    %2433 = vdwg.mxu0
    %2434 = vmatprep.subr.bf16.mxu0 %v527
    %2435 = vmatpush1.bf16.msra.mxu0 %v526
    %2436 = vmatprep.subr.bf16.mxu0 %v532
    %2437 = vmatpush1.bf16.msra.mxu0 %v531
    %2438 = vmatprep.subr.bf16.mxu0 0
    %2439 = vmatpush1.bf16.msra.mxu0 0
    %2440 = vmatprep.subr.bf16.mxu0 0
    %2441 = vmatpush1.bf16.msra.mxu0 0
    %2442 = vmatprep.subr.bf16.mxu0 0
    %2443 = vmatpush1.bf16.msra.mxu0 0
    %2444 = vmatprep.subr.bf16.mxu0 0
    %2445 = vmatpush1.bf16.msra.mxu0 0
    %2446 = vmatprep.subr.bf16.mxu0 0
    %2447 = vmatpush1.bf16.msra.mxu0 0
    %2448 = vmatprep.subr.bf16.mxu0 0
    %2449 = vmatpush1.bf16.msra.mxu0 0
    %2450 = vmatprep.subr.bf16.mxu0 0
    %2451 = vmatpush1.bf16.msra.mxu0 0
    %2452 = vmatprep.subr.bf16.mxu0 0
    %2453 = vmatpush1.bf16.msra.mxu0 0
    %2454 = vmatprep.subr.bf16.mxu0 0
    %2455 = vmatpush1.bf16.msra.mxu0 0
    %2456 = vmatprep.subr.bf16.mxu0 0
    %2457 = vmatpush1.bf16.msra.mxu0 0
    %2458 = vmatprep.subr.bf16.mxu0 0
    %2459 = vmatpush1.bf16.msra.mxu0 0
    %2460 = vmatprep.subr.bf16.mxu0 0
    %2461 = vmatpush1.bf16.msra.mxu0 0
    %2462 = vmatprep.subr.bf16.mxu0 0
    %2463 = vmatpush1.bf16.msra.mxu0 0
    %2464 = vmatprep.subr.bf16.mxu0 0
    %2465 = vmatpush1.bf16.msra.mxu0 0
    %2466 = vmatprep.mubr.bf16.mxu0 0
    %2467 = vmatmul.mubr.bf16.gmra.mrb[0].mxu0 %v2391
    %v2468 = vpop.f32.mrb[0].mxu0
    %v2469 = vadd.f32 0.0, %v2468
    %v2470 = vpop.f32.mrb[0].mxu0
    %v2471 = vadd.f32 0.0, %v2470
    %v2472 = vpop.f32.mrb[0].mxu0
    %v2473 = vpop.f32.mrb[0].mxu0
    %2474 = vdwg.mxu0
    %2475 = vmatprep.subr.bf16.mxu0 0
    %2476 = vmatpush1.bf16.msra.mxu0 %v528
    %2477 = vmatprep.subr.bf16.mxu0 0
    %2478 = vmatpush1.bf16.msra.mxu0 %v533
    %2479 = vmatprep.subr.bf16.mxu0 0
    %2480 = vmatpush1.bf16.msra.mxu0 0
    %2481 = vmatprep.subr.bf16.mxu0 0
    %2482 = vmatpush1.bf16.msra.mxu0 0
    %2483 = vmatprep.subr.bf16.mxu0 0
    %2484 = vmatpush1.bf16.msra.mxu0 0
    %2485 = vmatprep.subr.bf16.mxu0 0
    %2486 = vmatpush1.bf16.msra.mxu0 0
    %2487 = vmatprep.subr.bf16.mxu0 0
    %2488 = vmatpush1.bf16.msra.mxu0 0
    %2489 = vmatprep.subr.bf16.mxu0 0
    %2490 = vmatpush1.bf16.msra.mxu0 0
    %2491 = vmatprep.subr.bf16.mxu0 0
    %2492 = vmatpush1.bf16.msra.mxu0 0
    %2493 = vmatprep.subr.bf16.mxu0 0
    %2494 = vmatpush1.bf16.msra.mxu0 0
    %2495 = vmatprep.subr.bf16.mxu0 0
    %2496 = vmatpush1.bf16.msra.mxu0 0
    %2497 = vmatprep.subr.bf16.mxu0 0
    %2498 = vmatpush1.bf16.msra.mxu0 0
    %2499 = vmatprep.subr.bf16.mxu0 0
    %2500 = vmatpush1.bf16.msra.mxu0 0
    %2501 = vmatprep.subr.bf16.mxu0 0
    %2502 = vmatpush1.bf16.msra.mxu0 0
    %2503 = vmatprep.subr.bf16.mxu0 0
    %2504 = vmatpush1.bf16.msra.mxu0 0
    %2505 = vmatprep.subr.bf16.mxu0 0
    %2506 = vmatpush1.bf16.msra.mxu0 0
    %2507 = vmatprep.mubr.bf16.mxu0 0
    %2508 = vmatmul.mubr.bf16.gmra.mrb[0].mxu0 %v2391
    %v2509 = vpop.f32.mrb[0].mxu0
    %v2510 = vadd.f32 0.0, %v2509
    %v2511 = vpop.f32.mrb[0].mxu0
    %v2512 = vpop.f32.mrb[0].mxu0
    %v2513 = vpop.f32.mrb[0].mxu0
    %2514 = vdwg.mxu0
    %v2515 = vadd.f32 %v2510, %v215
    %vm2516 = vcmp.gt.f32.partialorder %v2515, 0.0
    %v2517 = vmul.f32 %v2515, %v2515
    %v2518 = vadd.f32 %v2517, 1.0
    %v2519 = vrsqrt.pop %v2518
    %v2520 = vmul.f32 %v2515, %v2519
    %v2521 = vsel %vm2516, %v2515, %v2520
    %v2522 = vadd.f32 %v2521, 1.005
    %v2523 = vtanh.pop %v2515
    %v2524 = vmul.f32 %v2523, 0.999
    %v2525 = vadd.f32 %v2524, 1.0
    %v2526 = vmul.f32 %v2525, 0.5
    %v2527 = vsel %vm221, %v2522, %v2526
    %v2528 = vsel %vm218, %v2515, %v2527
    %2529 = vst [vmem:[#allocation7 + $0xa] sm:$0x3] %v2528
    %v2530 = vadd.f32 %v147, %v2228
    %v2531 = vadd.f32 %v149, %v2230
    %v2532 = vadd.f32 %v188, %v2269
    %v2533 = vadd.f32 %v190, %v2271
    %v2534 = vxor.u32 %v2530, 2147483648
    %v2535 = vmul.f32 %v2534, 1.442695
    %v2536 = vpow.pop %v2535
    %v2537 = vadd.f32 %v2536, 1.0
    %v2538 = vrcp.pop %v2537
    %v2539 = vmul.f32 1.0, %v2538
    %v2540 = vxor.u32 %v2531, 2147483648
    %v2541 = vmul.f32 %v2540, 1.442695
    %v2542 = vpow.pop %v2541
    %v2543 = vadd.f32 %v2542, 1.0
    %v2544 = vrcp.pop %v2543
    %v2545 = vmul.f32 1.0, %v2544
    %v2546 = vtanh.pop %v2532
    %v2547 = vxor.u32 %v2533, 2147483648
    %v2548 = vmul.f32 %v2547, 1.442695
    %v2549 = vpow.pop %v2548
    %v2550 = vadd.f32 %v2549, 1.0
    %v2551 = vrcp.pop %v2550
    %v2552 = vmul.f32 1.0, %v2551
    %v2553 = vmul.f32 %v2545, %v2186
    %v2554 = vmul.f32 %v2539, %v2546
    %v2555 = vadd.f32 %v2553, %v2554
    %v2556 = vtanh.pop %v2555
    %v2557 = vmul.f32 %v2552, %v2556
    %v2558 = vpack.c.bf16 %v2557, %v2557
    %v2560 = vsel %vm291, %v2558, 0
    %2562 = vmatprep.subr.bf16.mxu0 %v276
    %2563 = vmatpush1.bf16.msra.mxu0 %v275
    %2564 = vmatprep.subr.bf16.mxu0 0
    %2565 = vmatpush1.bf16.msra.mxu0 0
    %2566 = vmatprep.subr.bf16.mxu0 0
    %2567 = vmatpush1.bf16.msra.mxu0 0
    %2568 = vmatprep.subr.bf16.mxu0 0
    %2569 = vmatpush1.bf16.msra.mxu0 0
    %2570 = vmatprep.subr.bf16.mxu0 0
    %2571 = vmatpush1.bf16.msra.mxu0 0
    %2572 = vmatprep.subr.bf16.mxu0 0
    %2573 = vmatpush1.bf16.msra.mxu0 0
    %2574 = vmatprep.subr.bf16.mxu0 0
    %2575 = vmatpush1.bf16.msra.mxu0 0
    %2576 = vmatprep.subr.bf16.mxu0 0
    %2577 = vmatpush1.bf16.msra.mxu0 0
    %2578 = vmatprep.subr.bf16.mxu0 0
    %2579 = vmatpush1.bf16.msra.mxu0 0
    %2580 = vmatprep.subr.bf16.mxu0 0
    %2581 = vmatpush1.bf16.msra.mxu0 0
    %2582 = vmatprep.subr.bf16.mxu0 0
    %2583 = vmatpush1.bf16.msra.mxu0 0
    %2584 = vmatprep.subr.bf16.mxu0 0
    %2585 = vmatpush1.bf16.msra.mxu0 0
    %2586 = vmatprep.subr.bf16.mxu0 0
    %2587 = vmatpush1.bf16.msra.mxu0 0
    %2588 = vmatprep.subr.bf16.mxu0 0
    %2589 = vmatpush1.bf16.msra.mxu0 0
    %2590 = vmatprep.subr.bf16.mxu0 0
    %2591 = vmatpush1.bf16.msra.mxu0 0
    %2592 = vmatprep.subr.bf16.mxu0 0
    %2593 = vmatpush1.bf16.msra.mxu0 0
    %2594 = vmatprep.mubr.bf16.mxu0 0
    %2595 = vmatmul.mubr.bf16.gmra.mrb[0].mxu0 %v2560
    %v2596 = vpop.f32.mrb[0].mxu0
    %v2597 = vadd.f32 0.0, %v2596
    %v2598 = vpop.f32.mrb[0].mxu0
    %v2599 = vadd.f32 0.0, %v2598
    %v2600 = vpop.f32.mrb[0].mxu0
    %v2601 = vpop.f32.mrb[0].mxu0
    %2602 = vdwg.mxu0
    %2603 = vmatprep.subr.bf16.mxu0 %v278
    %2604 = vmatpush1.bf16.msra.mxu0 %v277
    %2605 = vmatprep.subr.bf16.mxu0 0
    %2606 = vmatpush1.bf16.msra.mxu0 0
    %2607 = vmatprep.subr.bf16.mxu0 0
    %2608 = vmatpush1.bf16.msra.mxu0 0
    %2609 = vmatprep.subr.bf16.mxu0 0
    %2610 = vmatpush1.bf16.msra.mxu0 0
    %2611 = vmatprep.subr.bf16.mxu0 0
    %2612 = vmatpush1.bf16.msra.mxu0 0
    %2613 = vmatprep.subr.bf16.mxu0 0
    %2614 = vmatpush1.bf16.msra.mxu0 0
    %2615 = vmatprep.subr.bf16.mxu0 0
    %2616 = vmatpush1.bf16.msra.mxu0 0
    %2617 = vmatprep.subr.bf16.mxu0 0
    %2618 = vmatpush1.bf16.msra.mxu0 0
    %2619 = vmatprep.subr.bf16.mxu0 0
    %2620 = vmatpush1.bf16.msra.mxu0 0
    %2621 = vmatprep.subr.bf16.mxu0 0
    %2622 = vmatpush1.bf16.msra.mxu0 0
    %2623 = vmatprep.subr.bf16.mxu0 0
    %2624 = vmatpush1.bf16.msra.mxu0 0
    %2625 = vmatprep.subr.bf16.mxu0 0
    %2626 = vmatpush1.bf16.msra.mxu0 0
    %2627 = vmatprep.subr.bf16.mxu0 0
    %2628 = vmatpush1.bf16.msra.mxu0 0
    %2629 = vmatprep.subr.bf16.mxu0 0
    %2630 = vmatpush1.bf16.msra.mxu0 0
    %2631 = vmatprep.subr.bf16.mxu0 0
    %2632 = vmatpush1.bf16.msra.mxu0 0
    %2633 = vmatprep.subr.bf16.mxu0 0
    %2634 = vmatpush1.bf16.msra.mxu0 0
    %2635 = vmatprep.mubr.bf16.mxu0 0
    %2636 = vmatmul.mubr.bf16.gmra.mrb[0].mxu0 %v2560
    %v2637 = vpop.f32.mrb[0].mxu0
    %v2638 = vadd.f32 0.0, %v2637
    %v2639 = vpop.f32.mrb[0].mxu0
    %v2640 = vadd.f32 0.0, %v2639
    %v2641 = vpop.f32.mrb[0].mxu0
    %v2642 = vpop.f32.mrb[0].mxu0
    %2643 = vdwg.mxu0
    %2644 = vmatprep.subr.bf16.mxu0 %v280
    %2645 = vmatpush1.bf16.msra.mxu0 %v279
    %2646 = vmatprep.subr.bf16.mxu0 0
    %2647 = vmatpush1.bf16.msra.mxu0 0
    %2648 = vmatprep.subr.bf16.mxu0 0
    %2649 = vmatpush1.bf16.msra.mxu0 0
    %2650 = vmatprep.subr.bf16.mxu0 0
    %2651 = vmatpush1.bf16.msra.mxu0 0
    %2652 = vmatprep.subr.bf16.mxu0 0
    %2653 = vmatpush1.bf16.msra.mxu0 0
    %2654 = vmatprep.subr.bf16.mxu0 0
    %2655 = vmatpush1.bf16.msra.mxu0 0
    %2656 = vmatprep.subr.bf16.mxu0 0
    %2657 = vmatpush1.bf16.msra.mxu0 0
    %2658 = vmatprep.subr.bf16.mxu0 0
    %2659 = vmatpush1.bf16.msra.mxu0 0
    %2660 = vmatprep.subr.bf16.mxu0 0
    %2661 = vmatpush1.bf16.msra.mxu0 0
    %2662 = vmatprep.subr.bf16.mxu0 0
    %2663 = vmatpush1.bf16.msra.mxu0 0
    %2664 = vmatprep.subr.bf16.mxu0 0
    %2665 = vmatpush1.bf16.msra.mxu0 0
    %2666 = vmatprep.subr.bf16.mxu0 0
    %2667 = vmatpush1.bf16.msra.mxu0 0
    %2668 = vmatprep.subr.bf16.mxu0 0
    %2669 = vmatpush1.bf16.msra.mxu0 0
    %2670 = vmatprep.subr.bf16.mxu0 0
    %2671 = vmatpush1.bf16.msra.mxu0 0
    %2672 = vmatprep.subr.bf16.mxu0 0
    %2673 = vmatpush1.bf16.msra.mxu0 0
    %2674 = vmatprep.subr.bf16.mxu0 0
    %2675 = vmatpush1.bf16.msra.mxu0 0
    %2676 = vmatprep.mubr.bf16.mxu0 0
    %2677 = vmatmul.mubr.bf16.gmra.mrb[0].mxu0 %v2560
    %v2678 = vpop.f32.mrb[0].mxu0
    %v2679 = vadd.f32 0.0, %v2678
    %v2680 = vpop.f32.mrb[0].mxu0
    %v2681 = vadd.f32 0.0, %v2680
    %v2682 = vpop.f32.mrb[0].mxu0
    %v2683 = vpop.f32.mrb[0].mxu0
    %2684 = vdwg.mxu0
    %2685 = vmatprep.subr.bf16.mxu0 %v282
    %2686 = vmatpush1.bf16.msra.mxu0 %v281
    %2687 = vmatprep.subr.bf16.mxu0 0
    %2688 = vmatpush1.bf16.msra.mxu0 0
    %2689 = vmatprep.subr.bf16.mxu0 0
    %2690 = vmatpush1.bf16.msra.mxu0 0
    %2691 = vmatprep.subr.bf16.mxu0 0
    %2692 = vmatpush1.bf16.msra.mxu0 0
    %2693 = vmatprep.subr.bf16.mxu0 0
    %2694 = vmatpush1.bf16.msra.mxu0 0
    %2695 = vmatprep.subr.bf16.mxu0 0
    %2696 = vmatpush1.bf16.msra.mxu0 0
    %2697 = vmatprep.subr.bf16.mxu0 0
    %2698 = vmatpush1.bf16.msra.mxu0 0
    %2699 = vmatprep.subr.bf16.mxu0 0
    %2700 = vmatpush1.bf16.msra.mxu0 0
    %2701 = vmatprep.subr.bf16.mxu0 0
    %2702 = vmatpush1.bf16.msra.mxu0 0
    %2703 = vmatprep.subr.bf16.mxu0 0
    %2704 = vmatpush1.bf16.msra.mxu0 0
    %2705 = vmatprep.subr.bf16.mxu0 0
    %2706 = vmatpush1.bf16.msra.mxu0 0
    %2707 = vmatprep.subr.bf16.mxu0 0
    %2708 = vmatpush1.bf16.msra.mxu0 0
    %2709 = vmatprep.subr.bf16.mxu0 0
    %2710 = vmatpush1.bf16.msra.mxu0 0
    %2711 = vmatprep.subr.bf16.mxu0 0
    %2712 = vmatpush1.bf16.msra.mxu0 0
    %2713 = vmatprep.subr.bf16.mxu0 0
    %2714 = vmatpush1.bf16.msra.mxu0 0
    %2715 = vmatprep.subr.bf16.mxu0 0
    %2716 = vmatpush1.bf16.msra.mxu0 0
    %2717 = vmatprep.mubr.bf16.mxu0 0
    %2718 = vmatmul.mubr.bf16.gmra.mrb[0].mxu0 %v2560
    %v2719 = vpop.f32.mrb[0].mxu0
    %v2720 = vadd.f32 0.0, %v2719
    %v2721 = vpop.f32.mrb[0].mxu0
    %v2722 = vadd.f32 0.0, %v2721
    %v2723 = vpop.f32.mrb[0].mxu0
    %v2724 = vpop.f32.mrb[0].mxu0
    %2725 = vdwg.mxu0
    %v2726 = vadd.f32 %v2679, %v197
    %v2727 = vadd.f32 %v2681, %v201
    %v2728 = vadd.f32 %v2720, %v205
    %v2729 = vadd.f32 %v2722, %v209
    %v2730 = vadd.f32 %v2726, %v2428
    %v2731 = vadd.f32 %v2727, %v2430
    %v2732 = vadd.f32 %v2728, %v2469
    %v2733 = vadd.f32 %v2729, %v2471
    %v2734 = vxor.u32 %v2730, 2147483648
    %v2735 = vmul.f32 %v2734, 1.442695
    %v2736 = vpow.pop %v2735
    %v2737 = vadd.f32 %v2736, 1.0
    %v2738 = vrcp.pop %v2737
    %v2739 = vmul.f32 1.0, %v2738
    %v2740 = vxor.u32 %v2731, 2147483648
    %v2741 = vmul.f32 %v2740, 1.442695
    %v2742 = vpow.pop %v2741
    %v2743 = vadd.f32 %v2742, 1.0
    %v2744 = vrcp.pop %v2743
    %v2745 = vmul.f32 1.0, %v2744
    %v2746 = vtanh.pop %v2732
    %v2747 = vxor.u32 %v2733, 2147483648
    %v2748 = vmul.f32 %v2747, 1.442695
    %v2749 = vpow.pop %v2748
    %v2750 = vadd.f32 %v2749, 1.0
    %v2751 = vrcp.pop %v2750
    %v2752 = vmul.f32 1.0, %v2751
    %v2753 = vmul.f32 %v2745, %v2386
    %v2754 = vmul.f32 %v2739, %v2746
    %v2755 = vadd.f32 %v2753, %v2754
    %v2756 = vtanh.pop %v2755
    %v2757 = vmul.f32 %v2752, %v2756
    %v2758 = vpack.c.bf16 %v2757, %v2757
    %v2760 = vsel %vm544, %v2758, 0
    %2762 = vmatprep.subr.bf16.mxu0 %v525
    %2763 = vmatpush1.bf16.msra.mxu0 %v524
    %2764 = vmatprep.subr.bf16.mxu0 %v530
    %2765 = vmatpush1.bf16.msra.mxu0 %v529
    %2766 = vmatprep.subr.bf16.mxu0 0
    %2767 = vmatpush1.bf16.msra.mxu0 0
    %2768 = vmatprep.subr.bf16.mxu0 0
    %2769 = vmatpush1.bf16.msra.mxu0 0
    %2770 = vmatprep.subr.bf16.mxu0 0
    %2771 = vmatpush1.bf16.msra.mxu0 0
    %2772 = vmatprep.subr.bf16.mxu0 0
    %2773 = vmatpush1.bf16.msra.mxu0 0
    %2774 = vmatprep.subr.bf16.mxu0 0
    %2775 = vmatpush1.bf16.msra.mxu0 0
    %2776 = vmatprep.subr.bf16.mxu0 0
    %2777 = vmatpush1.bf16.msra.mxu0 0
    %2778 = vmatprep.subr.bf16.mxu0 0
    %2779 = vmatpush1.bf16.msra.mxu0 0
    %2780 = vmatprep.subr.bf16.mxu0 0
    %2781 = vmatpush1.bf16.msra.mxu0 0
    %2782 = vmatprep.subr.bf16.mxu0 0
    %2783 = vmatpush1.bf16.msra.mxu0 0
    %2784 = vmatprep.subr.bf16.mxu0 0
    %2785 = vmatpush1.bf16.msra.mxu0 0
    %2786 = vmatprep.subr.bf16.mxu0 0
    %2787 = vmatpush1.bf16.msra.mxu0 0
    %2788 = vmatprep.subr.bf16.mxu0 0
    %2789 = vmatpush1.bf16.msra.mxu0 0
    %2790 = vmatprep.subr.bf16.mxu0 0
    %2791 = vmatpush1.bf16.msra.mxu0 0
    %2792 = vmatprep.subr.bf16.mxu0 0
    %2793 = vmatpush1.bf16.msra.mxu0 0
    %2794 = vmatprep.mubr.bf16.mxu0 0
    %2795 = vmatmul.mubr.bf16.gmra.mrb[0].mxu0 %v2760
    %v2796 = vpop.f32.mrb[0].mxu0
    %v2797 = vadd.f32 0.0, %v2796
    %v2798 = vpop.f32.mrb[0].mxu0
    %v2799 = vadd.f32 0.0, %v2798
    %v2800 = vpop.f32.mrb[0].mxu0
    %v2801 = vpop.f32.mrb[0].mxu0
    %2802 = vdwg.mxu0
    %2803 = vmatprep.subr.bf16.mxu0 %v527
    %2804 = vmatpush1.bf16.msra.mxu0 %v526
    %2805 = vmatprep.subr.bf16.mxu0 %v532
    %2806 = vmatpush1.bf16.msra.mxu0 %v531
    %2807 = vmatprep.subr.bf16.mxu0 0
    %2808 = vmatpush1.bf16.msra.mxu0 0
    %2809 = vmatprep.subr.bf16.mxu0 0
    %2810 = vmatpush1.bf16.msra.mxu0 0
    %2811 = vmatprep.subr.bf16.mxu0 0
    %2812 = vmatpush1.bf16.msra.mxu0 0
    %2813 = vmatprep.subr.bf16.mxu0 0
    %2814 = vmatpush1.bf16.msra.mxu0 0
    %2815 = vmatprep.subr.bf16.mxu0 0
    %2816 = vmatpush1.bf16.msra.mxu0 0
    %2817 = vmatprep.subr.bf16.mxu0 0
    %2818 = vmatpush1.bf16.msra.mxu0 0
    %2819 = vmatprep.subr.bf16.mxu0 0
    %2820 = vmatpush1.bf16.msra.mxu0 0
    %2821 = vmatprep.subr.bf16.mxu0 0
    %2822 = vmatpush1.bf16.msra.mxu0 0
    %2823 = vmatprep.subr.bf16.mxu0 0
    %2824 = vmatpush1.bf16.msra.mxu0 0
    %2825 = vmatprep.subr.bf16.mxu0 0
    %2826 = vmatpush1.bf16.msra.mxu0 0
    %2827 = vmatprep.subr.bf16.mxu0 0
    %2828 = vmatpush1.bf16.msra.mxu0 0
    %2829 = vmatprep.subr.bf16.mxu0 0
    %2830 = vmatpush1.bf16.msra.mxu0 0
    %2831 = vmatprep.subr.bf16.mxu0 0
    %2832 = vmatpush1.bf16.msra.mxu0 0
    %2833 = vmatprep.subr.bf16.mxu0 0
    %2834 = vmatpush1.bf16.msra.mxu0 0
    %2835 = vmatprep.mubr.bf16.mxu0 0
    %2836 = vmatmul.mubr.bf16.gmra.mrb[0].mxu0 %v2760
    %v2837 = vpop.f32.mrb[0].mxu0
    %v2838 = vadd.f32 0.0, %v2837
    %v2839 = vpop.f32.mrb[0].mxu0
    %v2840 = vadd.f32 0.0, %v2839
    %v2841 = vpop.f32.mrb[0].mxu0
    %v2842 = vpop.f32.mrb[0].mxu0
    %2843 = vdwg.mxu0
    %2844 = vmatprep.subr.bf16.mxu0 0
    %2845 = vmatpush1.bf16.msra.mxu0 %v528
    %2846 = vmatprep.subr.bf16.mxu0 0
    %2847 = vmatpush1.bf16.msra.mxu0 %v533
    %2848 = vmatprep.subr.bf16.mxu0 0
    %2849 = vmatpush1.bf16.msra.mxu0 0
    %2850 = vmatprep.subr.bf16.mxu0 0
    %2851 = vmatpush1.bf16.msra.mxu0 0
    %2852 = vmatprep.subr.bf16.mxu0 0
    %2853 = vmatpush1.bf16.msra.mxu0 0
    %2854 = vmatprep.subr.bf16.mxu0 0
    %2855 = vmatpush1.bf16.msra.mxu0 0
    %2856 = vmatprep.subr.bf16.mxu0 0
    %2857 = vmatpush1.bf16.msra.mxu0 0
    %2858 = vmatprep.subr.bf16.mxu0 0
    %2859 = vmatpush1.bf16.msra.mxu0 0
    %2860 = vmatprep.subr.bf16.mxu0 0
    %2861 = vmatpush1.bf16.msra.mxu0 0
    %2862 = vmatprep.subr.bf16.mxu0 0
    %2863 = vmatpush1.bf16.msra.mxu0 0
    %2864 = vmatprep.subr.bf16.mxu0 0
    %2865 = vmatpush1.bf16.msra.mxu0 0
    %2866 = vmatprep.subr.bf16.mxu0 0
    %2867 = vmatpush1.bf16.msra.mxu0 0
    %2868 = vmatprep.subr.bf16.mxu0 0
    %2869 = vmatpush1.bf16.msra.mxu0 0
    %2870 = vmatprep.subr.bf16.mxu0 0
    %2871 = vmatpush1.bf16.msra.mxu0 0
    %2872 = vmatprep.subr.bf16.mxu0 0
    %2873 = vmatpush1.bf16.msra.mxu0 0
    %2874 = vmatprep.subr.bf16.mxu0 0
    %2875 = vmatpush1.bf16.msra.mxu0 0
    %2876 = vmatprep.mubr.bf16.mxu0 0
    %2877 = vmatmul.mubr.bf16.gmra.mrb[0].mxu0 %v2760
    %v2878 = vpop.f32.mrb[0].mxu0
    %v2879 = vadd.f32 0.0, %v2878
    %v2880 = vpop.f32.mrb[0].mxu0
    %v2881 = vpop.f32.mrb[0].mxu0
    %v2882 = vpop.f32.mrb[0].mxu0
    %2883 = vdwg.mxu0
    %v2884 = vadd.f32 %v2879, %v215
    %vm2885 = vcmp.gt.f32.partialorder %v2884, 0.0
    %v2886 = vmul.f32 %v2884, %v2884
    %v2887 = vadd.f32 %v2886, 1.0
    %v2888 = vrsqrt.pop %v2887
    %v2889 = vmul.f32 %v2884, %v2888
    %v2890 = vsel %vm2885, %v2884, %v2889
    %v2891 = vadd.f32 %v2890, 1.005
    %v2892 = vtanh.pop %v2884
    %v2893 = vmul.f32 %v2892, 0.999
    %v2894 = vadd.f32 %v2893, 1.0
    %v2895 = vmul.f32 %v2894, 0.5
    %v2896 = vsel %vm221, %v2891, %v2895
    %v2897 = vsel %vm218, %v2884, %v2896
    %2898 = vst [vmem:[#allocation7 + $0xc] sm:$0x3] %v2897
    %v2899 = vadd.f32 %v147, %v2597
    %v2900 = vadd.f32 %v149, %v2599
    %v2901 = vadd.f32 %v188, %v2638
    %v2902 = vadd.f32 %v190, %v2640
    %v2903 = vxor.u32 %v2899, 2147483648
    %v2904 = vmul.f32 %v2903, 1.442695
    %v2905 = vpow.pop %v2904
    %v2906 = vadd.f32 %v2905, 1.0
    %v2907 = vrcp.pop %v2906
    %v2908 = vmul.f32 1.0, %v2907
    %v2909 = vxor.u32 %v2900, 2147483648
    %v2910 = vmul.f32 %v2909, 1.442695
    %v2911 = vpow.pop %v2910
    %v2912 = vadd.f32 %v2911, 1.0
    %v2913 = vrcp.pop %v2912
    %v2914 = vmul.f32 1.0, %v2913
    %v2915 = vtanh.pop %v2901
    %v2916 = vxor.u32 %v2902, 2147483648
    %v2917 = vmul.f32 %v2916, 1.442695
    %v2918 = vpow.pop %v2917
    %v2919 = vadd.f32 %v2918, 1.0
    %v2920 = vrcp.pop %v2919
    %v2921 = vmul.f32 1.0, %v2920
    %v2922 = vmul.f32 %v2914, %v2555
    %v2923 = vmul.f32 %v2908, %v2915
    %v2924 = vadd.f32 %v2922, %v2923
    %v2925 = vtanh.pop %v2924
    %v2926 = vmul.f32 %v2921, %v2925
    %v2927 = vpack.c.bf16 %v2926, %v2926
    %v2929 = vsel %vm291, %v2927, 0
    %2931 = vmatprep.subr.bf16.mxu0 %v280
    %2932 = vmatpush1.bf16.msra.mxu0 %v279
    %2933 = vmatprep.subr.bf16.mxu0 0
    %2934 = vmatpush1.bf16.msra.mxu0 0
    %2935 = vmatprep.subr.bf16.mxu0 0
    %2936 = vmatpush1.bf16.msra.mxu0 0
    %2937 = vmatprep.subr.bf16.mxu0 0
    %2938 = vmatpush1.bf16.msra.mxu0 0
    %2939 = vmatprep.subr.bf16.mxu0 0
    %2940 = vmatpush1.bf16.msra.mxu0 0
    %2941 = vmatprep.subr.bf16.mxu0 0
    %2942 = vmatpush1.bf16.msra.mxu0 0
    %2943 = vmatprep.subr.bf16.mxu0 0
    %2944 = vmatpush1.bf16.msra.mxu0 0
    %2945 = vmatprep.subr.bf16.mxu0 0
    %2946 = vmatpush1.bf16.msra.mxu0 0
    %2947 = vmatprep.subr.bf16.mxu0 0
    %2948 = vmatpush1.bf16.msra.mxu0 0
    %2949 = vmatprep.subr.bf16.mxu0 0
    %2950 = vmatpush1.bf16.msra.mxu0 0
    %2951 = vmatprep.subr.bf16.mxu0 0
    %2952 = vmatpush1.bf16.msra.mxu0 0
    %2953 = vmatprep.subr.bf16.mxu0 0
    %2954 = vmatpush1.bf16.msra.mxu0 0
    %2955 = vmatprep.subr.bf16.mxu0 0
    %2956 = vmatpush1.bf16.msra.mxu0 0
    %2957 = vmatprep.subr.bf16.mxu0 0
    %2958 = vmatpush1.bf16.msra.mxu0 0
    %2959 = vmatprep.subr.bf16.mxu0 0
    %2960 = vmatpush1.bf16.msra.mxu0 0
    %2961 = vmatprep.subr.bf16.mxu0 0
    %2962 = vmatpush1.bf16.msra.mxu0 0
    %2963 = vmatprep.mubr.bf16.mxu0 0
    %2964 = vmatmul.mubr.bf16.gmra.mrb[0].mxu0 %v2929
    %v2965 = vpop.f32.mrb[0].mxu0
    %v2966 = vadd.f32 0.0, %v2965
    %v2967 = vpop.f32.mrb[0].mxu0
    %v2968 = vadd.f32 0.0, %v2967
    %v2969 = vpop.f32.mrb[0].mxu0
    %v2970 = vpop.f32.mrb[0].mxu0
    %2971 = vdwg.mxu0
    %2972 = vmatprep.subr.bf16.mxu0 %v282
    %2973 = vmatpush1.bf16.msra.mxu0 %v281
    %2974 = vmatprep.subr.bf16.mxu0 0
    %2975 = vmatpush1.bf16.msra.mxu0 0
    %2976 = vmatprep.subr.bf16.mxu0 0
    %2977 = vmatpush1.bf16.msra.mxu0 0
    %2978 = vmatprep.subr.bf16.mxu0 0
    %2979 = vmatpush1.bf16.msra.mxu0 0
    %2980 = vmatprep.subr.bf16.mxu0 0
    %2981 = vmatpush1.bf16.msra.mxu0 0
    %2982 = vmatprep.subr.bf16.mxu0 0
    %2983 = vmatpush1.bf16.msra.mxu0 0
    %2984 = vmatprep.subr.bf16.mxu0 0
    %2985 = vmatpush1.bf16.msra.mxu0 0
    %2986 = vmatprep.subr.bf16.mxu0 0
    %2987 = vmatpush1.bf16.msra.mxu0 0
    %2988 = vmatprep.subr.bf16.mxu0 0
    %2989 = vmatpush1.bf16.msra.mxu0 0
    %2990 = vmatprep.subr.bf16.mxu0 0
    %2991 = vmatpush1.bf16.msra.mxu0 0
    %2992 = vmatprep.subr.bf16.mxu0 0
    %2993 = vmatpush1.bf16.msra.mxu0 0
    %2994 = vmatprep.subr.bf16.mxu0 0
    %2995 = vmatpush1.bf16.msra.mxu0 0
    %2996 = vmatprep.subr.bf16.mxu0 0
    %2997 = vmatpush1.bf16.msra.mxu0 0
    %2998 = vmatprep.subr.bf16.mxu0 0
    %2999 = vmatpush1.bf16.msra.mxu0 0
    %3000 = vmatprep.subr.bf16.mxu0 0
    %3001 = vmatpush1.bf16.msra.mxu0 0
    %3002 = vmatprep.subr.bf16.mxu0 0
    %3003 = vmatpush1.bf16.msra.mxu0 0
    %3004 = vmatprep.mubr.bf16.mxu0 0
    %3005 = vmatmul.mubr.bf16.gmra.mrb[0].mxu0 %v2929
    %v3006 = vpop.f32.mrb[0].mxu0
    %v3007 = vadd.f32 0.0, %v3006
    %v3008 = vpop.f32.mrb[0].mxu0
    %v3009 = vadd.f32 0.0, %v3008
    %v3010 = vpop.f32.mrb[0].mxu0
    %v3011 = vpop.f32.mrb[0].mxu0
    %3012 = vdwg.mxu0
    %v3013 = vadd.f32 %v2966, %v197
    %v3014 = vadd.f32 %v2968, %v201
    %v3015 = vadd.f32 %v3007, %v205
    %v3016 = vadd.f32 %v3009, %v209
    %v3017 = vadd.f32 %v3013, %v2797
    %v3018 = vadd.f32 %v3014, %v2799
    %v3019 = vadd.f32 %v3015, %v2838
    %v3020 = vadd.f32 %v3016, %v2840
    %v3021 = vxor.u32 %v3017, 2147483648
    %v3022 = vmul.f32 %v3021, 1.442695
    %v3023 = vpow.pop %v3022
    %v3024 = vadd.f32 %v3023, 1.0
    %v3025 = vrcp.pop %v3024
    %v3026 = vmul.f32 1.0, %v3025
    %v3027 = vxor.u32 %v3018, 2147483648
    %v3028 = vmul.f32 %v3027, 1.442695
    %v3029 = vpow.pop %v3028
    %v3030 = vadd.f32 %v3029, 1.0
    %v3031 = vrcp.pop %v3030
    %v3032 = vmul.f32 1.0, %v3031
    %v3033 = vtanh.pop %v3019
    %v3034 = vxor.u32 %v3020, 2147483648
    %v3035 = vmul.f32 %v3034, 1.442695
    %v3036 = vpow.pop %v3035
    %v3037 = vadd.f32 %v3036, 1.0
    %v3038 = vrcp.pop %v3037
    %v3039 = vmul.f32 1.0, %v3038
    %v3040 = vmul.f32 %v3032, %v2755
    %v3041 = vmul.f32 %v3026, %v3033
    %v3042 = vadd.f32 %v3040, %v3041
    %v3043 = vtanh.pop %v3042
    %v3044 = vmul.f32 %v3039, %v3043
    %v3045 = vpack.c.bf16 %v3044, %v3044
    %v3047 = vsel %vm544, %v3045, 0
    %3049 = vmatprep.subr.bf16.mxu0 0
    %3050 = vmatpush1.bf16.msra.mxu0 %v528
    %3051 = vmatprep.subr.bf16.mxu0 0
    %3052 = vmatpush1.bf16.msra.mxu0 %v533
    %3053 = vmatprep.subr.bf16.mxu0 0
    %3054 = vmatpush1.bf16.msra.mxu0 0
    %3055 = vmatprep.subr.bf16.mxu0 0
    %3056 = vmatpush1.bf16.msra.mxu0 0
    %3057 = vmatprep.subr.bf16.mxu0 0
    %3058 = vmatpush1.bf16.msra.mxu0 0
    %3059 = vmatprep.subr.bf16.mxu0 0
    %3060 = vmatpush1.bf16.msra.mxu0 0
    %3061 = vmatprep.subr.bf16.mxu0 0
    %3062 = vmatpush1.bf16.msra.mxu0 0
    %3063 = vmatprep.subr.bf16.mxu0 0
    %3064 = vmatpush1.bf16.msra.mxu0 0
    %3065 = vmatprep.subr.bf16.mxu0 0
    %3066 = vmatpush1.bf16.msra.mxu0 0
    %3067 = vmatprep.subr.bf16.mxu0 0
    %3068 = vmatpush1.bf16.msra.mxu0 0
    %3069 = vmatprep.subr.bf16.mxu0 0
    %3070 = vmatpush1.bf16.msra.mxu0 0
    %3071 = vmatprep.subr.bf16.mxu0 0
    %3072 = vmatpush1.bf16.msra.mxu0 0
    %3073 = vmatprep.subr.bf16.mxu0 0
    %3074 = vmatpush1.bf16.msra.mxu0 0
    %3075 = vmatprep.subr.bf16.mxu0 0
    %3076 = vmatpush1.bf16.msra.mxu0 0
    %3077 = vmatprep.subr.bf16.mxu0 0
    %3078 = vmatpush1.bf16.msra.mxu0 0
    %3079 = vmatprep.subr.bf16.mxu0 0
    %3080 = vmatpush1.bf16.msra.mxu0 0
    %3081 = vmatprep.mubr.bf16.mxu0 0
    %3082 = vmatmul.mubr.bf16.gmra.mrb[0].mxu0 %v3047
    %v3083 = vpop.f32.mrb[0].mxu0
    %v3084 = vadd.f32 0.0, %v3083
    %v3085 = vpop.f32.mrb[0].mxu0
    %v3086 = vpop.f32.mrb[0].mxu0
    %v3087 = vpop.f32.mrb[0].mxu0
    %3088 = vdwg.mxu0
    %v3089 = vadd.f32 %v3084, %v215
    %vm3090 = vcmp.gt.f32.partialorder %v3089, 0.0
    %v3091 = vmul.f32 %v3089, %v3089
    %v3092 = vadd.f32 %v3091, 1.0
    %v3093 = vrsqrt.pop %v3092
    %v3094 = vmul.f32 %v3089, %v3093
    %v3095 = vsel %vm3090, %v3089, %v3094
    %v3096 = vadd.f32 %v3095, 1.005
    %v3097 = vtanh.pop %v3089
    %v3098 = vmul.f32 %v3097, 0.999
    %v3099 = vadd.f32 %v3098, 1.0
    %v3100 = vmul.f32 %v3099, 0.5
    %v3101 = vsel %vm221, %v3096, %v3100
    %v3102 = vsel %vm218, %v3089, %v3101
    %3103 = vst [vmem:[#allocation7 + $0xe] sm:$0x3] %v3102
    // Predicated region
    $region18: #{tpu_custom_call.1} parent=1 // pred_check
      _
    $region19: #{tpu_custom_call.1} parent=1 // pred_check_branch
      %3105 = sbr.rel (0) target = $region21
    $region20: #{tpu_custom_call.1} parent=1 // pred_region
      %s3107 = ssub.s32 256, 256
      %3108 = vsyncadd [#allocation4], %s3107
      %s3110 = sshll.u32 [#allocation7], 4
      %s3111 = int_to_ptr.vmem [resolvable:$true] %s3110
      %3113 = dma.vmem_to_hbm [thread:$0]  %s3111, 256, %s2, [#allocation4]
    $region21: #{tpu_custom_call.1} parent=1 // pred_fallthru
      _
    // Predicated region
    $region22: #{tpu_custom_call.1} parent=1 // pred_check
      _
    $region23: #{tpu_custom_call.1} parent=1 // pred_check_branch
      %3115 = sbr.rel (0) target = $region25
    $region24: #{tpu_custom_call.1} parent=1 // pred_region
      %3116 = dma.done [#allocation4], 256
    $region25: #{tpu_custom_call.1} parent=1 // pred_fallthru
      _
    %3117 = vsyncpa [#allocation3], 1
    %3118 = vsyncpa [#allocation6], 1
    %3119 = vsyncpa [#allocation4], 1

</llo_original>
